<compile_context>
chip_gen: v7x
topology: tpu7x:2x2x1
jax: 0.10.0
libtpu: 0.0.40
codegen_flags: <defaults>
</compile_context>

<pallas_src>
import functools

import jax
import jax.numpy as jnp
from jax.experimental import pallas as pl
from jax.experimental.pallas import tpu as pltpu

_LANE = 128
_DPAD = 64          # dimz (35) zero-padded to a lane-friendly 64


def _leaky_relu(x, negative_slope=0.01):
    # torch.nn.LeakyReLU default negative_slope = 0.01
    return jnp.where(x > 0, x, negative_slope * x)


def _round_up(a, m):
    return ((a + m - 1) // m) * m


def _pick_tile(batch, tm_max=1024):
    """Adaptive batch tile.

    Multiple of 256 (fills the 2x256 MXU M-dim), capped at tm_max, and chosen
    so the grid has >=2 steps whenever batch > 256 (keeps both v7x TensorCores
    busy) while still being as large as possible (amortise grid overhead).
    """
    if batch <= 256:
        return 256
    return min(tm_max, 256 * (-(-batch // 512)))


def imnet_kernel(
    x_ref,        # (tm, _DPAD)          bf16, padded input
    wx_ref,       # (_DPAD, sum(seg))    bf16, fused [W0 | W1x | W2x | W3x | W4x]
    bx_ref,       # (1, sum(seg))        f32,  fused [b0 | b1 | b2 | b3 | b4]
    w1_ref,       # (512, 256)           bf16
    w2_ref,       # (256, 128)           bf16
    w3_ref,       # (128, 128)           bf16 (out padded 64->128)
    w4_ref,       # (128, 128)           bf16 (K padded 64->128, out 32->128)
    w5_ref,       # (128, 128)           bf16 (K padded 32->128, out 4->128)
    b5_ref,       # (1, 128)             f32
    o_ref,        # (tm, 128)            f32, lane-dense padded output
    *, seg_widths,
):
    """One batch tile of the ImNet forward pass (fully fused)."""
    # Single fused MXU pass for fc0 + all four input skip projections + biases.
    xw = jnp.dot(x_ref[...], wx_ref[...],
                 preferred_element_type=jnp.float32) + bx_ref[...]

    off = seg_widths[0]
    h = _leaky_relu(xw[:, :off])                      # fc0 output (f32)

    # fc1..fc4: cat([h, x]) @ W  ==  h @ W_h + (x @ W_x)   (skip term = xw slice)
    for w_ref, width in zip((w1_ref, w2_ref, w3_ref, w4_ref), seg_widths[1:]):
        h = _leaky_relu(
            jnp.dot(h.astype(jnp.bfloat16), w_ref[...],
                    preferred_element_type=jnp.float32)
            + xw[:, off:off + width])
        off += width

    # fc5 (no activation); padded columns are exact zeros.
    out = jnp.dot(h.astype(jnp.bfloat16), w5_ref[...],
                  preferred_element_type=jnp.float32) + b5_ref[...]
    o_ref[...] = out.astype(o_ref.dtype)


def init_imnet_params(key, dim=3, in_features=32, out_features=4, nf=32,
                      dtype=jnp.float32):
    """Deterministic synthetic parameters with the same shapes as the PyTorch module.

    Weights stored as [in, out] (transposed vs torch's [out, in]); biases [1, out].
    """
    dimz = dim + in_features
    widths_in = [dimz, nf * 16 + dimz, nf * 8 + dimz, nf * 4 + dimz,
                 nf * 2 + dimz, nf * 1]
    widths_out = [nf * 16, nf * 8, nf * 4, nf * 2, nf * 1, out_features]

    params = {}
    keys = jax.random.split(key, 2 * len(widths_in))
    for i, (fin, fout) in enumerate(zip(widths_in, widths_out)):
        bound = 1.0 / jnp.sqrt(jnp.asarray(fin, dtype=jnp.float32))
        params[f"w{i}"] = jax.random.uniform(keys[2 * i], (fin, fout), dtype=dtype,
                                             minval=-bound, maxval=bound)
        params[f"b{i}"] = jax.random.uniform(keys[2 * i + 1], (1, fout), dtype=dtype,
                                             minval=-bound, maxval=bound)
    params["dimz"] = dimz
    return params


def imnet_forward(x, params, *, tm_max=1024, interpret=False):
    """ImNet forward pass via a single fused Pallas TPU kernel.

    x: [batch, dimz] float32.  Any batch size; internally zero-padded to a
    multiple of the (adaptive) batch tile and sliced back.
    """
    B, dimz = x.shape
    assert dimz == params["dimz"]
    out_features = params["w5"].shape[1]

    # ---- adaptive batch tile ------------------------------------------------
    tm = _pick_tile(B, tm_max)
    B_pad = _round_up(B, tm)

    # ---- input: pad batch rows + lane-align dimz, DMA as bf16 ---------------
    x = x.astype(jnp.bfloat16)
    x = jnp.pad(x, ((0, B_pad - B), (0, _DPAD - dimz)))

    # ---- split skip weights and build the fused x-projection ---------------
    def pad_to(a, rows=None, cols=None):
        r = 0 if rows is None else rows - a.shape[0]
        c = 0 if cols is None else cols - a.shape[1]
        return jnp.pad(a, ((0, r), (0, c)))

    w0 = params["w0"]                                   # (dimz, 512)
    wh_list, wx_list = [], []
    prev_out = w0.shape[1]
    for i in (1, 2, 3, 4):
        w = params[f"w{i}"]
        wh_list.append(w[:prev_out])                    # hidden part
        wx_list.append(w[prev_out:])                    # x (skip) part
        prev_out = w.shape[1]

    # 128-aligned segment widths for [fc0 | fc1..fc4 skip] lanes: 512,256,128,128,128
    seg_widths = [max(_LANE, _round_up(c.shape[1], _LANE)) for c in [w0] + wx_list]

    wx_fused = pad_to(
        jnp.concatenate(
            [pad_to(c, cols=s) for c, s in zip([w0] + wx_list, seg_widths)], axis=1),
        rows=_DPAD).astype(jnp.bfloat16)
    bx_fused = jnp.concatenate(
        [pad_to(params[f"b{i}"], cols=s) for i, s in zip(range(5), seg_widths)],
        axis=1).astype(jnp.float32)

    # Hidden-side weights, zero-padded to 128-aligned K (prev padded width) / N.
    wh_padded = [
        pad_to(wh, rows=seg_widths[i], cols=seg_widths[i + 1]).astype(jnp.bfloat16)
        for i, wh in enumerate(wh_list)                 # layers fc1..fc4
    ]

    # fc5: K padded 32->128, output padded to 128 lanes (lane-dense stores).
    n_out = max(_LANE, _round_up(out_features, _LANE))
    w5 = pad_to(params["w5"], rows=seg_widths[4], cols=n_out).astype(jnp.bfloat16)
    b5 = pad_to(params["b5"], cols=n_out).astype(jnp.float32)

    weights = [wx_fused, bx_fused] + wh_padded + [w5, b5]

    # ---- specs ---------------------------------------------------------------
    def full_spec(arr):
        # Whole parameter resident in VMEM; grid-invariant block index -> the
        # pipeline DMAs it only once (no per-step re-fetch).
        return pl.BlockSpec(arr.shape, lambda i: (0,) * arr.ndim)

    in_specs = [pl.BlockSpec((tm, _DPAD), lambda i: (i, 0))] + [
        full_spec(w) for w in weights
    ]
    out_spec = pl.BlockSpec((tm, n_out), lambda i: (i, 0))

    fn = pl.pallas_call(
        functools.partial(imnet_kernel,
                          seg_widths=tuple(int(s) for s in seg_widths)),
        out_shape=jax.ShapeDtypeStruct((B_pad, n_out), jnp.float32),
        grid_spec=pltpu.PrefetchScalarGridSpec(
            num_scalar_prefetch=0,
            grid=(B_pad // tm,),
            in_specs=in_specs,
            out_specs=out_spec,
        ),
        compiler_params=pltpu.CompilerParams(
            dimension_semantics=("parallel",),   # v7x: shard batch grid over 2 TCs
            vmem_limit_bytes=32 << 20,
        ),
        interpret=interpret,
    )
    out = fn(x, *weights)
    return out[:B, :out_features]


def imnet_reference(x, params):
    """Pure-JAX f32 reference matching the PyTorch forward exactly."""
    x = x.astype(jnp.float32)
    h = x
    for i in range(4):
        h = _leaky_relu(h @ params[f"w{i}"] + params[f"b{i}"])
        h = jnp.concatenate([h, x], axis=-1)
    h = _leaky_relu(h @ params["w4"] + params["b4"])
    return h @ params["w5"] + params["b5"]


if __name__ == "__main__":
    key = jax.random.PRNGKey(0)
    k_param, k_x = jax.random.split(key)

    dim, in_features, out_features, nf = 3, 32, 4, 32
    params = init_imnet_params(k_param, dim=dim, in_features=in_features,
                               out_features=out_features, nf=nf)

    batch = 64  # small demo batch; wrapper pads to the 256-row minimum tile
    x = jax.random.normal(k_x, (batch, dim + in_features), dtype=jnp.float32)

    out = jax.block_until_ready(imnet_forward(x, params))
    ref = imnet_reference(x, params)

    assert out.shape == (batch, out_features)
    err = float(jnp.max(jnp.abs(out - ref)))
    # bf16 matmul operands with f32 accumulation vs f32 reference: ~1e-3 error.
    assert err < 2e-2, f"max abs err {err}"

    print("KERNEL_OK")
</pallas_src>

<mosaic_0001>
module attributes {stable_mosaic.version = 11 : i64} {
  func.func @imnet_kernel(%arg0: i32, %arg1: memref<256x64xbf16, #tpu.memory_space<vmem>>, %arg2: memref<64x1152xbf16, #tpu.memory_space<vmem>>, %arg3: memref<1x1152xf32, #tpu.memory_space<vmem>>, %arg4: memref<512x256xbf16, #tpu.memory_space<vmem>>, %arg5: memref<256x128xbf16, #tpu.memory_space<vmem>>, %arg6: memref<128x128xbf16, #tpu.memory_space<vmem>>, %arg7: memref<128x128xbf16, #tpu.memory_space<vmem>>, %arg8: memref<128x128xbf16, #tpu.memory_space<vmem>>, %arg9: memref<1x128xf32, #tpu.memory_space<vmem>>, %arg10: memref<256x128xf32, #tpu.memory_space<vmem>>) attributes {dimension_semantics = [#tpu.dimension_semantics<parallel>], iteration_bounds = array<i64: 1>, scalar_prefetch = 0 : i64, scratch_operands = 0 : i64, tpu.core_type = #tpu.core_type<tc>, window_params = [{transform_indices = @transform_0, window_bounds = array<i64: 256, 64>}, {pipeline_mode = #tpu.pipeline_mode<synchronous>, transform_indices = @transform_1, window_bounds = array<i64: 64, 1152>}, {pipeline_mode = #tpu.pipeline_mode<synchronous>, transform_indices = @transform_2, window_bounds = array<i64: 1, 1152>}, {pipeline_mode = #tpu.pipeline_mode<synchronous>, transform_indices = @transform_3, window_bounds = array<i64: 512, 256>}, {pipeline_mode = #tpu.pipeline_mode<synchronous>, transform_indices = @transform_4, window_bounds = array<i64: 256, 128>}, {pipeline_mode = #tpu.pipeline_mode<synchronous>, transform_indices = @transform_5, window_bounds = array<i64: 128, 128>}, {pipeline_mode = #tpu.pipeline_mode<synchronous>, transform_indices = @transform_6, window_bounds = array<i64: 128, 128>}, {pipeline_mode = #tpu.pipeline_mode<synchronous>, transform_indices = @transform_7, window_bounds = array<i64: 128, 128>}, {pipeline_mode = #tpu.pipeline_mode<synchronous>, transform_indices = @transform_8, window_bounds = array<i64: 1, 128>}, {transform_indices = @transform_9, window_bounds = array<i64: 256, 128>}]} {
    %c0 = arith.constant 0 : index
    %c0_0 = arith.constant 0 : index
    %0 = vector.load %arg1[%c0, %c0_0] : memref<256x64xbf16, #tpu.memory_space<vmem>>, vector<256x64xbf16>
    %c0_1 = arith.constant 0 : index
    %c0_2 = arith.constant 0 : index
    %1 = vector.load %arg2[%c0_1, %c0_2] : memref<64x1152xbf16, #tpu.memory_space<vmem>>, vector<64x1152xbf16>
    %cst = arith.constant dense<0.000000e+00> : vector<256x1152xf32>
    %2 = tpu.matmul %0, %1, %cst {dimension_numbers = #tpu.dot_dimension_numbers<[1], [0], [0], [1], [0, 0, 1, 1], [], []>} : vector<256x64xbf16>, vector<64x1152xbf16>, vector<256x1152xf32> -> vector<256x1152xf32>
    %c0_3 = arith.constant 0 : index
    %c0_4 = arith.constant 0 : index
    %3 = vector.load %arg3[%c0_3, %c0_4] : memref<1x1152xf32, #tpu.memory_space<vmem>>, vector<1x1152xf32>
    %4 = vector.broadcast %3 : vector<1x1152xf32> to vector<256x1152xf32>
    %5 = arith.addf %2, %4 : vector<256x1152xf32>
    %6 = vector.extract_strided_slice %5 {offsets = [0, 0], sizes = [256, 512], strides = [1, 1]} : vector<256x1152xf32> to vector<256x512xf32>
    %cst_5 = arith.constant 0.000000e+00 : f32
    %7 = vector.broadcast %cst_5 : f32 to vector<256x512xf32>
    %8 = arith.cmpf ogt, %6, %7 : vector<256x512xf32>
    %cst_6 = arith.constant 0.00999999977 : f32
    %9 = vector.broadcast %cst_6 : f32 to vector<256x512xf32>
    %10 = arith.mulf %9, %6 : vector<256x512xf32>
    %11 = arith.select %8, %6, %10 : vector<256x512xi1>, vector<256x512xf32>
    %12 = arith.truncf %11 : vector<256x512xf32> to vector<256x512xbf16>
    %c0_7 = arith.constant 0 : index
    %c0_8 = arith.constant 0 : index
    %13 = vector.load %arg4[%c0_7, %c0_8] : memref<512x256xbf16, #tpu.memory_space<vmem>>, vector<512x256xbf16>
    %cst_9 = arith.constant dense<0.000000e+00> : vector<256x256xf32>
    %14 = tpu.matmul %12, %13, %cst_9 {dimension_numbers = #tpu.dot_dimension_numbers<[1], [0], [0], [1], [0, 0, 1, 1], [], []>} : vector<256x512xbf16>, vector<512x256xbf16>, vector<256x256xf32> -> vector<256x256xf32>
    %15 = vector.extract_strided_slice %5 {offsets = [0, 512], sizes = [256, 256], strides = [1, 1]} : vector<256x1152xf32> to vector<256x256xf32>
    %16 = arith.addf %14, %15 : vector<256x256xf32>
    %cst_10 = arith.constant 0.000000e+00 : f32
    %17 = vector.broadcast %cst_10 : f32 to vector<256x256xf32>
    %18 = arith.cmpf ogt, %16, %17 : vector<256x256xf32>
    %cst_11 = arith.constant 0.00999999977 : f32
    %19 = vector.broadcast %cst_11 : f32 to vector<256x256xf32>
    %20 = arith.mulf %19, %16 : vector<256x256xf32>
    %21 = arith.select %18, %16, %20 : vector<256x256xi1>, vector<256x256xf32>
    %22 = arith.truncf %21 : vector<256x256xf32> to vector<256x256xbf16>
    %c0_12 = arith.constant 0 : index
    %c0_13 = arith.constant 0 : index
    %23 = vector.load %arg5[%c0_12, %c0_13] : memref<256x128xbf16, #tpu.memory_space<vmem>>, vector<256x128xbf16>
    %cst_14 = arith.constant dense<0.000000e+00> : vector<256x128xf32>
    %24 = tpu.matmul %22, %23, %cst_14 {dimension_numbers = #tpu.dot_dimension_numbers<[1], [0], [0], [1], [0, 0, 1, 1], [], []>} : vector<256x256xbf16>, vector<256x128xbf16>, vector<256x128xf32> -> vector<256x128xf32>
    %25 = vector.extract_strided_slice %5 {offsets = [0, 768], sizes = [256, 128], strides = [1, 1]} : vector<256x1152xf32> to vector<256x128xf32>
    %26 = arith.addf %24, %25 : vector<256x128xf32>
    %cst_15 = arith.constant 0.000000e+00 : f32
    %27 = vector.broadcast %cst_15 : f32 to vector<256x128xf32>
    %28 = arith.cmpf ogt, %26, %27 : vector<256x128xf32>
    %cst_16 = arith.constant 0.00999999977 : f32
    %29 = vector.broadcast %cst_16 : f32 to vector<256x128xf32>
    %30 = arith.mulf %29, %26 : vector<256x128xf32>
    %31 = arith.select %28, %26, %30 : vector<256x128xi1>, vector<256x128xf32>
    %32 = arith.truncf %31 : vector<256x128xf32> to vector<256x128xbf16>
    %c0_17 = arith.constant 0 : index
    %c0_18 = arith.constant 0 : index
    %33 = vector.load %arg6[%c0_17, %c0_18] : memref<128x128xbf16, #tpu.memory_space<vmem>>, vector<128x128xbf16>
    %cst_19 = arith.constant dense<0.000000e+00> : vector<256x128xf32>
    %34 = tpu.matmul %32, %33, %cst_19 {dimension_numbers = #tpu.dot_dimension_numbers<[1], [0], [0], [1], [0, 0, 1, 1], [], []>} : vector<256x128xbf16>, vector<128x128xbf16>, vector<256x128xf32> -> vector<256x128xf32>
    %35 = vector.extract_strided_slice %5 {offsets = [0, 896], sizes = [256, 128], strides = [1, 1]} : vector<256x1152xf32> to vector<256x128xf32>
    %36 = arith.addf %34, %35 : vector<256x128xf32>
    %cst_20 = arith.constant 0.000000e+00 : f32
    %37 = vector.broadcast %cst_20 : f32 to vector<256x128xf32>
    %38 = arith.cmpf ogt, %36, %37 : vector<256x128xf32>
    %cst_21 = arith.constant 0.00999999977 : f32
    %39 = vector.broadcast %cst_21 : f32 to vector<256x128xf32>
    %40 = arith.mulf %39, %36 : vector<256x128xf32>
    %41 = arith.select %38, %36, %40 : vector<256x128xi1>, vector<256x128xf32>
    %42 = arith.truncf %41 : vector<256x128xf32> to vector<256x128xbf16>
    %c0_22 = arith.constant 0 : index
    %c0_23 = arith.constant 0 : index
    %43 = vector.load %arg7[%c0_22, %c0_23] : memref<128x128xbf16, #tpu.memory_space<vmem>>, vector<128x128xbf16>
    %cst_24 = arith.constant dense<0.000000e+00> : vector<256x128xf32>
    %44 = tpu.matmul %42, %43, %cst_24 {dimension_numbers = #tpu.dot_dimension_numbers<[1], [0], [0], [1], [0, 0, 1, 1], [], []>} : vector<256x128xbf16>, vector<128x128xbf16>, vector<256x128xf32> -> vector<256x128xf32>
    %45 = vector.extract_strided_slice %5 {offsets = [0, 1024], sizes = [256, 128], strides = [1, 1]} : vector<256x1152xf32> to vector<256x128xf32>
    %46 = arith.addf %44, %45 : vector<256x128xf32>
    %cst_25 = arith.constant 0.000000e+00 : f32
    %47 = vector.broadcast %cst_25 : f32 to vector<256x128xf32>
    %48 = arith.cmpf ogt, %46, %47 : vector<256x128xf32>
    %cst_26 = arith.constant 0.00999999977 : f32
    %49 = vector.broadcast %cst_26 : f32 to vector<256x128xf32>
    %50 = arith.mulf %49, %46 : vector<256x128xf32>
    %51 = arith.select %48, %46, %50 : vector<256x128xi1>, vector<256x128xf32>
    %52 = arith.truncf %51 : vector<256x128xf32> to vector<256x128xbf16>
    %c0_27 = arith.constant 0 : index
    %c0_28 = arith.constant 0 : index
    %53 = vector.load %arg8[%c0_27, %c0_28] : memref<128x128xbf16, #tpu.memory_space<vmem>>, vector<128x128xbf16>
    %cst_29 = arith.constant dense<0.000000e+00> : vector<256x128xf32>
    %54 = tpu.matmul %52, %53, %cst_29 {dimension_numbers = #tpu.dot_dimension_numbers<[1], [0], [0], [1], [0, 0, 1, 1], [], []>} : vector<256x128xbf16>, vector<128x128xbf16>, vector<256x128xf32> -> vector<256x128xf32>
    %c0_30 = arith.constant 0 : index
    %c0_31 = arith.constant 0 : index
    %55 = vector.load %arg9[%c0_30, %c0_31] : memref<1x128xf32, #tpu.memory_space<vmem>>, vector<1x128xf32>
    %56 = vector.broadcast %55 : vector<1x128xf32> to vector<256x128xf32>
    %57 = arith.addf %54, %56 : vector<256x128xf32>
    %c0_32 = arith.constant 0 : index
    %c0_33 = arith.constant 0 : index
    %58 = vector.load %arg10[%c0_32, %c0_33] : memref<256x128xf32, #tpu.memory_space<vmem>>, vector<256x128xf32>
    tpu.vector_store %arg10[%c0_32, %c0_33], %57 {strides = array<i32>} : memref<256x128xf32, #tpu.memory_space<vmem>>, vector<256x128xf32>,
    return
  }
  func.func @transform_0(%arg0: i32) -> (i32, i32) {
    %c0_i32 = arith.constant 0 : i32
    %c0_i32_0 = arith.constant 0 : i32
    return %arg0, %c0_i32 : i32, i32
  }
  func.func @transform_1(%arg0: i32) -> (i32, i32) {
    %c0_i32 = arith.constant 0 : i32
    %c0_i32_0 = arith.constant 0 : i32
    %c0_i32_1 = arith.constant 0 : i32
    return %c0_i32, %c0_i32_0 : i32, i32
  }
  func.func @transform_2(%arg0: i32) -> (i32, i32) {
    %c0_i32 = arith.constant 0 : i32
    %c0_i32_0 = arith.constant 0 : i32
    %c0_i32_1 = arith.constant 0 : i32
    return %c0_i32, %c0_i32_0 : i32, i32
  }
  func.func @transform_3(%arg0: i32) -> (i32, i32) {
    %c0_i32 = arith.constant 0 : i32
    %c0_i32_0 = arith.constant 0 : i32
    %c0_i32_1 = arith.constant 0 : i32
    return %c0_i32, %c0_i32_0 : i32, i32
  }
  func.func @transform_4(%arg0: i32) -> (i32, i32) {
    %c0_i32 = arith.constant 0 : i32
    %c0_i32_0 = arith.constant 0 : i32
    %c0_i32_1 = arith.constant 0 : i32
    return %c0_i32, %c0_i32_0 : i32, i32
  }
  func.func @transform_5(%arg0: i32) -> (i32, i32) {
    %c0_i32 = arith.constant 0 : i32
    %c0_i32_0 = arith.constant 0 : i32
    %c0_i32_1 = arith.constant 0 : i32
    return %c0_i32, %c0_i32_0 : i32, i32
  }
  func.func @transform_6(%arg0: i32) -> (i32, i32) {
    %c0_i32 = arith.constant 0 : i32
    %c0_i32_0 = arith.constant 0 : i32
    %c0_i32_1 = arith.constant 0 : i32
    return %c0_i32, %c0_i32_0 : i32, i32
  }
  func.func @transform_7(%arg0: i32) -> (i32, i32) {
    %c0_i32 = arith.constant 0 : i32
    %c0_i32_0 = arith.constant 0 : i32
    %c0_i32_1 = arith.constant 0 : i32
    return %c0_i32, %c0_i32_0 : i32, i32
  }
  func.func @transform_8(%arg0: i32) -> (i32, i32) {
    %c0_i32 = arith.constant 0 : i32
    %c0_i32_0 = arith.constant 0 : i32
    %c0_i32_1 = arith.constant 0 : i32
    return %c0_i32, %c0_i32_0 : i32, i32
  }
  func.func @transform_9(%arg0: i32) -> (i32, i32) {
    %c0_i32 = arith.constant 0 : i32
    %c0_i32_0 = arith.constant 0 : i32
    return %arg0, %c0_i32 : i32, i32
  }
}

</mosaic_0001>

<llo_original>
// kernel: tpu_custom_call.1
$region0: #{tpu_custom_call.1}
  #allocation0 [shape = 'u32[]', space=smem, size = 0x4, offset = 0x4, fixed_abs, tag = 'smem constant byte address 0x4 - core index']
  #allocation1 [shape = 'u32[144,128]{1,0:T(1,128)}', space=vmem, size = 0x12000, scoped, tag = 'internal scratch']
  %s0 = inlined_call_operand.vmem [shape: bf16[256,64], index: 0, kind: input, shape index: {}]
  %s1 = inlined_call_operand.hbm [shape: bf16[64,1152], index: 1, kind: input, shape index: {}]
  %s2 = inlined_call_operand.vmem [shape: f32[1,1152], index: 2, kind: input, shape index: {}]
  %s3 = inlined_call_operand.hbm [shape: bf16[512,256], index: 3, kind: input, shape index: {}]
  %s4 = inlined_call_operand.vmem [shape: bf16[256,128], index: 4, kind: input, shape index: {}]
  %s5 = inlined_call_operand.vmem [shape: bf16[128,128], index: 5, kind: input, shape index: {}]
  %s6 = inlined_call_operand.hbm [shape: bf16[128,128], index: 6, kind: input, shape index: {}]
  %s7 = inlined_call_operand.hbm [shape: bf16[128,128], index: 7, kind: input, shape index: {}]
  %s8 = inlined_call_operand.vmem [shape: f32[1,128], index: 8, kind: input, shape index: {}]
  %s9 = inlined_call_operand.hbm [shape: f32[256,128], index: 9, kind: output, shape index: {}]
  %s10 = sld [smem:[#allocation0]]
  $region62: #{tpu_custom_call.1} parent=0
    _
  %s12 = ssub.s32 1, %s10
  %s13 = scalar_select 0, %s12, %s10
  $region1: #{tpu_custom_call.1} parent=0
    #allocation2 [shape = 'u8[147456]{0}', space=vmem, size = 0x24000, scoped, tag = 'input window, operand 1, single buffered']
    #allocation3 [shape = 's32[1]{0}', space=sflag, size = 0x4, scoped, tag = 'scoped memory for tpu_custom_call.1']
    #allocation4 [shape = 's32[1]{0}', space=sflag, size = 0x4, scoped, tag = 'scoped memory for tpu_custom_call.1']
    #allocation5 [shape = 'u8[262144]{0}', space=vmem, size = 0x40000, scoped, tag = 'input window, operand 3, single buffered']
    #allocation6 [shape = 's32[1]{0}', space=sflag, size = 0x4, scoped, tag = 'scoped memory for tpu_custom_call.1']
    #allocation7 [shape = 'u8[32768]{0}', space=vmem, size = 0x8000, scoped, tag = 'input window, operand 6, single buffered']
    #allocation8 [shape = 'u8[32768]{0}', space=vmem, size = 0x8000, scoped, tag = 'input window, operand 7, single buffered']
    #allocation9 [shape = 's32[1]{0}', space=sflag, size = 0x4, scoped, tag = 'scoped memory for tpu_custom_call.1']
    #allocation10 [shape = 'u8[131072]{0}', space=vmem, size = 0x20000, scoped, tag = 'output window, operand 0, single buffered']
    %14 = vsyncpa [#allocation3], 0
    %15 = vsyncpa [#allocation6], 0
    %16 = vsyncpa [#allocation9], 0
    %17 = vsyncpa [#allocation4], 0
    // Predicated region
    $region2: #{tpu_custom_call.1} parent=1 // pred_check
      _
    $region3: #{tpu_custom_call.1} parent=1 // pred_check_branch
      %19 = sbr.rel (0) target = $region5
    $region4: #{tpu_custom_call.1} parent=1 // pred_region
      _
    $region5: #{tpu_custom_call.1} parent=1 // pred_fallthru
      _
    // Predicated region
    $region6: #{tpu_custom_call.1} parent=1 // pred_check
      _
    $region7: #{tpu_custom_call.1} parent=1 // pred_check_branch
      %21 = sbr.rel (0) target = $region9
    $region8: #{tpu_custom_call.1} parent=1 // pred_region
      %s23 = ssub.s32 4608, 4608
      %24 = vsyncadd [#allocation3], %s23
      %s25 = sshll.u32 [#allocation2], 4
      %s26 = int_to_ptr.vmem [resolvable:$true] %s25
      %31 = dma.hbm_to_vmem [thread:$0]  %s1, 4608, %s26, [#allocation3], 576, 576, 36
    $region9: #{tpu_custom_call.1} parent=1 // pred_fallthru
      _
    // Predicated region
    $region10: #{tpu_custom_call.1} parent=1 // pred_check
      _
    $region11: #{tpu_custom_call.1} parent=1 // pred_check_branch
      %33 = sbr.rel (0) target = $region13
    $region12: #{tpu_custom_call.1} parent=1 // pred_region
      _
    $region13: #{tpu_custom_call.1} parent=1 // pred_fallthru
      _
    // Predicated region
    $region14: #{tpu_custom_call.1} parent=1 // pred_check
      _
    $region15: #{tpu_custom_call.1} parent=1 // pred_check_branch
      %35 = sbr.rel (0) target = $region17
    $region16: #{tpu_custom_call.1} parent=1 // pred_region
      %s37 = ssub.s32 8192, 8192
      %38 = vsyncadd [#allocation6], %s37
      %s39 = sshll.u32 [#allocation5], 4
      %s40 = int_to_ptr.vmem [resolvable:$true] %s39
      %45 = dma.hbm_to_vmem [thread:$0]  %s3, 8192, %s40, [#allocation6], 128, 128, 8
    $region17: #{tpu_custom_call.1} parent=1 // pred_fallthru
      _
    // Predicated region
    $region18: #{tpu_custom_call.1} parent=1 // pred_check
      _
    $region19: #{tpu_custom_call.1} parent=1 // pred_check_branch
      %47 = sbr.rel (0) target = $region21
    $region20: #{tpu_custom_call.1} parent=1 // pred_region
      _
    $region21: #{tpu_custom_call.1} parent=1 // pred_fallthru
      _
    // Predicated region
    $region22: #{tpu_custom_call.1} parent=1 // pred_check
      _
    $region23: #{tpu_custom_call.1} parent=1 // pred_check_branch
      %49 = sbr.rel (0) target = $region25
    $region24: #{tpu_custom_call.1} parent=1 // pred_region
      _
    $region25: #{tpu_custom_call.1} parent=1 // pred_fallthru
      _
    // Predicated region
    $region26: #{tpu_custom_call.1} parent=1 // pred_check
      _
    $region27: #{tpu_custom_call.1} parent=1 // pred_check_branch
      %51 = sbr.rel (0) target = $region29
    $region28: #{tpu_custom_call.1} parent=1 // pred_region
      %s53 = ssub.s32 1024, 1024
      %54 = vsyncadd [#allocation6], %s53
      %s55 = sshll.u32 [#allocation7], 4
      %s56 = int_to_ptr.vmem [resolvable:$true] %s55
      %61 = dma.hbm_to_vmem [thread:$0]  %s6, 1024, %s56, [#allocation6], 64, 64, 4
    $region29: #{tpu_custom_call.1} parent=1 // pred_fallthru
      _
    // Predicated region
    $region30: #{tpu_custom_call.1} parent=1 // pred_check
      _
    $region31: #{tpu_custom_call.1} parent=1 // pred_check_branch
      %63 = sbr.rel (0) target = $region33
    $region32: #{tpu_custom_call.1} parent=1 // pred_region
      %s65 = ssub.s32 1024, 1024
      %66 = vsyncadd [#allocation9], %s65
      %s67 = sshll.u32 [#allocation8], 4
      %s68 = int_to_ptr.vmem [resolvable:$true] %s67
      %73 = dma.hbm_to_vmem [thread:$0]  %s7, 1024, %s68, [#allocation9], 64, 64, 4
    $region33: #{tpu_custom_call.1} parent=1 // pred_fallthru
      _
    // Predicated region
    $region34: #{tpu_custom_call.1} parent=1 // pred_check
      _
    $region35: #{tpu_custom_call.1} parent=1 // pred_check_branch
      %75 = sbr.rel (0) target = $region37
    $region36: #{tpu_custom_call.1} parent=1 // pred_region
      _
    $region37: #{tpu_custom_call.1} parent=1 // pred_fallthru
      _
    // Predicated region
    $region38: #{tpu_custom_call.1} parent=1 // pred_check
      _
    $region39: #{tpu_custom_call.1} parent=1 // pred_check_branch
      %77 = sbr.rel (0) target = $region41
    $region40: #{tpu_custom_call.1} parent=1 // pred_region
      %78 = dma.done [#allocation3], 4608
    $region41: #{tpu_custom_call.1} parent=1 // pred_fallthru
      _
    // Predicated region
    $region42: #{tpu_custom_call.1} parent=1 // pred_check
      _
    $region43: #{tpu_custom_call.1} parent=1 // pred_check_branch
      %80 = sbr.rel (0) target = $region45
    $region44: #{tpu_custom_call.1} parent=1 // pred_region
      %81 = dma.done [#allocation6], 8192
    $region45: #{tpu_custom_call.1} parent=1 // pred_fallthru
      _
    // Predicated region
    $region46: #{tpu_custom_call.1} parent=1 // pred_check
      _
    $region47: #{tpu_custom_call.1} parent=1 // pred_check_branch
      %83 = sbr.rel (0) target = $region49
    $region48: #{tpu_custom_call.1} parent=1 // pred_region
      %84 = dma.done [#allocation6], 1024
    $region49: #{tpu_custom_call.1} parent=1 // pred_fallthru
      _
    // Predicated region
    $region50: #{tpu_custom_call.1} parent=1 // pred_check
      _
    $region51: #{tpu_custom_call.1} parent=1 // pred_check_branch
      %86 = sbr.rel (0) target = $region53
    $region52: #{tpu_custom_call.1} parent=1 // pred_region
      %87 = dma.done [#allocation9], 1024
    $region53: #{tpu_custom_call.1} parent=1 // pred_fallthru
      _
    %v89 = vld [vmem:[%s0] sm:$0xf]
    %v90 = vld [vmem:[%s0 + $0x4] sm:$0xf]
    %v91 = vld [vmem:[%s0 + $0x8] sm:$0xf]
    %v92 = vld [vmem:[%s0 + $0xc] sm:$0xf]
    %v93 = vld [vmem:[%s0 + $0x10] sm:$0xf]
    %v94 = vld [vmem:[%s0 + $0x14] sm:$0xf]
    %v95 = vld [vmem:[%s0 + $0x18] sm:$0xf]
    %v96 = vld [vmem:[%s0 + $0x1c] sm:$0xf]
    %v97 = vld [vmem:[%s0 + $0x20] sm:$0xf]
    %v98 = vld [vmem:[%s0 + $0x24] sm:$0xf]
    %v99 = vld [vmem:[%s0 + $0x28] sm:$0xf]
    %v100 = vld [vmem:[%s0 + $0x2c] sm:$0xf]
    %v101 = vld [vmem:[%s0 + $0x30] sm:$0xf]
    %v102 = vld [vmem:[%s0 + $0x34] sm:$0xf]
    %v103 = vld [vmem:[%s0 + $0x38] sm:$0xf]
    %v104 = vld [vmem:[%s0 + $0x3c] sm:$0xf]
    %v105 = vld [vmem:[%s0 + $0x40] sm:$0xf]
    %v106 = vld [vmem:[%s0 + $0x44] sm:$0xf]
    %v107 = vld [vmem:[%s0 + $0x48] sm:$0xf]
    %v108 = vld [vmem:[%s0 + $0x4c] sm:$0xf]
    %v109 = vld [vmem:[%s0 + $0x50] sm:$0xf]
    %v110 = vld [vmem:[%s0 + $0x54] sm:$0xf]
    %v111 = vld [vmem:[%s0 + $0x58] sm:$0xf]
    %v112 = vld [vmem:[%s0 + $0x5c] sm:$0xf]
    %v113 = vld [vmem:[%s0 + $0x60] sm:$0xf]
    %v114 = vld [vmem:[%s0 + $0x64] sm:$0xf]
    %v115 = vld [vmem:[%s0 + $0x68] sm:$0xf]
    %v116 = vld [vmem:[%s0 + $0x6c] sm:$0xf]
    %v117 = vld [vmem:[%s0 + $0x70] sm:$0xf]
    %v118 = vld [vmem:[%s0 + $0x74] sm:$0xf]
    %v119 = vld [vmem:[%s0 + $0x78] sm:$0xf]
    %v120 = vld [vmem:[%s0 + $0x7c] sm:$0xf]
    %v121 = vld [vmem:[#allocation2] sm:$0xff]
    %v122 = vld [vmem:[#allocation2 + $0x8] sm:$0xff]
    %v123 = vld [vmem:[#allocation2 + $0x10] sm:$0xff]
    %v124 = vld [vmem:[#allocation2 + $0x18] sm:$0xff]
    %v125 = vld [vmem:[#allocation2 + $0x20] sm:$0xf]
    %v126 = vld [vmem:[#allocation2 + $0x24] sm:$0xff]
    %v127 = vld [vmem:[#allocation2 + $0x2c] sm:$0xff]
    %v128 = vld [vmem:[#allocation2 + $0x34] sm:$0xff]
    %v129 = vld [vmem:[#allocation2 + $0x3c] sm:$0xff]
    %v130 = vld [vmem:[#allocation2 + $0x44] sm:$0xf]
    %v131 = vld [vmem:[#allocation2 + $0x48] sm:$0xff]
    %v132 = vld [vmem:[#allocation2 + $0x50] sm:$0xff]
    %v133 = vld [vmem:[#allocation2 + $0x58] sm:$0xff]
    %v134 = vld [vmem:[#allocation2 + $0x60] sm:$0xff]
    %v135 = vld [vmem:[#allocation2 + $0x68] sm:$0xf]
    %v136 = vld [vmem:[#allocation2 + $0x6c] sm:$0xff]
    %v137 = vld [vmem:[#allocation2 + $0x74] sm:$0xff]
    %v138 = vld [vmem:[#allocation2 + $0x7c] sm:$0xff]
    %v139 = vld [vmem:[#allocation2 + $0x84] sm:$0xff]
    %v140 = vld [vmem:[#allocation2 + $0x8c] sm:$0xf]
    %v141 = vld [vmem:[#allocation2 + $0x90] sm:$0xff]
    %v142 = vld [vmem:[#allocation2 + $0x98] sm:$0xff]
    %v143 = vld [vmem:[#allocation2 + $0xa0] sm:$0xff]
    %v144 = vld [vmem:[#allocation2 + $0xa8] sm:$0xff]
    %v145 = vld [vmem:[#allocation2 + $0xb0] sm:$0xf]
    %v146 = vld [vmem:[#allocation2 + $0xb4] sm:$0xff]
    %v147 = vld [vmem:[#allocation2 + $0xbc] sm:$0xff]
    %v148 = vld [vmem:[#allocation2 + $0xc4] sm:$0xff]
    %v149 = vld [vmem:[#allocation2 + $0xcc] sm:$0xff]
    %v150 = vld [vmem:[#allocation2 + $0xd4] sm:$0xf]
    %v151 = vld [vmem:[#allocation2 + $0xd8] sm:$0xff]
    %v152 = vld [vmem:[#allocation2 + $0xe0] sm:$0xff]
    %v153 = vld [vmem:[#allocation2 + $0xe8] sm:$0xff]
    %v154 = vld [vmem:[#allocation2 + $0xf0] sm:$0xff]
    %v155 = vld [vmem:[#allocation2 + $0xf8] sm:$0xf]
    %v156 = vld [vmem:[#allocation2 + $0xfc] sm:$0xff]
    %v157 = vld [vmem:[#allocation2 + $0x104] sm:$0xff]
    %v158 = vld [vmem:[#allocation2 + $0x10c] sm:$0xff]
    %v159 = vld [vmem:[#allocation2 + $0x114] sm:$0xff]
    %v160 = vld [vmem:[#allocation2 + $0x11c] sm:$0xf]
    %v161 = vld [vmem:[%s2] sm:$0xff]
    %v162 = vld [vmem:[%s2 + $0x8] sm:$0x1]
    %v165 = vlaneseq
    %v166 = vshrl.u32 %v165, 7
    %v167 = vsub.s32 0, %v166
    %v168 = vrot.slane %v161, %v167
    %v169 = vlaneseq
    %v170 = vshrl.u32 %v169, 7
    %v171 = vsub.s32 1, %v170
    %v172 = vrot.slane %v161, %v171
    %v173 = vlaneseq
    %v174 = vshrl.u32 %v173, 7
    %v175 = vsub.s32 2, %v174
    %v176 = vrot.slane %v161, %v175
    %v177 = vlaneseq
    %v178 = vshrl.u32 %v177, 7
    %v179 = vsub.s32 3, %v178
    %v180 = vrot.slane %v161, %v179
    %v181 = vlaneseq
    %v182 = vshrl.u32 %v181, 7
    %v183 = vsub.s32 4, %v182
    %v184 = vrot.slane %v161, %v183
    %v185 = vlaneseq
    %v186 = vshrl.u32 %v185, 7
    %v187 = vsub.s32 5, %v186
    %v188 = vrot.slane %v161, %v187
    %v189 = vlaneseq
    %v190 = vshrl.u32 %v189, 7
    %v191 = vsub.s32 6, %v190
    %v192 = vrot.slane %v161, %v191
    %v193 = vlaneseq
    %v194 = vshrl.u32 %v193, 7
    %v195 = vsub.s32 7, %v194
    %v196 = vrot.slane %v161, %v195
    %v197 = vlaneseq
    %v198 = vshrl.u32 %v197, 7
    %v199 = vsub.s32 0, %v198
    %v200 = vrot.slane %v162, %v199
    %v242 = vunpack.c.l.b16 %v89
    %v243 = vunpack.c.l.b16 %v90
    %v244 = vunpack.c.l.b16 %v91
    %v245 = vunpack.c.l.b16 %v92
    %v246 = vunpack.c.l.b16 %v93
    %v247 = vunpack.c.l.b16 %v94
    %v248 = vunpack.c.l.b16 %v95
    %v249 = vunpack.c.l.b16 %v96
    %v250 = vunpack.c.l.b16 %v97
    %v251 = vunpack.c.l.b16 %v98
    %v252 = vunpack.c.l.b16 %v99
    %v253 = vunpack.c.l.b16 %v100
    %v254 = vunpack.c.l.b16 %v101
    %v255 = vunpack.c.l.b16 %v102
    %v256 = vunpack.c.l.b16 %v103
    %v257 = vunpack.c.l.b16 %v104
    %v258 = vunpack.c.l.b16 %v105
    %v259 = vunpack.c.l.b16 %v106
    %v260 = vunpack.c.l.b16 %v107
    %v261 = vunpack.c.l.b16 %v108
    %v262 = vunpack.c.l.b16 %v109
    %v263 = vunpack.c.l.b16 %v110
    %v264 = vunpack.c.l.b16 %v111
    %v265 = vunpack.c.l.b16 %v112
    %v266 = vunpack.c.l.b16 %v113
    %v267 = vunpack.c.l.b16 %v114
    %v268 = vunpack.c.l.b16 %v115
    %v269 = vunpack.c.l.b16 %v116
    %v270 = vunpack.c.l.b16 %v117
    %v271 = vunpack.c.l.b16 %v118
    %v272 = vunpack.c.l.b16 %v119
    %v273 = vunpack.c.l.b16 %v120
    %v274 = vpack.c.b16 %v243, %v242
    %v275 = vpack.c.b16 %v245, %v244
    %v276 = vpack.c.b16 %v247, %v246
    %v277 = vpack.c.b16 %v249, %v248
    %v278 = vpack.c.b16 %v251, %v250
    %v279 = vpack.c.b16 %v253, %v252
    %v280 = vpack.c.b16 %v255, %v254
    %v281 = vpack.c.b16 %v257, %v256
    %v282 = vpack.c.b16 %v259, %v258
    %v283 = vpack.c.b16 %v261, %v260
    %v284 = vpack.c.b16 %v263, %v262
    %v285 = vpack.c.b16 %v265, %v264
    %v286 = vpack.c.b16 %v267, %v266
    %v287 = vpack.c.b16 %v269, %v268
    %v288 = vpack.c.b16 %v271, %v270
    %v289 = vpack.c.b16 %v273, %v272
    %v330 = vunpack.c.l.b16 %v121
    %v331 = vunpack.c.h.b16 %v121
    %v332 = vunpack.c.l.b16 %v122
    %v333 = vunpack.c.h.b16 %v122
    %v334 = vunpack.c.l.b16 %v123
    %v335 = vunpack.c.h.b16 %v123
    %v336 = vunpack.c.l.b16 %v124
    %v337 = vunpack.c.h.b16 %v124
    %v338 = vunpack.c.l.b16 %v125
    %v339 = vunpack.c.l.b16 %v126
    %v340 = vunpack.c.h.b16 %v126
    %v341 = vunpack.c.l.b16 %v127
    %v342 = vunpack.c.h.b16 %v127
    %v343 = vunpack.c.l.b16 %v128
    %v344 = vunpack.c.h.b16 %v128
    %v345 = vunpack.c.l.b16 %v129
    %v346 = vunpack.c.h.b16 %v129
    %v347 = vunpack.c.l.b16 %v130
    %v348 = vunpack.c.l.b16 %v131
    %v349 = vunpack.c.h.b16 %v131
    %v350 = vunpack.c.l.b16 %v132
    %v351 = vunpack.c.h.b16 %v132
    %v352 = vunpack.c.l.b16 %v133
    %v353 = vunpack.c.h.b16 %v133
    %v354 = vunpack.c.l.b16 %v134
    %v355 = vunpack.c.h.b16 %v134
    %v356 = vunpack.c.l.b16 %v135
    %v357 = vunpack.c.l.b16 %v136
    %v358 = vunpack.c.h.b16 %v136
    %v359 = vunpack.c.l.b16 %v137
    %v360 = vunpack.c.h.b16 %v137
    %v361 = vunpack.c.l.b16 %v138
    %v362 = vunpack.c.h.b16 %v138
    %v363 = vunpack.c.l.b16 %v139
    %v364 = vunpack.c.h.b16 %v139
    %v365 = vunpack.c.l.b16 %v140
    %v366 = vunpack.c.l.b16 %v141
    %v367 = vunpack.c.h.b16 %v141
    %v368 = vunpack.c.l.b16 %v142
    %v369 = vunpack.c.h.b16 %v142
    %v370 = vunpack.c.l.b16 %v143
    %v371 = vunpack.c.h.b16 %v143
    %v372 = vunpack.c.l.b16 %v144
    %v373 = vunpack.c.h.b16 %v144
    %v374 = vunpack.c.l.b16 %v145
    %v375 = vunpack.c.l.b16 %v146
    %v376 = vunpack.c.h.b16 %v146
    %v377 = vunpack.c.l.b16 %v147
    %v378 = vunpack.c.h.b16 %v147
    %v379 = vunpack.c.l.b16 %v148
    %v380 = vunpack.c.h.b16 %v148
    %v381 = vunpack.c.l.b16 %v149
    %v382 = vunpack.c.h.b16 %v149
    %v383 = vunpack.c.l.b16 %v150
    %v384 = vunpack.c.l.b16 %v151
    %v385 = vunpack.c.h.b16 %v151
    %v386 = vunpack.c.l.b16 %v152
    %v387 = vunpack.c.h.b16 %v152
    %v388 = vunpack.c.l.b16 %v153
    %v389 = vunpack.c.h.b16 %v153
    %v390 = vunpack.c.l.b16 %v154
    %v391 = vunpack.c.h.b16 %v154
    %v392 = vunpack.c.l.b16 %v155
    %v393 = vunpack.c.l.b16 %v156
    %v394 = vunpack.c.h.b16 %v156
    %v395 = vunpack.c.l.b16 %v157
    %v396 = vunpack.c.h.b16 %v157
    %v397 = vunpack.c.l.b16 %v158
    %v398 = vunpack.c.h.b16 %v158
    %v399 = vunpack.c.l.b16 %v159
    %v400 = vunpack.c.h.b16 %v159
    %v401 = vunpack.c.l.b16 %v160
    %v402 = vpack.c.b16 %v339, %v330
    %v403 = vpack.c.b16 %v340, %v331
    %v404 = vpack.c.b16 %v341, %v332
    %v405 = vpack.c.b16 %v342, %v333
    %v406 = vpack.c.b16 %v343, %v334
    %v407 = vpack.c.b16 %v344, %v335
    %v408 = vpack.c.b16 %v345, %v336
    %v409 = vpack.c.b16 %v346, %v337
    %v410 = vpack.c.b16 %v347, %v338
    %v411 = vpack.c.b16 %v357, %v348
    %v412 = vpack.c.b16 %v358, %v349
    %v413 = vpack.c.b16 %v359, %v350
    %v414 = vpack.c.b16 %v360, %v351
    %v415 = vpack.c.b16 %v361, %v352
    %v416 = vpack.c.b16 %v362, %v353
    %v417 = vpack.c.b16 %v363, %v354
    %v418 = vpack.c.b16 %v364, %v355
    %v419 = vpack.c.b16 %v365, %v356
    %v420 = vpack.c.b16 %v375, %v366
    %v421 = vpack.c.b16 %v376, %v367
    %v422 = vpack.c.b16 %v377, %v368
    %v423 = vpack.c.b16 %v378, %v369
    %v424 = vpack.c.b16 %v379, %v370
    %v425 = vpack.c.b16 %v380, %v371
    %v426 = vpack.c.b16 %v381, %v372
    %v427 = vpack.c.b16 %v382, %v373
    %v428 = vpack.c.b16 %v383, %v374
    %v429 = vpack.c.b16 %v393, %v384
    %v430 = vpack.c.b16 %v394, %v385
    %v431 = vpack.c.b16 %v395, %v386
    %v432 = vpack.c.b16 %v396, %v387
    %v433 = vpack.c.b16 %v397, %v388
    %v434 = vpack.c.b16 %v398, %v389
    %v435 = vpack.c.b16 %v399, %v390
    %v436 = vpack.c.b16 %v400, %v391
    %v437 = vpack.c.b16 %v401, %v392
    %vm474 = vcmask 523264
    %v476 = vsel %vm474, %v274, 0
    %v479 = vsel %vm474, %v275, 0
    %v482 = vsel %vm474, %v276, 0
    %v485 = vsel %vm474, %v277, 0
    %v488 = vsel %vm474, %v278, 0
    %v491 = vsel %vm474, %v279, 0
    %v494 = vsel %vm474, %v280, 0
    %v497 = vsel %vm474, %v281, 0
    %v500 = vsel %vm474, %v282, 0
    %v503 = vsel %vm474, %v283, 0
    %v506 = vsel %vm474, %v284, 0
    %v509 = vsel %vm474, %v285, 0
    %v512 = vsel %vm474, %v286, 0
    %v515 = vsel %vm474, %v287, 0
    %v518 = vsel %vm474, %v288, 0
    %v521 = vsel %vm474, %v289, 0
    %523 = vmatprep.subr.bf16.mxu0 %v403
    %524 = vmatpush1.bf16.msra.mxu0 %v402
    %525 = vmatprep.subr.bf16.mxu0 %v412
    %526 = vmatpush1.bf16.msra.mxu0 %v411
    %527 = vmatprep.subr.bf16.mxu0 %v421
    %528 = vmatpush1.bf16.msra.mxu0 %v420
    %529 = vmatprep.subr.bf16.mxu0 %v430
    %530 = vmatpush1.bf16.msra.mxu0 %v429
    %531 = vmatprep.subr.bf16.mxu0 0
    %532 = vmatpush1.bf16.msra.mxu0 0
    %533 = vmatprep.subr.bf16.mxu0 0
    %534 = vmatpush1.bf16.msra.mxu0 0
    %535 = vmatprep.subr.bf16.mxu0 0
    %536 = vmatpush1.bf16.msra.mxu0 0
    %537 = vmatprep.subr.bf16.mxu0 0
    %538 = vmatpush1.bf16.msra.mxu0 0
    %539 = vmatprep.subr.bf16.mxu0 0
    %540 = vmatpush1.bf16.msra.mxu0 0
    %541 = vmatprep.subr.bf16.mxu0 0
    %542 = vmatpush1.bf16.msra.mxu0 0
    %543 = vmatprep.subr.bf16.mxu0 0
    %544 = vmatpush1.bf16.msra.mxu0 0
    %545 = vmatprep.subr.bf16.mxu0 0
    %546 = vmatpush1.bf16.msra.mxu0 0
    %547 = vmatprep.subr.bf16.mxu0 0
    %548 = vmatpush1.bf16.msra.mxu0 0
    %549 = vmatprep.subr.bf16.mxu0 0
    %550 = vmatpush1.bf16.msra.mxu0 0
    %551 = vmatprep.subr.bf16.mxu0 0
    %552 = vmatpush1.bf16.msra.mxu0 0
    %553 = vmatprep.subr.bf16.mxu0 0
    %554 = vmatpush1.bf16.msra.mxu0 0
    %555 = vmatprep.mubr.bf16.mxu0 0
    %556 = vmatmul.mubr.bf16.gmra.mrb[0].mxu0 %v476
    %v557 = vpop.f32.mrb[0].mxu0
    %v558 = vadd.f32 %v168, %v557
    %v559 = vpop.f32.mrb[0].mxu0
    %v560 = vadd.f32 %v172, %v559
    %v561 = vpop.f32.mrb[0].mxu0
    %v562 = vadd.f32 %v168, %v561
    %v563 = vpop.f32.mrb[0].mxu0
    %v564 = vadd.f32 %v172, %v563
    %565 = vmatprep.mubr.bf16.mxu0 0
    %566 = vmatmul.mubr.bf16.gmra.mrb[0].mxu0 %v479
    %v567 = vpop.f32.mrb[0].mxu0
    %v568 = vadd.f32 %v168, %v567
    %v569 = vpop.f32.mrb[0].mxu0
    %v570 = vadd.f32 %v172, %v569
    %v571 = vpop.f32.mrb[0].mxu0
    %v572 = vadd.f32 %v168, %v571
    %v573 = vpop.f32.mrb[0].mxu0
    %v574 = vadd.f32 %v172, %v573
    %575 = vmatprep.mubr.bf16.mxu0 0
    %576 = vmatmul.mubr.bf16.gmra.mrb[0].mxu0 %v482
    %v577 = vpop.f32.mrb[0].mxu0
    %v578 = vadd.f32 %v168, %v577
    %v579 = vpop.f32.mrb[0].mxu0
    %v580 = vadd.f32 %v172, %v579
    %v581 = vpop.f32.mrb[0].mxu0
    %v582 = vadd.f32 %v168, %v581
    %v583 = vpop.f32.mrb[0].mxu0
    %v584 = vadd.f32 %v172, %v583
    %585 = vmatprep.mubr.bf16.mxu0 0
    %586 = vmatmul.mubr.bf16.gmra.mrb[0].mxu0 %v485
    %v587 = vpop.f32.mrb[0].mxu0
    %v588 = vadd.f32 %v168, %v587
    %v589 = vpop.f32.mrb[0].mxu0
    %v590 = vadd.f32 %v172, %v589
    %v591 = vpop.f32.mrb[0].mxu0
    %v592 = vadd.f32 %v168, %v591
    %v593 = vpop.f32.mrb[0].mxu0
    %v594 = vadd.f32 %v172, %v593
    %595 = vmatprep.mubr.bf16.mxu0 0
    %596 = vmatmul.mubr.bf16.gmra.mrb[0].mxu0 %v488
    %v597 = vpop.f32.mrb[0].mxu0
    %v598 = vadd.f32 %v168, %v597
    %v599 = vpop.f32.mrb[0].mxu0
    %v600 = vadd.f32 %v172, %v599
    %v601 = vpop.f32.mrb[0].mxu0
    %v602 = vadd.f32 %v168, %v601
    %v603 = vpop.f32.mrb[0].mxu0
    %v604 = vadd.f32 %v172, %v603
    %605 = vmatprep.mubr.bf16.mxu0 0
    %606 = vmatmul.mubr.bf16.gmra.mrb[0].mxu0 %v491
    %v607 = vpop.f32.mrb[0].mxu0
    %v608 = vadd.f32 %v168, %v607
    %v609 = vpop.f32.mrb[0].mxu0
    %v610 = vadd.f32 %v172, %v609
    %v611 = vpop.f32.mrb[0].mxu0
    %v612 = vadd.f32 %v168, %v611
    %v613 = vpop.f32.mrb[0].mxu0
    %v614 = vadd.f32 %v172, %v613
    %615 = vmatprep.mubr.bf16.mxu0 0
    %616 = vmatmul.mubr.bf16.gmra.mrb[0].mxu0 %v494
    %v617 = vpop.f32.mrb[0].mxu0
    %v618 = vadd.f32 %v168, %v617
    %v619 = vpop.f32.mrb[0].mxu0
    %v620 = vadd.f32 %v172, %v619
    %v621 = vpop.f32.mrb[0].mxu0
    %v622 = vadd.f32 %v168, %v621
    %v623 = vpop.f32.mrb[0].mxu0
    %v624 = vadd.f32 %v172, %v623
    %625 = vmatprep.mubr.bf16.mxu0 0
    %626 = vmatmul.mubr.bf16.gmra.mrb[0].mxu0 %v497
    %v627 = vpop.f32.mrb[0].mxu0
    %v628 = vadd.f32 %v168, %v627
    %v629 = vpop.f32.mrb[0].mxu0
    %v630 = vadd.f32 %v172, %v629
    %v631 = vpop.f32.mrb[0].mxu0
    %v632 = vadd.f32 %v168, %v631
    %v633 = vpop.f32.mrb[0].mxu0
    %v634 = vadd.f32 %v172, %v633
    %635 = vmatprep.mubr.bf16.mxu0 0
    %636 = vmatmul.mubr.bf16.gmra.mrb[0].mxu0 %v500
    %v637 = vpop.f32.mrb[0].mxu0
    %v638 = vadd.f32 %v168, %v637
    %v639 = vpop.f32.mrb[0].mxu0
    %v640 = vadd.f32 %v172, %v639
    %v641 = vpop.f32.mrb[0].mxu0
    %v642 = vadd.f32 %v168, %v641
    %v643 = vpop.f32.mrb[0].mxu0
    %v644 = vadd.f32 %v172, %v643
    %645 = vmatprep.mubr.bf16.mxu0 0
    %646 = vmatmul.mubr.bf16.gmra.mrb[0].mxu0 %v503
    %v647 = vpop.f32.mrb[0].mxu0
    %v648 = vadd.f32 %v168, %v647
    %v649 = vpop.f32.mrb[0].mxu0
    %v650 = vadd.f32 %v172, %v649
    %v651 = vpop.f32.mrb[0].mxu0
    %v652 = vadd.f32 %v168, %v651
    %v653 = vpop.f32.mrb[0].mxu0
    %v654 = vadd.f32 %v172, %v653
    %655 = vmatprep.mubr.bf16.mxu0 0
    %656 = vmatmul.mubr.bf16.gmra.mrb[0].mxu0 %v506
    %v657 = vpop.f32.mrb[0].mxu0
    %v658 = vadd.f32 %v168, %v657
    %v659 = vpop.f32.mrb[0].mxu0
    %v660 = vadd.f32 %v172, %v659
    %v661 = vpop.f32.mrb[0].mxu0
    %v662 = vadd.f32 %v168, %v661
    %v663 = vpop.f32.mrb[0].mxu0
    %v664 = vadd.f32 %v172, %v663
    %665 = vmatprep.mubr.bf16.mxu0 0
    %666 = vmatmul.mubr.bf16.gmra.mrb[0].mxu0 %v509
    %v667 = vpop.f32.mrb[0].mxu0
    %v668 = vadd.f32 %v168, %v667
    %v669 = vpop.f32.mrb[0].mxu0
    %v670 = vadd.f32 %v172, %v669
    %v671 = vpop.f32.mrb[0].mxu0
    %v672 = vadd.f32 %v168, %v671
    %v673 = vpop.f32.mrb[0].mxu0
    %v674 = vadd.f32 %v172, %v673
    %675 = vmatprep.mubr.bf16.mxu0 0
    %676 = vmatmul.mubr.bf16.gmra.mrb[0].mxu0 %v512
    %v677 = vpop.f32.mrb[0].mxu0
    %v678 = vadd.f32 %v168, %v677
    %v679 = vpop.f32.mrb[0].mxu0
    %v680 = vadd.f32 %v172, %v679
    %v681 = vpop.f32.mrb[0].mxu0
    %v682 = vadd.f32 %v168, %v681
    %v683 = vpop.f32.mrb[0].mxu0
    %v684 = vadd.f32 %v172, %v683
    %685 = vmatprep.mubr.bf16.mxu0 0
    %686 = vmatmul.mubr.bf16.gmra.mrb[0].mxu0 %v515
    %v687 = vpop.f32.mrb[0].mxu0
    %v688 = vadd.f32 %v168, %v687
    %v689 = vpop.f32.mrb[0].mxu0
    %v690 = vadd.f32 %v172, %v689
    %v691 = vpop.f32.mrb[0].mxu0
    %v692 = vadd.f32 %v168, %v691
    %v693 = vpop.f32.mrb[0].mxu0
    %v694 = vadd.f32 %v172, %v693
    %695 = vmatprep.mubr.bf16.mxu0 0
    %696 = vmatmul.mubr.bf16.gmra.mrb[0].mxu0 %v518
    %v697 = vpop.f32.mrb[0].mxu0
    %v698 = vadd.f32 %v168, %v697
    %v699 = vpop.f32.mrb[0].mxu0
    %v700 = vadd.f32 %v172, %v699
    %v701 = vpop.f32.mrb[0].mxu0
    %v702 = vadd.f32 %v168, %v701
    %v703 = vpop.f32.mrb[0].mxu0
    %v704 = vadd.f32 %v172, %v703
    %705 = vmatprep.mubr.bf16.mxu0 0
    %706 = vmatmul.mubr.bf16.gmra.mrb[0].mxu0 %v521
    %v707 = vpop.f32.mrb[0].mxu0
    %v708 = vadd.f32 %v168, %v707
    %v709 = vpop.f32.mrb[0].mxu0
    %v710 = vadd.f32 %v172, %v709
    %v711 = vpop.f32.mrb[0].mxu0
    %v712 = vadd.f32 %v168, %v711
    %v713 = vpop.f32.mrb[0].mxu0
    %v714 = vadd.f32 %v172, %v713
    %715 = vdwg.mxu0
    %716 = vmatprep.subr.bf16.mxu0 %v405
    %717 = vmatpush1.bf16.msra.mxu0 %v404
    %718 = vmatprep.subr.bf16.mxu0 %v414
    %719 = vmatpush1.bf16.msra.mxu0 %v413
    %720 = vmatprep.subr.bf16.mxu0 %v423
    %721 = vmatpush1.bf16.msra.mxu0 %v422
    %722 = vmatprep.subr.bf16.mxu0 %v432
    %723 = vmatpush1.bf16.msra.mxu0 %v431
    %724 = vmatprep.subr.bf16.mxu0 0
    %725 = vmatpush1.bf16.msra.mxu0 0
    %726 = vmatprep.subr.bf16.mxu0 0
    %727 = vmatpush1.bf16.msra.mxu0 0
    %728 = vmatprep.subr.bf16.mxu0 0
    %729 = vmatpush1.bf16.msra.mxu0 0
    %730 = vmatprep.subr.bf16.mxu0 0
    %731 = vmatpush1.bf16.msra.mxu0 0
    %732 = vmatprep.subr.bf16.mxu0 0
    %733 = vmatpush1.bf16.msra.mxu0 0
    %734 = vmatprep.subr.bf16.mxu0 0
    %735 = vmatpush1.bf16.msra.mxu0 0
    %736 = vmatprep.subr.bf16.mxu0 0
    %737 = vmatpush1.bf16.msra.mxu0 0
    %738 = vmatprep.subr.bf16.mxu0 0
    %739 = vmatpush1.bf16.msra.mxu0 0
    %740 = vmatprep.subr.bf16.mxu0 0
    %741 = vmatpush1.bf16.msra.mxu0 0
    %742 = vmatprep.subr.bf16.mxu0 0
    %743 = vmatpush1.bf16.msra.mxu0 0
    %744 = vmatprep.subr.bf16.mxu0 0
    %745 = vmatpush1.bf16.msra.mxu0 0
    %746 = vmatprep.subr.bf16.mxu0 0
    %747 = vmatpush1.bf16.msra.mxu0 0
    %748 = vmatprep.mubr.bf16.mxu0 0
    %749 = vmatmul.mubr.bf16.gmra.mrb[0].mxu0 %v476
    %v750 = vpop.f32.mrb[0].mxu0
    %v751 = vadd.f32 %v176, %v750
    %v752 = vpop.f32.mrb[0].mxu0
    %v753 = vadd.f32 %v180, %v752
    %v754 = vpop.f32.mrb[0].mxu0
    %v755 = vadd.f32 %v176, %v754
    %v756 = vpop.f32.mrb[0].mxu0
    %v757 = vadd.f32 %v180, %v756
    %758 = vmatprep.mubr.bf16.mxu0 0
    %759 = vmatmul.mubr.bf16.gmra.mrb[0].mxu0 %v479
    %v760 = vpop.f32.mrb[0].mxu0
    %v761 = vadd.f32 %v176, %v760
    %v762 = vpop.f32.mrb[0].mxu0
    %v763 = vadd.f32 %v180, %v762
    %v764 = vpop.f32.mrb[0].mxu0
    %v765 = vadd.f32 %v176, %v764
    %v766 = vpop.f32.mrb[0].mxu0
    %v767 = vadd.f32 %v180, %v766
    %768 = vmatprep.mubr.bf16.mxu0 0
    %769 = vmatmul.mubr.bf16.gmra.mrb[0].mxu0 %v482
    %v770 = vpop.f32.mrb[0].mxu0
    %v771 = vadd.f32 %v176, %v770
    %v772 = vpop.f32.mrb[0].mxu0
    %v773 = vadd.f32 %v180, %v772
    %v774 = vpop.f32.mrb[0].mxu0
    %v775 = vadd.f32 %v176, %v774
    %v776 = vpop.f32.mrb[0].mxu0
    %v777 = vadd.f32 %v180, %v776
    %778 = vmatprep.mubr.bf16.mxu0 0
    %779 = vmatmul.mubr.bf16.gmra.mrb[0].mxu0 %v485
    %v780 = vpop.f32.mrb[0].mxu0
    %v781 = vadd.f32 %v176, %v780
    %v782 = vpop.f32.mrb[0].mxu0
    %v783 = vadd.f32 %v180, %v782
    %v784 = vpop.f32.mrb[0].mxu0
    %v785 = vadd.f32 %v176, %v784
    %v786 = vpop.f32.mrb[0].mxu0
    %v787 = vadd.f32 %v180, %v786
    %788 = vmatprep.mubr.bf16.mxu0 0
    %789 = vmatmul.mubr.bf16.gmra.mrb[0].mxu0 %v488
    %v790 = vpop.f32.mrb[0].mxu0
    %v791 = vadd.f32 %v176, %v790
    %v792 = vpop.f32.mrb[0].mxu0
    %v793 = vadd.f32 %v180, %v792
    %v794 = vpop.f32.mrb[0].mxu0
    %v795 = vadd.f32 %v176, %v794
    %v796 = vpop.f32.mrb[0].mxu0
    %v797 = vadd.f32 %v180, %v796
    %798 = vmatprep.mubr.bf16.mxu0 0
    %799 = vmatmul.mubr.bf16.gmra.mrb[0].mxu0 %v491
    %v800 = vpop.f32.mrb[0].mxu0
    %v801 = vadd.f32 %v176, %v800
    %v802 = vpop.f32.mrb[0].mxu0
    %v803 = vadd.f32 %v180, %v802
    %v804 = vpop.f32.mrb[0].mxu0
    %v805 = vadd.f32 %v176, %v804
    %v806 = vpop.f32.mrb[0].mxu0
    %v807 = vadd.f32 %v180, %v806
    %808 = vmatprep.mubr.bf16.mxu0 0
    %809 = vmatmul.mubr.bf16.gmra.mrb[0].mxu0 %v494
    %v810 = vpop.f32.mrb[0].mxu0
    %v811 = vadd.f32 %v176, %v810
    %v812 = vpop.f32.mrb[0].mxu0
    %v813 = vadd.f32 %v180, %v812
    %v814 = vpop.f32.mrb[0].mxu0
    %v815 = vadd.f32 %v176, %v814
    %v816 = vpop.f32.mrb[0].mxu0
    %v817 = vadd.f32 %v180, %v816
    %818 = vmatprep.mubr.bf16.mxu0 0
    %819 = vmatmul.mubr.bf16.gmra.mrb[0].mxu0 %v497
    %v820 = vpop.f32.mrb[0].mxu0
    %v821 = vadd.f32 %v176, %v820
    %v822 = vpop.f32.mrb[0].mxu0
    %v823 = vadd.f32 %v180, %v822
    %v824 = vpop.f32.mrb[0].mxu0
    %v825 = vadd.f32 %v176, %v824
    %v826 = vpop.f32.mrb[0].mxu0
    %v827 = vadd.f32 %v180, %v826
    %828 = vmatprep.mubr.bf16.mxu0 0
    %829 = vmatmul.mubr.bf16.gmra.mrb[0].mxu0 %v500
    %v830 = vpop.f32.mrb[0].mxu0
    %v831 = vadd.f32 %v176, %v830
    %v832 = vpop.f32.mrb[0].mxu0
    %v833 = vadd.f32 %v180, %v832
    %v834 = vpop.f32.mrb[0].mxu0
    %v835 = vadd.f32 %v176, %v834
    %v836 = vpop.f32.mrb[0].mxu0
    %v837 = vadd.f32 %v180, %v836
    %838 = vmatprep.mubr.bf16.mxu0 0
    %839 = vmatmul.mubr.bf16.gmra.mrb[0].mxu0 %v503
    %v840 = vpop.f32.mrb[0].mxu0
    %v841 = vadd.f32 %v176, %v840
    %v842 = vpop.f32.mrb[0].mxu0
    %v843 = vadd.f32 %v180, %v842
    %v844 = vpop.f32.mrb[0].mxu0
    %v845 = vadd.f32 %v176, %v844
    %v846 = vpop.f32.mrb[0].mxu0
    %v847 = vadd.f32 %v180, %v846
    %848 = vmatprep.mubr.bf16.mxu0 0
    %849 = vmatmul.mubr.bf16.gmra.mrb[0].mxu0 %v506
    %v850 = vpop.f32.mrb[0].mxu0
    %v851 = vadd.f32 %v176, %v850
    %v852 = vpop.f32.mrb[0].mxu0
    %v853 = vadd.f32 %v180, %v852
    %v854 = vpop.f32.mrb[0].mxu0
    %v855 = vadd.f32 %v176, %v854
    %v856 = vpop.f32.mrb[0].mxu0
    %v857 = vadd.f32 %v180, %v856
    %858 = vmatprep.mubr.bf16.mxu0 0
    %859 = vmatmul.mubr.bf16.gmra.mrb[0].mxu0 %v509
    %v860 = vpop.f32.mrb[0].mxu0
    %v861 = vadd.f32 %v176, %v860
    %v862 = vpop.f32.mrb[0].mxu0
    %v863 = vadd.f32 %v180, %v862
    %v864 = vpop.f32.mrb[0].mxu0
    %v865 = vadd.f32 %v176, %v864
    %v866 = vpop.f32.mrb[0].mxu0
    %v867 = vadd.f32 %v180, %v866
    %868 = vmatprep.mubr.bf16.mxu0 0
    %869 = vmatmul.mubr.bf16.gmra.mrb[0].mxu0 %v512
    %v870 = vpop.f32.mrb[0].mxu0
    %v871 = vadd.f32 %v176, %v870
    %v872 = vpop.f32.mrb[0].mxu0
    %v873 = vadd.f32 %v180, %v872
    %v874 = vpop.f32.mrb[0].mxu0
    %v875 = vadd.f32 %v176, %v874
    %v876 = vpop.f32.mrb[0].mxu0
    %v877 = vadd.f32 %v180, %v876
    %878 = vmatprep.mubr.bf16.mxu0 0
    %879 = vmatmul.mubr.bf16.gmra.mrb[0].mxu0 %v515
    %v880 = vpop.f32.mrb[0].mxu0
    %v881 = vadd.f32 %v176, %v880
    %v882 = vpop.f32.mrb[0].mxu0
    %v883 = vadd.f32 %v180, %v882
    %v884 = vpop.f32.mrb[0].mxu0
    %v885 = vadd.f32 %v176, %v884
    %v886 = vpop.f32.mrb[0].mxu0
    %v887 = vadd.f32 %v180, %v886
    %888 = vmatprep.mubr.bf16.mxu0 0
    %889 = vmatmul.mubr.bf16.gmra.mrb[0].mxu0 %v518
    %v890 = vpop.f32.mrb[0].mxu0
    %v891 = vadd.f32 %v176, %v890
    %v892 = vpop.f32.mrb[0].mxu0
    %v893 = vadd.f32 %v180, %v892
    %v894 = vpop.f32.mrb[0].mxu0
    %v895 = vadd.f32 %v176, %v894
    %v896 = vpop.f32.mrb[0].mxu0
    %v897 = vadd.f32 %v180, %v896
    %898 = vmatprep.mubr.bf16.mxu0 0
    %899 = vmatmul.mubr.bf16.gmra.mrb[0].mxu0 %v521
    %v900 = vpop.f32.mrb[0].mxu0
    %v901 = vadd.f32 %v176, %v900
    %v902 = vpop.f32.mrb[0].mxu0
    %v903 = vadd.f32 %v180, %v902
    %v904 = vpop.f32.mrb[0].mxu0
    %v905 = vadd.f32 %v176, %v904
    %v906 = vpop.f32.mrb[0].mxu0
    %v907 = vadd.f32 %v180, %v906
    %908 = vdwg.mxu0
    %909 = vmatprep.subr.bf16.mxu0 %v407
    %910 = vmatpush1.bf16.msra.mxu0 %v406
    %911 = vmatprep.subr.bf16.mxu0 %v416
    %912 = vmatpush1.bf16.msra.mxu0 %v415
    %913 = vmatprep.subr.bf16.mxu0 %v425
    %914 = vmatpush1.bf16.msra.mxu0 %v424
    %915 = vmatprep.subr.bf16.mxu0 %v434
    %916 = vmatpush1.bf16.msra.mxu0 %v433
    %917 = vmatprep.subr.bf16.mxu0 0
    %918 = vmatpush1.bf16.msra.mxu0 0
    %919 = vmatprep.subr.bf16.mxu0 0
    %920 = vmatpush1.bf16.msra.mxu0 0
    %921 = vmatprep.subr.bf16.mxu0 0
    %922 = vmatpush1.bf16.msra.mxu0 0
    %923 = vmatprep.subr.bf16.mxu0 0
    %924 = vmatpush1.bf16.msra.mxu0 0
    %925 = vmatprep.subr.bf16.mxu0 0
    %926 = vmatpush1.bf16.msra.mxu0 0
    %927 = vmatprep.subr.bf16.mxu0 0
    %928 = vmatpush1.bf16.msra.mxu0 0
    %929 = vmatprep.subr.bf16.mxu0 0
    %930 = vmatpush1.bf16.msra.mxu0 0
    %931 = vmatprep.subr.bf16.mxu0 0
    %932 = vmatpush1.bf16.msra.mxu0 0
    %933 = vmatprep.subr.bf16.mxu0 0
    %934 = vmatpush1.bf16.msra.mxu0 0
    %935 = vmatprep.subr.bf16.mxu0 0
    %936 = vmatpush1.bf16.msra.mxu0 0
    %937 = vmatprep.subr.bf16.mxu0 0
    %938 = vmatpush1.bf16.msra.mxu0 0
    %939 = vmatprep.subr.bf16.mxu0 0
    %940 = vmatpush1.bf16.msra.mxu0 0
    %941 = vmatprep.mubr.bf16.mxu0 0
    %942 = vmatmul.mubr.bf16.gmra.mrb[0].mxu0 %v476
    %v943 = vpop.f32.mrb[0].mxu0
    %v944 = vadd.f32 %v184, %v943
    %v945 = vpop.f32.mrb[0].mxu0
    %v946 = vadd.f32 %v188, %v945
    %v947 = vpop.f32.mrb[0].mxu0
    %v948 = vadd.f32 %v184, %v947
    %v949 = vpop.f32.mrb[0].mxu0
    %v950 = vadd.f32 %v188, %v949
    %951 = vmatprep.mubr.bf16.mxu0 0
    %952 = vmatmul.mubr.bf16.gmra.mrb[0].mxu0 %v479
    %v953 = vpop.f32.mrb[0].mxu0
    %v954 = vadd.f32 %v184, %v953
    %v955 = vpop.f32.mrb[0].mxu0
    %v956 = vadd.f32 %v188, %v955
    %v957 = vpop.f32.mrb[0].mxu0
    %v958 = vadd.f32 %v184, %v957
    %v959 = vpop.f32.mrb[0].mxu0
    %v960 = vadd.f32 %v188, %v959
    %961 = vmatprep.mubr.bf16.mxu0 0
    %962 = vmatmul.mubr.bf16.gmra.mrb[0].mxu0 %v482
    %v963 = vpop.f32.mrb[0].mxu0
    %v964 = vadd.f32 %v184, %v963
    %v965 = vpop.f32.mrb[0].mxu0
    %v966 = vadd.f32 %v188, %v965
    %v967 = vpop.f32.mrb[0].mxu0
    %v968 = vadd.f32 %v184, %v967
    %v969 = vpop.f32.mrb[0].mxu0
    %v970 = vadd.f32 %v188, %v969
    %971 = vmatprep.mubr.bf16.mxu0 0
    %972 = vmatmul.mubr.bf16.gmra.mrb[0].mxu0 %v485
    %v973 = vpop.f32.mrb[0].mxu0
    %v974 = vadd.f32 %v184, %v973
    %v975 = vpop.f32.mrb[0].mxu0
    %v976 = vadd.f32 %v188, %v975
    %v977 = vpop.f32.mrb[0].mxu0
    %v978 = vadd.f32 %v184, %v977
    %v979 = vpop.f32.mrb[0].mxu0
    %v980 = vadd.f32 %v188, %v979
    %981 = vmatprep.mubr.bf16.mxu0 0
    %982 = vmatmul.mubr.bf16.gmra.mrb[0].mxu0 %v488
    %v983 = vpop.f32.mrb[0].mxu0
    %v984 = vadd.f32 %v184, %v983
    %v985 = vpop.f32.mrb[0].mxu0
    %v986 = vadd.f32 %v188, %v985
    %v987 = vpop.f32.mrb[0].mxu0
    %v988 = vadd.f32 %v184, %v987
    %v989 = vpop.f32.mrb[0].mxu0
    %v990 = vadd.f32 %v188, %v989
    %991 = vmatprep.mubr.bf16.mxu0 0
    %992 = vmatmul.mubr.bf16.gmra.mrb[0].mxu0 %v491
    %v993 = vpop.f32.mrb[0].mxu0
    %v994 = vadd.f32 %v184, %v993
    %v995 = vpop.f32.mrb[0].mxu0
    %v996 = vadd.f32 %v188, %v995
    %v997 = vpop.f32.mrb[0].mxu0
    %v998 = vadd.f32 %v184, %v997
    %v999 = vpop.f32.mrb[0].mxu0
    %v1000 = vadd.f32 %v188, %v999
    %1001 = vmatprep.mubr.bf16.mxu0 0
    %1002 = vmatmul.mubr.bf16.gmra.mrb[0].mxu0 %v494
    %v1003 = vpop.f32.mrb[0].mxu0
    %v1004 = vadd.f32 %v184, %v1003
    %v1005 = vpop.f32.mrb[0].mxu0
    %v1006 = vadd.f32 %v188, %v1005
    %v1007 = vpop.f32.mrb[0].mxu0
    %v1008 = vadd.f32 %v184, %v1007
    %v1009 = vpop.f32.mrb[0].mxu0
    %v1010 = vadd.f32 %v188, %v1009
    %1011 = vmatprep.mubr.bf16.mxu0 0
    %1012 = vmatmul.mubr.bf16.gmra.mrb[0].mxu0 %v497
    %v1013 = vpop.f32.mrb[0].mxu0
    %v1014 = vadd.f32 %v184, %v1013
    %v1015 = vpop.f32.mrb[0].mxu0
    %v1016 = vadd.f32 %v188, %v1015
    %v1017 = vpop.f32.mrb[0].mxu0
    %v1018 = vadd.f32 %v184, %v1017
    %v1019 = vpop.f32.mrb[0].mxu0
    %v1020 = vadd.f32 %v188, %v1019
    %1021 = vmatprep.mubr.bf16.mxu0 0
    %1022 = vmatmul.mubr.bf16.gmra.mrb[0].mxu0 %v500
    %v1023 = vpop.f32.mrb[0].mxu0
    %v1024 = vadd.f32 %v184, %v1023
    %v1025 = vpop.f32.mrb[0].mxu0
    %v1026 = vadd.f32 %v188, %v1025
    %v1027 = vpop.f32.mrb[0].mxu0
    %v1028 = vadd.f32 %v184, %v1027
    %v1029 = vpop.f32.mrb[0].mxu0
    %v1030 = vadd.f32 %v188, %v1029
    %1031 = vmatprep.mubr.bf16.mxu0 0
    %1032 = vmatmul.mubr.bf16.gmra.mrb[0].mxu0 %v503
    %v1033 = vpop.f32.mrb[0].mxu0
    %v1034 = vadd.f32 %v184, %v1033
    %v1035 = vpop.f32.mrb[0].mxu0
    %v1036 = vadd.f32 %v188, %v1035
    %v1037 = vpop.f32.mrb[0].mxu0
    %v1038 = vadd.f32 %v184, %v1037
    %v1039 = vpop.f32.mrb[0].mxu0
    %v1040 = vadd.f32 %v188, %v1039
    %1041 = vmatprep.mubr.bf16.mxu0 0
    %1042 = vmatmul.mubr.bf16.gmra.mrb[0].mxu0 %v506
    %v1043 = vpop.f32.mrb[0].mxu0
    %v1044 = vadd.f32 %v184, %v1043
    %v1045 = vpop.f32.mrb[0].mxu0
    %v1046 = vadd.f32 %v188, %v1045
    %v1047 = vpop.f32.mrb[0].mxu0
    %v1048 = vadd.f32 %v184, %v1047
    %v1049 = vpop.f32.mrb[0].mxu0
    %v1050 = vadd.f32 %v188, %v1049
    %1051 = vmatprep.mubr.bf16.mxu0 0
    %1052 = vmatmul.mubr.bf16.gmra.mrb[0].mxu0 %v509
    %v1053 = vpop.f32.mrb[0].mxu0
    %v1054 = vadd.f32 %v184, %v1053
    %v1055 = vpop.f32.mrb[0].mxu0
    %v1056 = vadd.f32 %v188, %v1055
    %v1057 = vpop.f32.mrb[0].mxu0
    %v1058 = vadd.f32 %v184, %v1057
    %v1059 = vpop.f32.mrb[0].mxu0
    %v1060 = vadd.f32 %v188, %v1059
    %1061 = vmatprep.mubr.bf16.mxu0 0
    %1062 = vmatmul.mubr.bf16.gmra.mrb[0].mxu0 %v512
    %v1063 = vpop.f32.mrb[0].mxu0
    %v1064 = vadd.f32 %v184, %v1063
    %v1065 = vpop.f32.mrb[0].mxu0
    %v1066 = vadd.f32 %v188, %v1065
    %v1067 = vpop.f32.mrb[0].mxu0
    %v1068 = vadd.f32 %v184, %v1067
    %v1069 = vpop.f32.mrb[0].mxu0
    %v1070 = vadd.f32 %v188, %v1069
    %1071 = vmatprep.mubr.bf16.mxu0 0
    %1072 = vmatmul.mubr.bf16.gmra.mrb[0].mxu0 %v515
    %v1073 = vpop.f32.mrb[0].mxu0
    %v1074 = vadd.f32 %v184, %v1073
    %v1075 = vpop.f32.mrb[0].mxu0
    %v1076 = vadd.f32 %v188, %v1075
    %v1077 = vpop.f32.mrb[0].mxu0
    %v1078 = vadd.f32 %v184, %v1077
    %v1079 = vpop.f32.mrb[0].mxu0
    %v1080 = vadd.f32 %v188, %v1079
    %1081 = vmatprep.mubr.bf16.mxu0 0
    %1082 = vmatmul.mubr.bf16.gmra.mrb[0].mxu0 %v518
    %v1083 = vpop.f32.mrb[0].mxu0
    %v1084 = vadd.f32 %v184, %v1083
    %v1085 = vpop.f32.mrb[0].mxu0
    %v1086 = vadd.f32 %v188, %v1085
    %v1087 = vpop.f32.mrb[0].mxu0
    %v1088 = vadd.f32 %v184, %v1087
    %v1089 = vpop.f32.mrb[0].mxu0
    %v1090 = vadd.f32 %v188, %v1089
    %1091 = vmatprep.mubr.bf16.mxu0 0
    %1092 = vmatmul.mubr.bf16.gmra.mrb[0].mxu0 %v521
    %v1093 = vpop.f32.mrb[0].mxu0
    %v1094 = vadd.f32 %v184, %v1093
    %v1095 = vpop.f32.mrb[0].mxu0
    %v1096 = vadd.f32 %v188, %v1095
    %v1097 = vpop.f32.mrb[0].mxu0
    %v1098 = vadd.f32 %v184, %v1097
    %v1099 = vpop.f32.mrb[0].mxu0
    %v1100 = vadd.f32 %v188, %v1099
    %1101 = vdwg.mxu0
    %1102 = vmatprep.subr.bf16.mxu0 %v409
    %1103 = vmatpush1.bf16.msra.mxu0 %v408
    %1104 = vmatprep.subr.bf16.mxu0 %v418
    %1105 = vmatpush1.bf16.msra.mxu0 %v417
    %1106 = vmatprep.subr.bf16.mxu0 %v427
    %1107 = vmatpush1.bf16.msra.mxu0 %v426
    %1108 = vmatprep.subr.bf16.mxu0 %v436
    %1109 = vmatpush1.bf16.msra.mxu0 %v435
    %1110 = vmatprep.subr.bf16.mxu0 0
    %1111 = vmatpush1.bf16.msra.mxu0 0
    %1112 = vmatprep.subr.bf16.mxu0 0
    %1113 = vmatpush1.bf16.msra.mxu0 0
    %1114 = vmatprep.subr.bf16.mxu0 0
    %1115 = vmatpush1.bf16.msra.mxu0 0
    %1116 = vmatprep.subr.bf16.mxu0 0
    %1117 = vmatpush1.bf16.msra.mxu0 0
    %1118 = vmatprep.subr.bf16.mxu0 0
    %1119 = vmatpush1.bf16.msra.mxu0 0
    %1120 = vmatprep.subr.bf16.mxu0 0
    %1121 = vmatpush1.bf16.msra.mxu0 0
    %1122 = vmatprep.subr.bf16.mxu0 0
    %1123 = vmatpush1.bf16.msra.mxu0 0
    %1124 = vmatprep.subr.bf16.mxu0 0
    %1125 = vmatpush1.bf16.msra.mxu0 0
    %1126 = vmatprep.subr.bf16.mxu0 0
    %1127 = vmatpush1.bf16.msra.mxu0 0
    %1128 = vmatprep.subr.bf16.mxu0 0
    %1129 = vmatpush1.bf16.msra.mxu0 0
    %1130 = vmatprep.subr.bf16.mxu0 0
    %1131 = vmatpush1.bf16.msra.mxu0 0
    %1132 = vmatprep.subr.bf16.mxu0 0
    %1133 = vmatpush1.bf16.msra.mxu0 0
    %1134 = vmatprep.mubr.bf16.mxu0 0
    %1135 = vmatmul.mubr.bf16.gmra.mrb[0].mxu0 %v476
    %v1136 = vpop.f32.mrb[0].mxu0
    %v1137 = vadd.f32 %v192, %v1136
    %v1138 = vpop.f32.mrb[0].mxu0
    %v1139 = vadd.f32 %v196, %v1138
    %v1140 = vpop.f32.mrb[0].mxu0
    %v1141 = vadd.f32 %v192, %v1140
    %v1142 = vpop.f32.mrb[0].mxu0
    %v1143 = vadd.f32 %v196, %v1142
    %1144 = vmatprep.mubr.bf16.mxu0 0
    %1145 = vmatmul.mubr.bf16.gmra.mrb[0].mxu0 %v479
    %v1146 = vpop.f32.mrb[0].mxu0
    %v1147 = vadd.f32 %v192, %v1146
    %v1148 = vpop.f32.mrb[0].mxu0
    %v1149 = vadd.f32 %v196, %v1148
    %v1150 = vpop.f32.mrb[0].mxu0
    %v1151 = vadd.f32 %v192, %v1150
    %v1152 = vpop.f32.mrb[0].mxu0
    %v1153 = vadd.f32 %v196, %v1152
    %1154 = vmatprep.mubr.bf16.mxu0 0
    %1155 = vmatmul.mubr.bf16.gmra.mrb[0].mxu0 %v482
    %v1156 = vpop.f32.mrb[0].mxu0
    %v1157 = vadd.f32 %v192, %v1156
    %v1158 = vpop.f32.mrb[0].mxu0
    %v1159 = vadd.f32 %v196, %v1158
    %v1160 = vpop.f32.mrb[0].mxu0
    %v1161 = vadd.f32 %v192, %v1160
    %v1162 = vpop.f32.mrb[0].mxu0
    %v1163 = vadd.f32 %v196, %v1162
    %1164 = vmatprep.mubr.bf16.mxu0 0
    %1165 = vmatmul.mubr.bf16.gmra.mrb[0].mxu0 %v485
    %v1166 = vpop.f32.mrb[0].mxu0
    %v1167 = vadd.f32 %v192, %v1166
    %v1168 = vpop.f32.mrb[0].mxu0
    %v1169 = vadd.f32 %v196, %v1168
    %v1170 = vpop.f32.mrb[0].mxu0
    %v1171 = vadd.f32 %v192, %v1170
    %v1172 = vpop.f32.mrb[0].mxu0
    %v1173 = vadd.f32 %v196, %v1172
    %1174 = vmatprep.mubr.bf16.mxu0 0
    %1175 = vmatmul.mubr.bf16.gmra.mrb[0].mxu0 %v488
    %v1176 = vpop.f32.mrb[0].mxu0
    %v1177 = vadd.f32 %v192, %v1176
    %v1178 = vpop.f32.mrb[0].mxu0
    %v1179 = vadd.f32 %v196, %v1178
    %v1180 = vpop.f32.mrb[0].mxu0
    %v1181 = vadd.f32 %v192, %v1180
    %v1182 = vpop.f32.mrb[0].mxu0
    %v1183 = vadd.f32 %v196, %v1182
    %1184 = vmatprep.mubr.bf16.mxu0 0
    %1185 = vmatmul.mubr.bf16.gmra.mrb[0].mxu0 %v491
    %v1186 = vpop.f32.mrb[0].mxu0
    %v1187 = vadd.f32 %v192, %v1186
    %v1188 = vpop.f32.mrb[0].mxu0
    %v1189 = vadd.f32 %v196, %v1188
    %v1190 = vpop.f32.mrb[0].mxu0
    %v1191 = vadd.f32 %v192, %v1190
    %v1192 = vpop.f32.mrb[0].mxu0
    %v1193 = vadd.f32 %v196, %v1192
    %1194 = vmatprep.mubr.bf16.mxu0 0
    %1195 = vmatmul.mubr.bf16.gmra.mrb[0].mxu0 %v494
    %v1196 = vpop.f32.mrb[0].mxu0
    %v1197 = vadd.f32 %v192, %v1196
    %v1198 = vpop.f32.mrb[0].mxu0
    %v1199 = vadd.f32 %v196, %v1198
    %v1200 = vpop.f32.mrb[0].mxu0
    %v1201 = vadd.f32 %v192, %v1200
    %v1202 = vpop.f32.mrb[0].mxu0
    %v1203 = vadd.f32 %v196, %v1202
    %1204 = vmatprep.mubr.bf16.mxu0 0
    %1205 = vmatmul.mubr.bf16.gmra.mrb[0].mxu0 %v497
    %v1206 = vpop.f32.mrb[0].mxu0
    %v1207 = vadd.f32 %v192, %v1206
    %v1208 = vpop.f32.mrb[0].mxu0
    %v1209 = vadd.f32 %v196, %v1208
    %v1210 = vpop.f32.mrb[0].mxu0
    %v1211 = vadd.f32 %v192, %v1210
    %v1212 = vpop.f32.mrb[0].mxu0
    %v1213 = vadd.f32 %v196, %v1212
    %1214 = vmatprep.mubr.bf16.mxu0 0
    %1215 = vmatmul.mubr.bf16.gmra.mrb[0].mxu0 %v500
    %v1216 = vpop.f32.mrb[0].mxu0
    %v1217 = vadd.f32 %v192, %v1216
    %v1218 = vpop.f32.mrb[0].mxu0
    %v1219 = vadd.f32 %v196, %v1218
    %v1220 = vpop.f32.mrb[0].mxu0
    %v1221 = vadd.f32 %v192, %v1220
    %v1222 = vpop.f32.mrb[0].mxu0
    %v1223 = vadd.f32 %v196, %v1222
    %1224 = vmatprep.mubr.bf16.mxu0 0
    %1225 = vmatmul.mubr.bf16.gmra.mrb[0].mxu0 %v503
    %v1226 = vpop.f32.mrb[0].mxu0
    %v1227 = vadd.f32 %v192, %v1226
    %v1228 = vpop.f32.mrb[0].mxu0
    %v1229 = vadd.f32 %v196, %v1228
    %v1230 = vpop.f32.mrb[0].mxu0
    %v1231 = vadd.f32 %v192, %v1230
    %v1232 = vpop.f32.mrb[0].mxu0
    %v1233 = vadd.f32 %v196, %v1232
    %1234 = vmatprep.mubr.bf16.mxu0 0
    %1235 = vmatmul.mubr.bf16.gmra.mrb[0].mxu0 %v506
    %v1236 = vpop.f32.mrb[0].mxu0
    %v1237 = vadd.f32 %v192, %v1236
    %v1238 = vpop.f32.mrb[0].mxu0
    %v1239 = vadd.f32 %v196, %v1238
    %v1240 = vpop.f32.mrb[0].mxu0
    %v1241 = vadd.f32 %v192, %v1240
    %v1242 = vpop.f32.mrb[0].mxu0
    %v1243 = vadd.f32 %v196, %v1242
    %1244 = vmatprep.mubr.bf16.mxu0 0
    %1245 = vmatmul.mubr.bf16.gmra.mrb[0].mxu0 %v509
    %v1246 = vpop.f32.mrb[0].mxu0
    %v1247 = vadd.f32 %v192, %v1246
    %v1248 = vpop.f32.mrb[0].mxu0
    %v1249 = vadd.f32 %v196, %v1248
    %v1250 = vpop.f32.mrb[0].mxu0
    %v1251 = vadd.f32 %v192, %v1250
    %v1252 = vpop.f32.mrb[0].mxu0
    %v1253 = vadd.f32 %v196, %v1252
    %1254 = vmatprep.mubr.bf16.mxu0 0
    %1255 = vmatmul.mubr.bf16.gmra.mrb[0].mxu0 %v512
    %v1256 = vpop.f32.mrb[0].mxu0
    %v1257 = vadd.f32 %v192, %v1256
    %v1258 = vpop.f32.mrb[0].mxu0
    %v1259 = vadd.f32 %v196, %v1258
    %v1260 = vpop.f32.mrb[0].mxu0
    %v1261 = vadd.f32 %v192, %v1260
    %v1262 = vpop.f32.mrb[0].mxu0
    %v1263 = vadd.f32 %v196, %v1262
    %1264 = vmatprep.mubr.bf16.mxu0 0
    %1265 = vmatmul.mubr.bf16.gmra.mrb[0].mxu0 %v515
    %v1266 = vpop.f32.mrb[0].mxu0
    %v1267 = vadd.f32 %v192, %v1266
    %v1268 = vpop.f32.mrb[0].mxu0
    %v1269 = vadd.f32 %v196, %v1268
    %v1270 = vpop.f32.mrb[0].mxu0
    %v1271 = vadd.f32 %v192, %v1270
    %v1272 = vpop.f32.mrb[0].mxu0
    %v1273 = vadd.f32 %v196, %v1272
    %1274 = vmatprep.mubr.bf16.mxu0 0
    %1275 = vmatmul.mubr.bf16.gmra.mrb[0].mxu0 %v518
    %v1276 = vpop.f32.mrb[0].mxu0
    %v1277 = vadd.f32 %v192, %v1276
    %v1278 = vpop.f32.mrb[0].mxu0
    %v1279 = vadd.f32 %v196, %v1278
    %v1280 = vpop.f32.mrb[0].mxu0
    %v1281 = vadd.f32 %v192, %v1280
    %v1282 = vpop.f32.mrb[0].mxu0
    %v1283 = vadd.f32 %v196, %v1282
    %1284 = vmatprep.mubr.bf16.mxu0 0
    %1285 = vmatmul.mubr.bf16.gmra.mrb[0].mxu0 %v521
    %v1286 = vpop.f32.mrb[0].mxu0
    %v1287 = vadd.f32 %v192, %v1286
    %v1288 = vpop.f32.mrb[0].mxu0
    %v1289 = vadd.f32 %v196, %v1288
    %v1290 = vpop.f32.mrb[0].mxu0
    %v1291 = vadd.f32 %v192, %v1290
    %v1292 = vpop.f32.mrb[0].mxu0
    %v1293 = vadd.f32 %v196, %v1292
    %1294 = vdwg.mxu0
    %1295 = vmatprep.subr.bf16.mxu0 0
    %1296 = vmatpush1.bf16.msra.mxu0 %v410
    %1297 = vmatprep.subr.bf16.mxu0 0
    %1298 = vmatpush1.bf16.msra.mxu0 %v419
    %1299 = vmatprep.subr.bf16.mxu0 0
    %1300 = vmatpush1.bf16.msra.mxu0 %v428
    %1301 = vmatprep.subr.bf16.mxu0 0
    %1302 = vmatpush1.bf16.msra.mxu0 %v437
    %1303 = vmatprep.subr.bf16.mxu0 0
    %1304 = vmatpush1.bf16.msra.mxu0 0
    %1305 = vmatprep.subr.bf16.mxu0 0
    %1306 = vmatpush1.bf16.msra.mxu0 0
    %1307 = vmatprep.subr.bf16.mxu0 0
    %1308 = vmatpush1.bf16.msra.mxu0 0
    %1309 = vmatprep.subr.bf16.mxu0 0
    %1310 = vmatpush1.bf16.msra.mxu0 0
    %1311 = vmatprep.subr.bf16.mxu0 0
    %1312 = vmatpush1.bf16.msra.mxu0 0
    %1313 = vmatprep.subr.bf16.mxu0 0
    %1314 = vmatpush1.bf16.msra.mxu0 0
    %1315 = vmatprep.subr.bf16.mxu0 0
    %1316 = vmatpush1.bf16.msra.mxu0 0
    %1317 = vmatprep.subr.bf16.mxu0 0
    %1318 = vmatpush1.bf16.msra.mxu0 0
    %1319 = vmatprep.subr.bf16.mxu0 0
    %1320 = vmatpush1.bf16.msra.mxu0 0
    %1321 = vmatprep.subr.bf16.mxu0 0
    %1322 = vmatpush1.bf16.msra.mxu0 0
    %1323 = vmatprep.subr.bf16.mxu0 0
    %1324 = vmatpush1.bf16.msra.mxu0 0
    %1325 = vmatprep.subr.bf16.mxu0 0
    %1326 = vmatpush1.bf16.msra.mxu0 0
    %1327 = vmatprep.mubr.bf16.mxu0 0
    %1328 = vmatmul.mubr.bf16.gmra.mrb[0].mxu0 %v476
    %v1329 = vpop.f32.mrb[0].mxu0
    %v1330 = vadd.f32 %v200, %v1329
    %v1331 = vpop.f32.mrb[0].mxu0
    %v1332 = vpop.f32.mrb[0].mxu0
    %v1333 = vadd.f32 %v200, %v1332
    %v1334 = vpop.f32.mrb[0].mxu0
    %1335 = vmatprep.mubr.bf16.mxu0 0
    %1336 = vmatmul.mubr.bf16.gmra.mrb[0].mxu0 %v479
    %v1337 = vpop.f32.mrb[0].mxu0
    %v1338 = vadd.f32 %v200, %v1337
    %v1339 = vpop.f32.mrb[0].mxu0
    %v1340 = vpop.f32.mrb[0].mxu0
    %v1341 = vadd.f32 %v200, %v1340
    %v1342 = vpop.f32.mrb[0].mxu0
    %1343 = vmatprep.mubr.bf16.mxu0 0
    %1344 = vmatmul.mubr.bf16.gmra.mrb[0].mxu0 %v482
    %v1345 = vpop.f32.mrb[0].mxu0
    %v1346 = vadd.f32 %v200, %v1345
    %v1347 = vpop.f32.mrb[0].mxu0
    %v1348 = vpop.f32.mrb[0].mxu0
    %v1349 = vadd.f32 %v200, %v1348
    %v1350 = vpop.f32.mrb[0].mxu0
    %1351 = vmatprep.mubr.bf16.mxu0 0
    %1352 = vmatmul.mubr.bf16.gmra.mrb[0].mxu0 %v485
    %v1353 = vpop.f32.mrb[0].mxu0
    %v1354 = vadd.f32 %v200, %v1353
    %v1355 = vpop.f32.mrb[0].mxu0
    %v1356 = vpop.f32.mrb[0].mxu0
    %v1357 = vadd.f32 %v200, %v1356
    %v1358 = vpop.f32.mrb[0].mxu0
    %1359 = vmatprep.mubr.bf16.mxu0 0
    %1360 = vmatmul.mubr.bf16.gmra.mrb[0].mxu0 %v488
    %v1361 = vpop.f32.mrb[0].mxu0
    %v1362 = vadd.f32 %v200, %v1361
    %v1363 = vpop.f32.mrb[0].mxu0
    %v1364 = vpop.f32.mrb[0].mxu0
    %v1365 = vadd.f32 %v200, %v1364
    %v1366 = vpop.f32.mrb[0].mxu0
    %1367 = vmatprep.mubr.bf16.mxu0 0
    %1368 = vmatmul.mubr.bf16.gmra.mrb[0].mxu0 %v491
    %v1369 = vpop.f32.mrb[0].mxu0
    %v1370 = vadd.f32 %v200, %v1369
    %v1371 = vpop.f32.mrb[0].mxu0
    %v1372 = vpop.f32.mrb[0].mxu0
    %v1373 = vadd.f32 %v200, %v1372
    %v1374 = vpop.f32.mrb[0].mxu0
    %1375 = vmatprep.mubr.bf16.mxu0 0
    %1376 = vmatmul.mubr.bf16.gmra.mrb[0].mxu0 %v494
    %v1377 = vpop.f32.mrb[0].mxu0
    %v1378 = vadd.f32 %v200, %v1377
    %v1379 = vpop.f32.mrb[0].mxu0
    %v1380 = vpop.f32.mrb[0].mxu0
    %v1381 = vadd.f32 %v200, %v1380
    %v1382 = vpop.f32.mrb[0].mxu0
    %1383 = vmatprep.mubr.bf16.mxu0 0
    %1384 = vmatmul.mubr.bf16.gmra.mrb[0].mxu0 %v497
    %v1385 = vpop.f32.mrb[0].mxu0
    %v1386 = vadd.f32 %v200, %v1385
    %v1387 = vpop.f32.mrb[0].mxu0
    %v1388 = vpop.f32.mrb[0].mxu0
    %v1389 = vadd.f32 %v200, %v1388
    %v1390 = vpop.f32.mrb[0].mxu0
    %1391 = vmatprep.mubr.bf16.mxu0 0
    %1392 = vmatmul.mubr.bf16.gmra.mrb[0].mxu0 %v500
    %v1393 = vpop.f32.mrb[0].mxu0
    %v1394 = vadd.f32 %v200, %v1393
    %v1395 = vpop.f32.mrb[0].mxu0
    %v1396 = vpop.f32.mrb[0].mxu0
    %v1397 = vadd.f32 %v200, %v1396
    %v1398 = vpop.f32.mrb[0].mxu0
    %1399 = vmatprep.mubr.bf16.mxu0 0
    %1400 = vmatmul.mubr.bf16.gmra.mrb[0].mxu0 %v503
    %v1401 = vpop.f32.mrb[0].mxu0
    %v1402 = vadd.f32 %v200, %v1401
    %v1403 = vpop.f32.mrb[0].mxu0
    %v1404 = vpop.f32.mrb[0].mxu0
    %v1405 = vadd.f32 %v200, %v1404
    %v1406 = vpop.f32.mrb[0].mxu0
    %1407 = vmatprep.mubr.bf16.mxu0 0
    %1408 = vmatmul.mubr.bf16.gmra.mrb[0].mxu0 %v506
    %v1409 = vpop.f32.mrb[0].mxu0
    %v1410 = vadd.f32 %v200, %v1409
    %v1411 = vpop.f32.mrb[0].mxu0
    %v1412 = vpop.f32.mrb[0].mxu0
    %v1413 = vadd.f32 %v200, %v1412
    %v1414 = vpop.f32.mrb[0].mxu0
    %1415 = vmatprep.mubr.bf16.mxu0 0
    %1416 = vmatmul.mubr.bf16.gmra.mrb[0].mxu0 %v509
    %v1417 = vpop.f32.mrb[0].mxu0
    %v1418 = vadd.f32 %v200, %v1417
    %v1419 = vpop.f32.mrb[0].mxu0
    %v1420 = vpop.f32.mrb[0].mxu0
    %v1421 = vadd.f32 %v200, %v1420
    %v1422 = vpop.f32.mrb[0].mxu0
    %1423 = vmatprep.mubr.bf16.mxu0 0
    %1424 = vmatmul.mubr.bf16.gmra.mrb[0].mxu0 %v512
    %v1425 = vpop.f32.mrb[0].mxu0
    %v1426 = vadd.f32 %v200, %v1425
    %v1427 = vpop.f32.mrb[0].mxu0
    %v1428 = vpop.f32.mrb[0].mxu0
    %v1429 = vadd.f32 %v200, %v1428
    %v1430 = vpop.f32.mrb[0].mxu0
    %1431 = vmatprep.mubr.bf16.mxu0 0
    %1432 = vmatmul.mubr.bf16.gmra.mrb[0].mxu0 %v515
    %v1433 = vpop.f32.mrb[0].mxu0
    %v1434 = vadd.f32 %v200, %v1433
    %v1435 = vpop.f32.mrb[0].mxu0
    %v1436 = vpop.f32.mrb[0].mxu0
    %v1437 = vadd.f32 %v200, %v1436
    %v1438 = vpop.f32.mrb[0].mxu0
    %1439 = vmatprep.mubr.bf16.mxu0 0
    %1440 = vmatmul.mubr.bf16.gmra.mrb[0].mxu0 %v518
    %v1441 = vpop.f32.mrb[0].mxu0
    %v1442 = vadd.f32 %v200, %v1441
    %v1443 = vpop.f32.mrb[0].mxu0
    %v1444 = vpop.f32.mrb[0].mxu0
    %v1445 = vadd.f32 %v200, %v1444
    %v1446 = vpop.f32.mrb[0].mxu0
    %1447 = vmatprep.mubr.bf16.mxu0 0
    %1448 = vmatmul.mubr.bf16.gmra.mrb[0].mxu0 %v521
    %v1449 = vpop.f32.mrb[0].mxu0
    %v1450 = vadd.f32 %v200, %v1449
    %v1451 = vpop.f32.mrb[0].mxu0
    %v1452 = vpop.f32.mrb[0].mxu0
    %v1453 = vadd.f32 %v200, %v1452
    %v1454 = vpop.f32.mrb[0].mxu0
    %1455 = vdwg.mxu0
    %vm1456 = vcmp.gt.f32.partialorder %v558, 0.0
    %vm1457 = vcmp.gt.f32.partialorder %v560, 0.0
    %vm1458 = vcmp.gt.f32.partialorder %v751, 0.0
    %vm1459 = vcmp.gt.f32.partialorder %v753, 0.0
    %vm1460 = vcmp.gt.f32.partialorder %v562, 0.0
    %vm1461 = vcmp.gt.f32.partialorder %v564, 0.0
    %vm1462 = vcmp.gt.f32.partialorder %v755, 0.0
    %vm1463 = vcmp.gt.f32.partialorder %v757, 0.0
    %vm1464 = vcmp.gt.f32.partialorder %v568, 0.0
    %vm1465 = vcmp.gt.f32.partialorder %v570, 0.0
    %vm1466 = vcmp.gt.f32.partialorder %v761, 0.0
    %vm1467 = vcmp.gt.f32.partialorder %v763, 0.0
    %vm1468 = vcmp.gt.f32.partialorder %v572, 0.0
    %vm1469 = vcmp.gt.f32.partialorder %v574, 0.0
    %vm1470 = vcmp.gt.f32.partialorder %v765, 0.0
    %vm1471 = vcmp.gt.f32.partialorder %v767, 0.0
    %vm1472 = vcmp.gt.f32.partialorder %v578, 0.0
    %vm1473 = vcmp.gt.f32.partialorder %v580, 0.0
    %vm1474 = vcmp.gt.f32.partialorder %v771, 0.0
    %vm1475 = vcmp.gt.f32.partialorder %v773, 0.0
    %vm1476 = vcmp.gt.f32.partialorder %v582, 0.0
    %vm1477 = vcmp.gt.f32.partialorder %v584, 0.0
    %vm1478 = vcmp.gt.f32.partialorder %v775, 0.0
    %vm1479 = vcmp.gt.f32.partialorder %v777, 0.0
    %vm1480 = vcmp.gt.f32.partialorder %v588, 0.0
    %vm1481 = vcmp.gt.f32.partialorder %v590, 0.0
    %vm1482 = vcmp.gt.f32.partialorder %v781, 0.0
    %vm1483 = vcmp.gt.f32.partialorder %v783, 0.0
    %vm1484 = vcmp.gt.f32.partialorder %v592, 0.0
    %vm1485 = vcmp.gt.f32.partialorder %v594, 0.0
    %vm1486 = vcmp.gt.f32.partialorder %v785, 0.0
    %vm1487 = vcmp.gt.f32.partialorder %v787, 0.0
    %vm1488 = vcmp.gt.f32.partialorder %v598, 0.0
    %vm1489 = vcmp.gt.f32.partialorder %v600, 0.0
    %vm1490 = vcmp.gt.f32.partialorder %v791, 0.0
    %vm1491 = vcmp.gt.f32.partialorder %v793, 0.0
    %vm1492 = vcmp.gt.f32.partialorder %v602, 0.0
    %vm1493 = vcmp.gt.f32.partialorder %v604, 0.0
    %vm1494 = vcmp.gt.f32.partialorder %v795, 0.0
    %vm1495 = vcmp.gt.f32.partialorder %v797, 0.0
    %vm1496 = vcmp.gt.f32.partialorder %v608, 0.0
    %vm1497 = vcmp.gt.f32.partialorder %v610, 0.0
    %vm1498 = vcmp.gt.f32.partialorder %v801, 0.0
    %vm1499 = vcmp.gt.f32.partialorder %v803, 0.0
    %vm1500 = vcmp.gt.f32.partialorder %v612, 0.0
    %vm1501 = vcmp.gt.f32.partialorder %v614, 0.0
    %vm1502 = vcmp.gt.f32.partialorder %v805, 0.0
    %vm1503 = vcmp.gt.f32.partialorder %v807, 0.0
    %vm1504 = vcmp.gt.f32.partialorder %v618, 0.0
    %vm1505 = vcmp.gt.f32.partialorder %v620, 0.0
    %vm1506 = vcmp.gt.f32.partialorder %v811, 0.0
    %vm1507 = vcmp.gt.f32.partialorder %v813, 0.0
    %vm1508 = vcmp.gt.f32.partialorder %v622, 0.0
    %vm1509 = vcmp.gt.f32.partialorder %v624, 0.0
    %vm1510 = vcmp.gt.f32.partialorder %v815, 0.0
    %vm1511 = vcmp.gt.f32.partialorder %v817, 0.0
    %vm1512 = vcmp.gt.f32.partialorder %v628, 0.0
    %vm1513 = vcmp.gt.f32.partialorder %v630, 0.0
    %vm1514 = vcmp.gt.f32.partialorder %v821, 0.0
    %vm1515 = vcmp.gt.f32.partialorder %v823, 0.0
    %vm1516 = vcmp.gt.f32.partialorder %v632, 0.0
    %vm1517 = vcmp.gt.f32.partialorder %v634, 0.0
    %vm1518 = vcmp.gt.f32.partialorder %v825, 0.0
    %vm1519 = vcmp.gt.f32.partialorder %v827, 0.0
    %vm1520 = vcmp.gt.f32.partialorder %v638, 0.0
    %vm1521 = vcmp.gt.f32.partialorder %v640, 0.0
    %vm1522 = vcmp.gt.f32.partialorder %v831, 0.0
    %vm1523 = vcmp.gt.f32.partialorder %v833, 0.0
    %vm1524 = vcmp.gt.f32.partialorder %v642, 0.0
    %vm1525 = vcmp.gt.f32.partialorder %v644, 0.0
    %vm1526 = vcmp.gt.f32.partialorder %v835, 0.0
    %vm1527 = vcmp.gt.f32.partialorder %v837, 0.0
    %vm1528 = vcmp.gt.f32.partialorder %v648, 0.0
    %vm1529 = vcmp.gt.f32.partialorder %v650, 0.0
    %vm1530 = vcmp.gt.f32.partialorder %v841, 0.0
    %vm1531 = vcmp.gt.f32.partialorder %v843, 0.0
    %vm1532 = vcmp.gt.f32.partialorder %v652, 0.0
    %vm1533 = vcmp.gt.f32.partialorder %v654, 0.0
    %vm1534 = vcmp.gt.f32.partialorder %v845, 0.0
    %vm1535 = vcmp.gt.f32.partialorder %v847, 0.0
    %vm1536 = vcmp.gt.f32.partialorder %v658, 0.0
    %vm1537 = vcmp.gt.f32.partialorder %v660, 0.0
    %vm1538 = vcmp.gt.f32.partialorder %v851, 0.0
    %vm1539 = vcmp.gt.f32.partialorder %v853, 0.0
    %vm1540 = vcmp.gt.f32.partialorder %v662, 0.0
    %vm1541 = vcmp.gt.f32.partialorder %v664, 0.0
    %vm1542 = vcmp.gt.f32.partialorder %v855, 0.0
    %vm1543 = vcmp.gt.f32.partialorder %v857, 0.0
    %vm1544 = vcmp.gt.f32.partialorder %v668, 0.0
    %vm1545 = vcmp.gt.f32.partialorder %v670, 0.0
    %vm1546 = vcmp.gt.f32.partialorder %v861, 0.0
    %vm1547 = vcmp.gt.f32.partialorder %v863, 0.0
    %vm1548 = vcmp.gt.f32.partialorder %v672, 0.0
    %vm1549 = vcmp.gt.f32.partialorder %v674, 0.0
    %vm1550 = vcmp.gt.f32.partialorder %v865, 0.0
    %vm1551 = vcmp.gt.f32.partialorder %v867, 0.0
    %vm1552 = vcmp.gt.f32.partialorder %v678, 0.0
    %vm1553 = vcmp.gt.f32.partialorder %v680, 0.0
    %vm1554 = vcmp.gt.f32.partialorder %v871, 0.0
    %vm1555 = vcmp.gt.f32.partialorder %v873, 0.0
    %vm1556 = vcmp.gt.f32.partialorder %v682, 0.0
    %vm1557 = vcmp.gt.f32.partialorder %v684, 0.0
    %vm1558 = vcmp.gt.f32.partialorder %v875, 0.0
    %vm1559 = vcmp.gt.f32.partialorder %v877, 0.0
    %vm1560 = vcmp.gt.f32.partialorder %v688, 0.0
    %vm1561 = vcmp.gt.f32.partialorder %v690, 0.0
    %vm1562 = vcmp.gt.f32.partialorder %v881, 0.0
    %vm1563 = vcmp.gt.f32.partialorder %v883, 0.0
    %vm1564 = vcmp.gt.f32.partialorder %v692, 0.0
    %vm1565 = vcmp.gt.f32.partialorder %v694, 0.0
    %vm1566 = vcmp.gt.f32.partialorder %v885, 0.0
    %vm1567 = vcmp.gt.f32.partialorder %v887, 0.0
    %vm1568 = vcmp.gt.f32.partialorder %v698, 0.0
    %vm1569 = vcmp.gt.f32.partialorder %v700, 0.0
    %vm1570 = vcmp.gt.f32.partialorder %v891, 0.0
    %vm1571 = vcmp.gt.f32.partialorder %v893, 0.0
    %vm1572 = vcmp.gt.f32.partialorder %v702, 0.0
    %vm1573 = vcmp.gt.f32.partialorder %v704, 0.0
    %vm1574 = vcmp.gt.f32.partialorder %v895, 0.0
    %vm1575 = vcmp.gt.f32.partialorder %v897, 0.0
    %vm1576 = vcmp.gt.f32.partialorder %v708, 0.0
    %vm1577 = vcmp.gt.f32.partialorder %v710, 0.0
    %vm1578 = vcmp.gt.f32.partialorder %v901, 0.0
    %vm1579 = vcmp.gt.f32.partialorder %v903, 0.0
    %vm1580 = vcmp.gt.f32.partialorder %v712, 0.0
    %vm1581 = vcmp.gt.f32.partialorder %v714, 0.0
    %vm1582 = vcmp.gt.f32.partialorder %v905, 0.0
    %vm1583 = vcmp.gt.f32.partialorder %v907, 0.0
    %v1584 = vmul.f32 %v558, 0.01
    %v1585 = vmul.f32 %v560, 0.01
    %v1586 = vmul.f32 %v751, 0.01
    %v1587 = vmul.f32 %v753, 0.01
    %v1588 = vmul.f32 %v562, 0.01
    %v1589 = vmul.f32 %v564, 0.01
    %v1590 = vmul.f32 %v755, 0.01
    %v1591 = vmul.f32 %v757, 0.01
    %v1592 = vmul.f32 %v568, 0.01
    %v1593 = vmul.f32 %v570, 0.01
    %v1594 = vmul.f32 %v761, 0.01
    %v1595 = vmul.f32 %v763, 0.01
    %v1596 = vmul.f32 %v572, 0.01
    %v1597 = vmul.f32 %v574, 0.01
    %v1598 = vmul.f32 %v765, 0.01
    %v1599 = vmul.f32 %v767, 0.01
    %v1600 = vmul.f32 %v578, 0.01
    %v1601 = vmul.f32 %v580, 0.01
    %v1602 = vmul.f32 %v771, 0.01
    %v1603 = vmul.f32 %v773, 0.01
    %v1604 = vmul.f32 %v582, 0.01
    %v1605 = vmul.f32 %v584, 0.01
    %v1606 = vmul.f32 %v775, 0.01
    %v1607 = vmul.f32 %v777, 0.01
    %v1608 = vmul.f32 %v588, 0.01
    %v1609 = vmul.f32 %v590, 0.01
    %v1610 = vmul.f32 %v781, 0.01
    %v1611 = vmul.f32 %v783, 0.01
    %v1612 = vmul.f32 %v592, 0.01
    %v1613 = vmul.f32 %v594, 0.01
    %v1614 = vmul.f32 %v785, 0.01
    %v1615 = vmul.f32 %v787, 0.01
    %v1616 = vmul.f32 %v598, 0.01
    %v1617 = vmul.f32 %v600, 0.01
    %v1618 = vmul.f32 %v791, 0.01
    %v1619 = vmul.f32 %v793, 0.01
    %v1620 = vmul.f32 %v602, 0.01
    %v1621 = vmul.f32 %v604, 0.01
    %v1622 = vmul.f32 %v795, 0.01
    %v1623 = vmul.f32 %v797, 0.01
    %v1624 = vmul.f32 %v608, 0.01
    %v1625 = vmul.f32 %v610, 0.01
    %v1626 = vmul.f32 %v801, 0.01
    %v1627 = vmul.f32 %v803, 0.01
    %v1628 = vmul.f32 %v612, 0.01
    %v1629 = vmul.f32 %v614, 0.01
    %v1630 = vmul.f32 %v805, 0.01
    %v1631 = vmul.f32 %v807, 0.01
    %v1632 = vmul.f32 %v618, 0.01
    %v1633 = vmul.f32 %v620, 0.01
    %v1634 = vmul.f32 %v811, 0.01
    %v1635 = vmul.f32 %v813, 0.01
    %v1636 = vmul.f32 %v622, 0.01
    %v1637 = vmul.f32 %v624, 0.01
    %v1638 = vmul.f32 %v815, 0.01
    %v1639 = vmul.f32 %v817, 0.01
    %v1640 = vmul.f32 %v628, 0.01
    %v1641 = vmul.f32 %v630, 0.01
    %v1642 = vmul.f32 %v821, 0.01
    %v1643 = vmul.f32 %v823, 0.01
    %v1644 = vmul.f32 %v632, 0.01
    %v1645 = vmul.f32 %v634, 0.01
    %v1646 = vmul.f32 %v825, 0.01
    %v1647 = vmul.f32 %v827, 0.01
    %v1648 = vmul.f32 %v638, 0.01
    %v1649 = vmul.f32 %v640, 0.01
    %v1650 = vmul.f32 %v831, 0.01
    %v1651 = vmul.f32 %v833, 0.01
    %v1652 = vmul.f32 %v642, 0.01
    %v1653 = vmul.f32 %v644, 0.01
    %v1654 = vmul.f32 %v835, 0.01
    %v1655 = vmul.f32 %v837, 0.01
    %v1656 = vmul.f32 %v648, 0.01
    %v1657 = vmul.f32 %v650, 0.01
    %v1658 = vmul.f32 %v841, 0.01
    %v1659 = vmul.f32 %v843, 0.01
    %v1660 = vmul.f32 %v652, 0.01
    %v1661 = vmul.f32 %v654, 0.01
    %v1662 = vmul.f32 %v845, 0.01
    %v1663 = vmul.f32 %v847, 0.01
    %v1664 = vmul.f32 %v658, 0.01
    %v1665 = vmul.f32 %v660, 0.01
    %v1666 = vmul.f32 %v851, 0.01
    %v1667 = vmul.f32 %v853, 0.01
    %v1668 = vmul.f32 %v662, 0.01
    %v1669 = vmul.f32 %v664, 0.01
    %v1670 = vmul.f32 %v855, 0.01
    %v1671 = vmul.f32 %v857, 0.01
    %v1672 = vmul.f32 %v668, 0.01
    %v1673 = vmul.f32 %v670, 0.01
    %v1674 = vmul.f32 %v861, 0.01
    %v1675 = vmul.f32 %v863, 0.01
    %v1676 = vmul.f32 %v672, 0.01
    %v1677 = vmul.f32 %v674, 0.01
    %v1678 = vmul.f32 %v865, 0.01
    %v1679 = vmul.f32 %v867, 0.01
    %v1680 = vmul.f32 %v678, 0.01
    %v1681 = vmul.f32 %v680, 0.01
    %v1682 = vmul.f32 %v871, 0.01
    %v1683 = vmul.f32 %v873, 0.01
    %v1684 = vmul.f32 %v682, 0.01
    %v1685 = vmul.f32 %v684, 0.01
    %v1686 = vmul.f32 %v875, 0.01
    %v1687 = vmul.f32 %v877, 0.01
    %v1688 = vmul.f32 %v688, 0.01
    %v1689 = vmul.f32 %v690, 0.01
    %v1690 = vmul.f32 %v881, 0.01
    %v1691 = vmul.f32 %v883, 0.01
    %v1692 = vmul.f32 %v692, 0.01
    %v1693 = vmul.f32 %v694, 0.01
    %v1694 = vmul.f32 %v885, 0.01
    %v1695 = vmul.f32 %v887, 0.01
    %v1696 = vmul.f32 %v698, 0.01
    %v1697 = vmul.f32 %v700, 0.01
    %v1698 = vmul.f32 %v891, 0.01
    %v1699 = vmul.f32 %v893, 0.01
    %v1700 = vmul.f32 %v702, 0.01
    %v1701 = vmul.f32 %v704, 0.01
    %v1702 = vmul.f32 %v895, 0.01
    %v1703 = vmul.f32 %v897, 0.01
    %v1704 = vmul.f32 %v708, 0.01
    %v1705 = vmul.f32 %v710, 0.01
    %v1706 = vmul.f32 %v901, 0.01
    %v1707 = vmul.f32 %v903, 0.01
    %v1708 = vmul.f32 %v712, 0.01
    %v1709 = vmul.f32 %v714, 0.01
    %v1710 = vmul.f32 %v905, 0.01
    %v1711 = vmul.f32 %v907, 0.01
    %v1712 = vsel %vm1456, %v558, %v1584
    %v1713 = vsel %vm1457, %v560, %v1585
    %v1714 = vsel %vm1458, %v751, %v1586
    %v1715 = vsel %vm1459, %v753, %v1587
    %v1716 = vsel %vm1460, %v562, %v1588
    %v1717 = vsel %vm1461, %v564, %v1589
    %v1718 = vsel %vm1462, %v755, %v1590
    %v1719 = vsel %vm1463, %v757, %v1591
    %v1720 = vsel %vm1464, %v568, %v1592
    %v1721 = vsel %vm1465, %v570, %v1593
    %v1722 = vsel %vm1466, %v761, %v1594
    %v1723 = vsel %vm1467, %v763, %v1595
    %v1724 = vsel %vm1468, %v572, %v1596
    %v1725 = vsel %vm1469, %v574, %v1597
    %v1726 = vsel %vm1470, %v765, %v1598
    %v1727 = vsel %vm1471, %v767, %v1599
    %v1728 = vsel %vm1472, %v578, %v1600
    %v1729 = vsel %vm1473, %v580, %v1601
    %v1730 = vsel %vm1474, %v771, %v1602
    %v1731 = vsel %vm1475, %v773, %v1603
    %v1732 = vsel %vm1476, %v582, %v1604
    %v1733 = vsel %vm1477, %v584, %v1605
    %v1734 = vsel %vm1478, %v775, %v1606
    %v1735 = vsel %vm1479, %v777, %v1607
    %v1736 = vsel %vm1480, %v588, %v1608
    %v1737 = vsel %vm1481, %v590, %v1609
    %v1738 = vsel %vm1482, %v781, %v1610
    %v1739 = vsel %vm1483, %v783, %v1611
    %v1740 = vsel %vm1484, %v592, %v1612
    %v1741 = vsel %vm1485, %v594, %v1613
    %v1742 = vsel %vm1486, %v785, %v1614
    %v1743 = vsel %vm1487, %v787, %v1615
    %v1744 = vsel %vm1488, %v598, %v1616
    %v1745 = vsel %vm1489, %v600, %v1617
    %v1746 = vsel %vm1490, %v791, %v1618
    %v1747 = vsel %vm1491, %v793, %v1619
    %v1748 = vsel %vm1492, %v602, %v1620
    %v1749 = vsel %vm1493, %v604, %v1621
    %v1750 = vsel %vm1494, %v795, %v1622
    %v1751 = vsel %vm1495, %v797, %v1623
    %v1752 = vsel %vm1496, %v608, %v1624
    %v1753 = vsel %vm1497, %v610, %v1625
    %v1754 = vsel %vm1498, %v801, %v1626
    %v1755 = vsel %vm1499, %v803, %v1627
    %v1756 = vsel %vm1500, %v612, %v1628
    %v1757 = vsel %vm1501, %v614, %v1629
    %v1758 = vsel %vm1502, %v805, %v1630
    %v1759 = vsel %vm1503, %v807, %v1631
    %v1760 = vsel %vm1504, %v618, %v1632
    %v1761 = vsel %vm1505, %v620, %v1633
    %v1762 = vsel %vm1506, %v811, %v1634
    %v1763 = vsel %vm1507, %v813, %v1635
    %v1764 = vsel %vm1508, %v622, %v1636
    %v1765 = vsel %vm1509, %v624, %v1637
    %v1766 = vsel %vm1510, %v815, %v1638
    %v1767 = vsel %vm1511, %v817, %v1639
    %v1768 = vsel %vm1512, %v628, %v1640
    %v1769 = vsel %vm1513, %v630, %v1641
    %v1770 = vsel %vm1514, %v821, %v1642
    %v1771 = vsel %vm1515, %v823, %v1643
    %v1772 = vsel %vm1516, %v632, %v1644
    %v1773 = vsel %vm1517, %v634, %v1645
    %v1774 = vsel %vm1518, %v825, %v1646
    %v1775 = vsel %vm1519, %v827, %v1647
    %v1776 = vsel %vm1520, %v638, %v1648
    %v1777 = vsel %vm1521, %v640, %v1649
    %v1778 = vsel %vm1522, %v831, %v1650
    %v1779 = vsel %vm1523, %v833, %v1651
    %v1780 = vsel %vm1524, %v642, %v1652
    %v1781 = vsel %vm1525, %v644, %v1653
    %v1782 = vsel %vm1526, %v835, %v1654
    %v1783 = vsel %vm1527, %v837, %v1655
    %v1784 = vsel %vm1528, %v648, %v1656
    %v1785 = vsel %vm1529, %v650, %v1657
    %v1786 = vsel %vm1530, %v841, %v1658
    %v1787 = vsel %vm1531, %v843, %v1659
    %v1788 = vsel %vm1532, %v652, %v1660
    %v1789 = vsel %vm1533, %v654, %v1661
    %v1790 = vsel %vm1534, %v845, %v1662
    %v1791 = vsel %vm1535, %v847, %v1663
    %v1792 = vsel %vm1536, %v658, %v1664
    %v1793 = vsel %vm1537, %v660, %v1665
    %v1794 = vsel %vm1538, %v851, %v1666
    %v1795 = vsel %vm1539, %v853, %v1667
    %v1796 = vsel %vm1540, %v662, %v1668
    %v1797 = vsel %vm1541, %v664, %v1669
    %v1798 = vsel %vm1542, %v855, %v1670
    %v1799 = vsel %vm1543, %v857, %v1671
    %v1800 = vsel %vm1544, %v668, %v1672
    %v1801 = vsel %vm1545, %v670, %v1673
    %v1802 = vsel %vm1546, %v861, %v1674
    %v1803 = vsel %vm1547, %v863, %v1675
    %v1804 = vsel %vm1548, %v672, %v1676
    %v1805 = vsel %vm1549, %v674, %v1677
    %v1806 = vsel %vm1550, %v865, %v1678
    %v1807 = vsel %vm1551, %v867, %v1679
    %v1808 = vsel %vm1552, %v678, %v1680
    %v1809 = vsel %vm1553, %v680, %v1681
    %v1810 = vsel %vm1554, %v871, %v1682
    %v1811 = vsel %vm1555, %v873, %v1683
    %v1812 = vsel %vm1556, %v682, %v1684
    %v1813 = vsel %vm1557, %v684, %v1685
    %v1814 = vsel %vm1558, %v875, %v1686
    %v1815 = vsel %vm1559, %v877, %v1687
    %v1816 = vsel %vm1560, %v688, %v1688
    %v1817 = vsel %vm1561, %v690, %v1689
    %v1818 = vsel %vm1562, %v881, %v1690
    %v1819 = vsel %vm1563, %v883, %v1691
    %v1820 = vsel %vm1564, %v692, %v1692
    %v1821 = vsel %vm1565, %v694, %v1693
    %v1822 = vsel %vm1566, %v885, %v1694
    %v1823 = vsel %vm1567, %v887, %v1695
    %v1824 = vsel %vm1568, %v698, %v1696
    %v1825 = vsel %vm1569, %v700, %v1697
    %v1826 = vsel %vm1570, %v891, %v1698
    %v1827 = vsel %vm1571, %v893, %v1699
    %v1828 = vsel %vm1572, %v702, %v1700
    %v1829 = vsel %vm1573, %v704, %v1701
    %v1830 = vsel %vm1574, %v895, %v1702
    %v1831 = vsel %vm1575, %v897, %v1703
    %v1832 = vsel %vm1576, %v708, %v1704
    %v1833 = vsel %vm1577, %v710, %v1705
    %v1834 = vsel %vm1578, %v901, %v1706
    %v1835 = vsel %vm1579, %v903, %v1707
    %v1836 = vsel %vm1580, %v712, %v1708
    %v1837 = vsel %vm1581, %v714, %v1709
    %v1838 = vsel %vm1582, %v905, %v1710
    %v1839 = vsel %vm1583, %v907, %v1711
    %v1840 = vpack.c.bf16 %v1716, %v1712
    %v1841 = vpack.c.bf16 %v1717, %v1713
    %v1842 = vpack.c.bf16 %v1718, %v1714
    %v1843 = vpack.c.bf16 %v1719, %v1715
    %v1844 = vpack.c.bf16 %v1724, %v1720
    %v1845 = vpack.c.bf16 %v1725, %v1721
    %v1846 = vpack.c.bf16 %v1726, %v1722
    %v1847 = vpack.c.bf16 %v1727, %v1723
    %v1848 = vpack.c.bf16 %v1732, %v1728
    %v1849 = vpack.c.bf16 %v1733, %v1729
    %v1850 = vpack.c.bf16 %v1734, %v1730
    %v1851 = vpack.c.bf16 %v1735, %v1731
    %v1852 = vpack.c.bf16 %v1740, %v1736
    %v1853 = vpack.c.bf16 %v1741, %v1737
    %v1854 = vpack.c.bf16 %v1742, %v1738
    %v1855 = vpack.c.bf16 %v1743, %v1739
    %v1856 = vpack.c.bf16 %v1748, %v1744
    %v1857 = vpack.c.bf16 %v1749, %v1745
    %v1858 = vpack.c.bf16 %v1750, %v1746
    %v1859 = vpack.c.bf16 %v1751, %v1747
    %v1860 = vpack.c.bf16 %v1756, %v1752
    %v1861 = vpack.c.bf16 %v1757, %v1753
    %v1862 = vpack.c.bf16 %v1758, %v1754
    %v1863 = vpack.c.bf16 %v1759, %v1755
    %v1864 = vpack.c.bf16 %v1764, %v1760
    %v1865 = vpack.c.bf16 %v1765, %v1761
    %v1866 = vpack.c.bf16 %v1766, %v1762
    %v1867 = vpack.c.bf16 %v1767, %v1763
    %v1868 = vpack.c.bf16 %v1772, %v1768
    %v1869 = vpack.c.bf16 %v1773, %v1769
    %v1870 = vpack.c.bf16 %v1774, %v1770
    %v1871 = vpack.c.bf16 %v1775, %v1771
    %v1872 = vpack.c.bf16 %v1780, %v1776
    %v1873 = vpack.c.bf16 %v1781, %v1777
    %v1874 = vpack.c.bf16 %v1782, %v1778
    %v1875 = vpack.c.bf16 %v1783, %v1779
    %v1876 = vpack.c.bf16 %v1788, %v1784
    %v1877 = vpack.c.bf16 %v1789, %v1785
    %v1878 = vpack.c.bf16 %v1790, %v1786
    %v1879 = vpack.c.bf16 %v1791, %v1787
    %v1880 = vpack.c.bf16 %v1796, %v1792
    %v1881 = vpack.c.bf16 %v1797, %v1793
    %v1882 = vpack.c.bf16 %v1798, %v1794
    %v1883 = vpack.c.bf16 %v1799, %v1795
    %v1884 = vpack.c.bf16 %v1804, %v1800
    %v1885 = vpack.c.bf16 %v1805, %v1801
    %v1886 = vpack.c.bf16 %v1806, %v1802
    %v1887 = vpack.c.bf16 %v1807, %v1803
    %v1888 = vpack.c.bf16 %v1812, %v1808
    %v1889 = vpack.c.bf16 %v1813, %v1809
    %v1890 = vpack.c.bf16 %v1814, %v1810
    %v1891 = vpack.c.bf16 %v1815, %v1811
    %v1892 = vpack.c.bf16 %v1820, %v1816
    %v1893 = vpack.c.bf16 %v1821, %v1817
    %v1894 = vpack.c.bf16 %v1822, %v1818
    %v1895 = vpack.c.bf16 %v1823, %v1819
    %v1896 = vpack.c.bf16 %v1828, %v1824
    %v1897 = vpack.c.bf16 %v1829, %v1825
    %v1898 = vpack.c.bf16 %v1830, %v1826
    %v1899 = vpack.c.bf16 %v1831, %v1827
    %v1900 = vpack.c.bf16 %v1836, %v1832
    %v1901 = vpack.c.bf16 %v1837, %v1833
    %v1902 = vpack.c.bf16 %v1838, %v1834
    %v1903 = vpack.c.bf16 %v1839, %v1835
    %v1904 = vld [vmem:[#allocation5] sm:$0xff]
    %v1905 = vld [vmem:[#allocation5 + $0x8] sm:$0xff]
    %v1906 = vld [vmem:[#allocation5 + $0x10] sm:$0xff]
    %v1907 = vld [vmem:[#allocation5 + $0x18] sm:$0xff]
    %v1908 = vld [vmem:[#allocation5 + $0x20] sm:$0xff]
    %v1909 = vld [vmem:[#allocation5 + $0x28] sm:$0xff]
    %v1910 = vld [vmem:[#allocation5 + $0x30] sm:$0xff]
    %v1911 = vld [vmem:[#allocation5 + $0x38] sm:$0xff]
    %v1912 = vld [vmem:[#allocation5 + $0x40] sm:$0xff]
    %v1913 = vld [vmem:[#allocation5 + $0x48] sm:$0xff]
    %v1914 = vld [vmem:[#allocation5 + $0x50] sm:$0xff]
    %v1915 = vld [vmem:[#allocation5 + $0x58] sm:$0xff]
    %v1916 = vld [vmem:[#allocation5 + $0x60] sm:$0xff]
    %v1917 = vld [vmem:[#allocation5 + $0x68] sm:$0xff]
    %v1918 = vld [vmem:[#allocation5 + $0x70] sm:$0xff]
    %v1919 = vld [vmem:[#allocation5 + $0x78] sm:$0xff]
    %v1920 = vld [vmem:[#allocation5 + $0x80] sm:$0xff]
    %v1921 = vld [vmem:[#allocation5 + $0x88] sm:$0xff]
    %v1922 = vld [vmem:[#allocation5 + $0x90] sm:$0xff]
    %v1923 = vld [vmem:[#allocation5 + $0x98] sm:$0xff]
    %v1924 = vld [vmem:[#allocation5 + $0xa0] sm:$0xff]
    %v1925 = vld [vmem:[#allocation5 + $0xa8] sm:$0xff]
    %v1926 = vld [vmem:[#allocation5 + $0xb0] sm:$0xff]
    %v1927 = vld [vmem:[#allocation5 + $0xb8] sm:$0xff]
    %v1928 = vld [vmem:[#allocation5 + $0xc0] sm:$0xff]
    %v1929 = vld [vmem:[#allocation5 + $0xc8] sm:$0xff]
    %v1930 = vld [vmem:[#allocation5 + $0xd0] sm:$0xff]
    %v1931 = vld [vmem:[#allocation5 + $0xd8] sm:$0xff]
    %v1932 = vld [vmem:[#allocation5 + $0xe0] sm:$0xff]
    %v1933 = vld [vmem:[#allocation5 + $0xe8] sm:$0xff]
    %v1934 = vld [vmem:[#allocation5 + $0xf0] sm:$0xff]
    %v1935 = vld [vmem:[#allocation5 + $0xf8] sm:$0xff]
    %v1936 = vld [vmem:[#allocation5 + $0x100] sm:$0xff]
    %v1937 = vld [vmem:[#allocation5 + $0x108] sm:$0xff]
    %v1938 = vld [vmem:[#allocation5 + $0x110] sm:$0xff]
    %v1939 = vld [vmem:[#allocation5 + $0x118] sm:$0xff]
    %v1940 = vld [vmem:[#allocation5 + $0x120] sm:$0xff]
    %v1941 = vld [vmem:[#allocation5 + $0x128] sm:$0xff]
    %v1942 = vld [vmem:[#allocation5 + $0x130] sm:$0xff]
    %v1943 = vld [vmem:[#allocation5 + $0x138] sm:$0xff]
    %v1944 = vld [vmem:[#allocation5 + $0x140] sm:$0xff]
    %v1945 = vld [vmem:[#allocation5 + $0x148] sm:$0xff]
    %v1946 = vld [vmem:[#allocation5 + $0x150] sm:$0xff]
    %v1947 = vld [vmem:[#allocation5 + $0x158] sm:$0xff]
    %v1948 = vld [vmem:[#allocation5 + $0x160] sm:$0xff]
    %v1949 = vld [vmem:[#allocation5 + $0x168] sm:$0xff]
    %v1950 = vld [vmem:[#allocation5 + $0x170] sm:$0xff]
    %v1951 = vld [vmem:[#allocation5 + $0x178] sm:$0xff]
    %v1952 = vld [vmem:[#allocation5 + $0x180] sm:$0xff]
    %v1953 = vld [vmem:[#allocation5 + $0x188] sm:$0xff]
    %v1954 = vld [vmem:[#allocation5 + $0x190] sm:$0xff]
    %v1955 = vld [vmem:[#allocation5 + $0x198] sm:$0xff]
    %v1956 = vld [vmem:[#allocation5 + $0x1a0] sm:$0xff]
    %v1957 = vld [vmem:[#allocation5 + $0x1a8] sm:$0xff]
    %v1958 = vld [vmem:[#allocation5 + $0x1b0] sm:$0xff]
    %v1959 = vld [vmem:[#allocation5 + $0x1b8] sm:$0xff]
    %v1960 = vld [vmem:[#allocation5 + $0x1c0] sm:$0xff]
    %v1961 = vld [vmem:[#allocation5 + $0x1c8] sm:$0xff]
    %v1962 = vld [vmem:[#allocation5 + $0x1d0] sm:$0xff]
    %v1963 = vld [vmem:[#allocation5 + $0x1d8] sm:$0xff]
    %v1964 = vld [vmem:[#allocation5 + $0x1e0] sm:$0xff]
    %v1965 = vld [vmem:[#allocation5 + $0x1e8] sm:$0xff]
    %v1966 = vld [vmem:[#allocation5 + $0x1f0] sm:$0xff]
    %v1967 = vld [vmem:[#allocation5 + $0x1f8] sm:$0xff]
    %v2032 = vunpack.c.l.b16 %v1904
    %v2033 = vunpack.c.h.b16 %v1904
    %v2034 = vunpack.c.l.b16 %v1905
    %v2035 = vunpack.c.h.b16 %v1905
    %v2036 = vunpack.c.l.b16 %v1906
    %v2037 = vunpack.c.h.b16 %v1906
    %v2038 = vunpack.c.l.b16 %v1907
    %v2039 = vunpack.c.h.b16 %v1907
    %v2040 = vunpack.c.l.b16 %v1908
    %v2041 = vunpack.c.h.b16 %v1908
    %v2042 = vunpack.c.l.b16 %v1909
    %v2043 = vunpack.c.h.b16 %v1909
    %v2044 = vunpack.c.l.b16 %v1910
    %v2045 = vunpack.c.h.b16 %v1910
    %v2046 = vunpack.c.l.b16 %v1911
    %v2047 = vunpack.c.h.b16 %v1911
    %v2048 = vunpack.c.l.b16 %v1912
    %v2049 = vunpack.c.h.b16 %v1912
    %v2050 = vunpack.c.l.b16 %v1913
    %v2051 = vunpack.c.h.b16 %v1913
    %v2052 = vunpack.c.l.b16 %v1914
    %v2053 = vunpack.c.h.b16 %v1914
    %v2054 = vunpack.c.l.b16 %v1915
    %v2055 = vunpack.c.h.b16 %v1915
    %v2056 = vunpack.c.l.b16 %v1916
    %v2057 = vunpack.c.h.b16 %v1916
    %v2058 = vunpack.c.l.b16 %v1917
    %v2059 = vunpack.c.h.b16 %v1917
    %v2060 = vunpack.c.l.b16 %v1918
    %v2061 = vunpack.c.h.b16 %v1918
    %v2062 = vunpack.c.l.b16 %v1919
    %v2063 = vunpack.c.h.b16 %v1919
    %v2064 = vunpack.c.l.b16 %v1920
    %v2065 = vunpack.c.h.b16 %v1920
    %v2066 = vunpack.c.l.b16 %v1921
    %v2067 = vunpack.c.h.b16 %v1921
    %v2068 = vunpack.c.l.b16 %v1922
    %v2069 = vunpack.c.h.b16 %v1922
    %v2070 = vunpack.c.l.b16 %v1923
    %v2071 = vunpack.c.h.b16 %v1923
    %v2072 = vunpack.c.l.b16 %v1924
    %v2073 = vunpack.c.h.b16 %v1924
    %v2074 = vunpack.c.l.b16 %v1925
    %v2075 = vunpack.c.h.b16 %v1925
    %v2076 = vunpack.c.l.b16 %v1926
    %v2077 = vunpack.c.h.b16 %v1926
    %v2078 = vunpack.c.l.b16 %v1927
    %v2079 = vunpack.c.h.b16 %v1927
    %v2080 = vunpack.c.l.b16 %v1928
    %v2081 = vunpack.c.h.b16 %v1928
    %v2082 = vunpack.c.l.b16 %v1929
    %v2083 = vunpack.c.h.b16 %v1929
    %v2084 = vunpack.c.l.b16 %v1930
    %v2085 = vunpack.c.h.b16 %v1930
    %v2086 = vunpack.c.l.b16 %v1931
    %v2087 = vunpack.c.h.b16 %v1931
    %v2088 = vunpack.c.l.b16 %v1932
    %v2089 = vunpack.c.h.b16 %v1932
    %v2090 = vunpack.c.l.b16 %v1933
    %v2091 = vunpack.c.h.b16 %v1933
    %v2092 = vunpack.c.l.b16 %v1934
    %v2093 = vunpack.c.h.b16 %v1934
    %v2094 = vunpack.c.l.b16 %v1935
    %v2095 = vunpack.c.h.b16 %v1935
    %v2096 = vunpack.c.l.b16 %v1936
    %v2097 = vunpack.c.h.b16 %v1936
    %v2098 = vunpack.c.l.b16 %v1937
    %v2099 = vunpack.c.h.b16 %v1937
    %v2100 = vunpack.c.l.b16 %v1938
    %v2101 = vunpack.c.h.b16 %v1938
    %v2102 = vunpack.c.l.b16 %v1939
    %v2103 = vunpack.c.h.b16 %v1939
    %v2104 = vunpack.c.l.b16 %v1940
    %v2105 = vunpack.c.h.b16 %v1940
    %v2106 = vunpack.c.l.b16 %v1941
    %v2107 = vunpack.c.h.b16 %v1941
    %v2108 = vunpack.c.l.b16 %v1942
    %v2109 = vunpack.c.h.b16 %v1942
    %v2110 = vunpack.c.l.b16 %v1943
    %v2111 = vunpack.c.h.b16 %v1943
    %v2112 = vunpack.c.l.b16 %v1944
    %v2113 = vunpack.c.h.b16 %v1944
    %v2114 = vunpack.c.l.b16 %v1945
    %v2115 = vunpack.c.h.b16 %v1945
    %v2116 = vunpack.c.l.b16 %v1946
    %v2117 = vunpack.c.h.b16 %v1946
    %v2118 = vunpack.c.l.b16 %v1947
    %v2119 = vunpack.c.h.b16 %v1947
    %v2120 = vunpack.c.l.b16 %v1948
    %v2121 = vunpack.c.h.b16 %v1948
    %v2122 = vunpack.c.l.b16 %v1949
    %v2123 = vunpack.c.h.b16 %v1949
    %v2124 = vunpack.c.l.b16 %v1950
    %v2125 = vunpack.c.h.b16 %v1950
    %v2126 = vunpack.c.l.b16 %v1951
    %v2127 = vunpack.c.h.b16 %v1951
    %v2128 = vunpack.c.l.b16 %v1952
    %v2129 = vunpack.c.h.b16 %v1952
    %v2130 = vunpack.c.l.b16 %v1953
    %v2131 = vunpack.c.h.b16 %v1953
    %v2132 = vunpack.c.l.b16 %v1954
    %v2133 = vunpack.c.h.b16 %v1954
    %v2134 = vunpack.c.l.b16 %v1955
    %v2135 = vunpack.c.h.b16 %v1955
    %v2136 = vunpack.c.l.b16 %v1956
    %v2137 = vunpack.c.h.b16 %v1956
    %v2138 = vunpack.c.l.b16 %v1957
    %v2139 = vunpack.c.h.b16 %v1957
    %v2140 = vunpack.c.l.b16 %v1958
    %v2141 = vunpack.c.h.b16 %v1958
    %v2142 = vunpack.c.l.b16 %v1959
    %v2143 = vunpack.c.h.b16 %v1959
    %v2144 = vunpack.c.l.b16 %v1960
    %v2145 = vunpack.c.h.b16 %v1960
    %v2146 = vunpack.c.l.b16 %v1961
    %v2147 = vunpack.c.h.b16 %v1961
    %v2148 = vunpack.c.l.b16 %v1962
    %v2149 = vunpack.c.h.b16 %v1962
    %v2150 = vunpack.c.l.b16 %v1963
    %v2151 = vunpack.c.h.b16 %v1963
    %v2152 = vunpack.c.l.b16 %v1964
    %v2153 = vunpack.c.h.b16 %v1964
    %v2154 = vunpack.c.l.b16 %v1965
    %v2155 = vunpack.c.h.b16 %v1965
    %v2156 = vunpack.c.l.b16 %v1966
    %v2157 = vunpack.c.h.b16 %v1966
    %v2158 = vunpack.c.l.b16 %v1967
    %v2159 = vunpack.c.h.b16 %v1967
    %v2160 = vpack.c.b16 %v2034, %v2032
    %v2161 = vpack.c.b16 %v2035, %v2033
    %v2162 = vpack.c.b16 %v2038, %v2036
    %v2163 = vpack.c.b16 %v2039, %v2037
    %v2164 = vpack.c.b16 %v2042, %v2040
    %v2165 = vpack.c.b16 %v2043, %v2041
    %v2166 = vpack.c.b16 %v2046, %v2044
    %v2167 = vpack.c.b16 %v2047, %v2045
    %v2168 = vpack.c.b16 %v2050, %v2048
    %v2169 = vpack.c.b16 %v2051, %v2049
    %v2170 = vpack.c.b16 %v2054, %v2052
    %v2171 = vpack.c.b16 %v2055, %v2053
    %v2172 = vpack.c.b16 %v2058, %v2056
    %v2173 = vpack.c.b16 %v2059, %v2057
    %v2174 = vpack.c.b16 %v2062, %v2060
    %v2175 = vpack.c.b16 %v2063, %v2061
    %v2176 = vpack.c.b16 %v2066, %v2064
    %v2177 = vpack.c.b16 %v2067, %v2065
    %v2178 = vpack.c.b16 %v2070, %v2068
    %v2179 = vpack.c.b16 %v2071, %v2069
    %v2180 = vpack.c.b16 %v2074, %v2072
    %v2181 = vpack.c.b16 %v2075, %v2073
    %v2182 = vpack.c.b16 %v2078, %v2076
    %v2183 = vpack.c.b16 %v2079, %v2077
    %v2184 = vpack.c.b16 %v2082, %v2080
    %v2185 = vpack.c.b16 %v2083, %v2081
    %v2186 = vpack.c.b16 %v2086, %v2084
    %v2187 = vpack.c.b16 %v2087, %v2085
    %v2188 = vpack.c.b16 %v2090, %v2088
    %v2189 = vpack.c.b16 %v2091, %v2089
    %v2190 = vpack.c.b16 %v2094, %v2092
    %v2191 = vpack.c.b16 %v2095, %v2093
    %v2192 = vpack.c.b16 %v2098, %v2096
    %v2193 = vpack.c.b16 %v2099, %v2097
    %v2194 = vpack.c.b16 %v2102, %v2100
    %v2195 = vpack.c.b16 %v2103, %v2101
    %v2196 = vpack.c.b16 %v2106, %v2104
    %v2197 = vpack.c.b16 %v2107, %v2105
    %v2198 = vpack.c.b16 %v2110, %v2108
    %v2199 = vpack.c.b16 %v2111, %v2109
    %v2200 = vpack.c.b16 %v2114, %v2112
    %v2201 = vpack.c.b16 %v2115, %v2113
    %v2202 = vpack.c.b16 %v2118, %v2116
    %v2203 = vpack.c.b16 %v2119, %v2117
    %v2204 = vpack.c.b16 %v2122, %v2120
    %v2205 = vpack.c.b16 %v2123, %v2121
    %v2206 = vpack.c.b16 %v2126, %v2124
    %v2207 = vpack.c.b16 %v2127, %v2125
    %v2208 = vpack.c.b16 %v2130, %v2128
    %v2209 = vpack.c.b16 %v2131, %v2129
    %v2210 = vpack.c.b16 %v2134, %v2132
    %v2211 = vpack.c.b16 %v2135, %v2133
    %v2212 = vpack.c.b16 %v2138, %v2136
    %v2213 = vpack.c.b16 %v2139, %v2137
    %v2214 = vpack.c.b16 %v2142, %v2140
    %v2215 = vpack.c.b16 %v2143, %v2141
    %v2216 = vpack.c.b16 %v2146, %v2144
    %v2217 = vpack.c.b16 %v2147, %v2145
    %v2218 = vpack.c.b16 %v2150, %v2148
    %v2219 = vpack.c.b16 %v2151, %v2149
    %v2220 = vpack.c.b16 %v2154, %v2152
    %v2221 = vpack.c.b16 %v2155, %v2153
    %v2222 = vpack.c.b16 %v2158, %v2156
    %v2223 = vpack.c.b16 %v2159, %v2157
    %2288 = vmatprep.subr.bf16.mxu0 %v2161
    %2289 = vmatpush1.bf16.msra.mxu0 %v2160
    %2290 = vmatprep.subr.bf16.mxu0 %v2163
    %2291 = vmatpush1.bf16.msra.mxu0 %v2162
    %2292 = vmatprep.subr.bf16.mxu0 %v2165
    %2293 = vmatpush1.bf16.msra.mxu0 %v2164
    %2294 = vmatprep.subr.bf16.mxu0 %v2167
    %2295 = vmatpush1.bf16.msra.mxu0 %v2166
    %2296 = vmatprep.subr.bf16.mxu0 %v2169
    %2297 = vmatpush1.bf16.msra.mxu0 %v2168
    %2298 = vmatprep.subr.bf16.mxu0 %v2171
    %2299 = vmatpush1.bf16.msra.mxu0 %v2170
    %2300 = vmatprep.subr.bf16.mxu0 %v2173
    %2301 = vmatpush1.bf16.msra.mxu0 %v2172
    %2302 = vmatprep.subr.bf16.mxu0 %v2175
    %2303 = vmatpush1.bf16.msra.mxu0 %v2174
    %2304 = vmatprep.subr.bf16.mxu0 %v2177
    %2305 = vmatpush1.bf16.msra.mxu0 %v2176
    %2306 = vmatprep.subr.bf16.mxu0 %v2179
    %2307 = vmatpush1.bf16.msra.mxu0 %v2178
    %2308 = vmatprep.subr.bf16.mxu0 %v2181
    %2309 = vmatpush1.bf16.msra.mxu0 %v2180
    %2310 = vmatprep.subr.bf16.mxu0 %v2183
    %2311 = vmatpush1.bf16.msra.mxu0 %v2182
    %2312 = vmatprep.subr.bf16.mxu0 %v2185
    %2313 = vmatpush1.bf16.msra.mxu0 %v2184
    %2314 = vmatprep.subr.bf16.mxu0 %v2187
    %2315 = vmatpush1.bf16.msra.mxu0 %v2186
    %2316 = vmatprep.subr.bf16.mxu0 %v2189
    %2317 = vmatpush1.bf16.msra.mxu0 %v2188
    %2318 = vmatprep.subr.bf16.mxu0 %v2191
    %2319 = vmatpush1.bf16.msra.mxu0 %v2190
    %2320 = vmatprep.mubr.bf16.mxu0 %v1841
    %2321 = vmatmul.mubr.bf16.gmra.mrb[0].mxu0 %v1840
    %v2322 = vpop.f32.mrb[0].mxu0
    %v2323 = vadd.f32 %v944, %v2322
    %v2324 = vpop.f32.mrb[0].mxu0
    %v2325 = vadd.f32 %v946, %v2324
    %v2326 = vpop.f32.mrb[0].mxu0
    %v2327 = vadd.f32 %v948, %v2326
    %v2328 = vpop.f32.mrb[0].mxu0
    %v2329 = vadd.f32 %v950, %v2328
    %2330 = vmatprep.mubr.bf16.mxu0 %v1845
    %2331 = vmatmul.mubr.bf16.gmra.mrb[0].mxu0 %v1844
    %v2332 = vpop.f32.mrb[0].mxu0
    %v2333 = vadd.f32 %v954, %v2332
    %v2334 = vpop.f32.mrb[0].mxu0
    %v2335 = vadd.f32 %v956, %v2334
    %v2336 = vpop.f32.mrb[0].mxu0
    %v2337 = vadd.f32 %v958, %v2336
    %v2338 = vpop.f32.mrb[0].mxu0
    %v2339 = vadd.f32 %v960, %v2338
    %2340 = vmatprep.mubr.bf16.mxu0 %v1849
    %2341 = vmatmul.mubr.bf16.gmra.mrb[0].mxu0 %v1848
    %v2342 = vpop.f32.mrb[0].mxu0
    %v2343 = vadd.f32 %v964, %v2342
    %v2344 = vpop.f32.mrb[0].mxu0
    %v2345 = vadd.f32 %v966, %v2344
    %v2346 = vpop.f32.mrb[0].mxu0
    %v2347 = vadd.f32 %v968, %v2346
    %v2348 = vpop.f32.mrb[0].mxu0
    %v2349 = vadd.f32 %v970, %v2348
    %2350 = vmatprep.mubr.bf16.mxu0 %v1853
    %2351 = vmatmul.mubr.bf16.gmra.mrb[0].mxu0 %v1852
    %v2352 = vpop.f32.mrb[0].mxu0
    %v2353 = vadd.f32 %v974, %v2352
    %v2354 = vpop.f32.mrb[0].mxu0
    %v2355 = vadd.f32 %v976, %v2354
    %v2356 = vpop.f32.mrb[0].mxu0
    %v2357 = vadd.f32 %v978, %v2356
    %v2358 = vpop.f32.mrb[0].mxu0
    %v2359 = vadd.f32 %v980, %v2358
    %2360 = vmatprep.mubr.bf16.mxu0 %v1857
    %2361 = vmatmul.mubr.bf16.gmra.mrb[0].mxu0 %v1856
    %v2362 = vpop.f32.mrb[0].mxu0
    %v2363 = vadd.f32 %v984, %v2362
    %v2364 = vpop.f32.mrb[0].mxu0
    %v2365 = vadd.f32 %v986, %v2364
    %v2366 = vpop.f32.mrb[0].mxu0
    %v2367 = vadd.f32 %v988, %v2366
    %v2368 = vpop.f32.mrb[0].mxu0
    %v2369 = vadd.f32 %v990, %v2368
    %2370 = vmatprep.mubr.bf16.mxu0 %v1861
    %2371 = vmatmul.mubr.bf16.gmra.mrb[0].mxu0 %v1860
    %v2372 = vpop.f32.mrb[0].mxu0
    %v2373 = vadd.f32 %v994, %v2372
    %v2374 = vpop.f32.mrb[0].mxu0
    %v2375 = vadd.f32 %v996, %v2374
    %v2376 = vpop.f32.mrb[0].mxu0
    %v2377 = vadd.f32 %v998, %v2376
    %v2378 = vpop.f32.mrb[0].mxu0
    %v2379 = vadd.f32 %v1000, %v2378
    %2380 = vmatprep.mubr.bf16.mxu0 %v1865
    %2381 = vmatmul.mubr.bf16.gmra.mrb[0].mxu0 %v1864
    %v2382 = vpop.f32.mrb[0].mxu0
    %v2383 = vadd.f32 %v1004, %v2382
    %v2384 = vpop.f32.mrb[0].mxu0
    %v2385 = vadd.f32 %v1006, %v2384
    %v2386 = vpop.f32.mrb[0].mxu0
    %v2387 = vadd.f32 %v1008, %v2386
    %v2388 = vpop.f32.mrb[0].mxu0
    %v2389 = vadd.f32 %v1010, %v2388
    %2390 = vmatprep.mubr.bf16.mxu0 %v1869
    %2391 = vmatmul.mubr.bf16.gmra.mrb[0].mxu0 %v1868
    %v2392 = vpop.f32.mrb[0].mxu0
    %v2393 = vadd.f32 %v1014, %v2392
    %v2394 = vpop.f32.mrb[0].mxu0
    %v2395 = vadd.f32 %v1016, %v2394
    %v2396 = vpop.f32.mrb[0].mxu0
    %v2397 = vadd.f32 %v1018, %v2396
    %v2398 = vpop.f32.mrb[0].mxu0
    %v2399 = vadd.f32 %v1020, %v2398
    %2400 = vmatprep.mubr.bf16.mxu0 %v1873
    %2401 = vmatmul.mubr.bf16.gmra.mrb[0].mxu0 %v1872
    %v2402 = vpop.f32.mrb[0].mxu0
    %v2403 = vadd.f32 %v1024, %v2402
    %v2404 = vpop.f32.mrb[0].mxu0
    %v2405 = vadd.f32 %v1026, %v2404
    %v2406 = vpop.f32.mrb[0].mxu0
    %v2407 = vadd.f32 %v1028, %v2406
    %v2408 = vpop.f32.mrb[0].mxu0
    %v2409 = vadd.f32 %v1030, %v2408
    %2410 = vmatprep.mubr.bf16.mxu0 %v1877
    %2411 = vmatmul.mubr.bf16.gmra.mrb[0].mxu0 %v1876
    %v2412 = vpop.f32.mrb[0].mxu0
    %v2413 = vadd.f32 %v1034, %v2412
    %v2414 = vpop.f32.mrb[0].mxu0
    %v2415 = vadd.f32 %v1036, %v2414
    %v2416 = vpop.f32.mrb[0].mxu0
    %v2417 = vadd.f32 %v1038, %v2416
    %v2418 = vpop.f32.mrb[0].mxu0
    %v2419 = vadd.f32 %v1040, %v2418
    %2420 = vmatprep.mubr.bf16.mxu0 %v1881
    %2421 = vmatmul.mubr.bf16.gmra.mrb[0].mxu0 %v1880
    %v2422 = vpop.f32.mrb[0].mxu0
    %v2423 = vadd.f32 %v1044, %v2422
    %v2424 = vpop.f32.mrb[0].mxu0
    %v2425 = vadd.f32 %v1046, %v2424
    %v2426 = vpop.f32.mrb[0].mxu0
    %v2427 = vadd.f32 %v1048, %v2426
    %v2428 = vpop.f32.mrb[0].mxu0
    %v2429 = vadd.f32 %v1050, %v2428
    %2430 = vmatprep.mubr.bf16.mxu0 %v1885
    %2431 = vmatmul.mubr.bf16.gmra.mrb[0].mxu0 %v1884
    %v2432 = vpop.f32.mrb[0].mxu0
    %v2433 = vadd.f32 %v1054, %v2432
    %v2434 = vpop.f32.mrb[0].mxu0
    %v2435 = vadd.f32 %v1056, %v2434
    %v2436 = vpop.f32.mrb[0].mxu0
    %v2437 = vadd.f32 %v1058, %v2436
    %v2438 = vpop.f32.mrb[0].mxu0
    %v2439 = vadd.f32 %v1060, %v2438
    %2440 = vmatprep.mubr.bf16.mxu0 %v1889
    %2441 = vmatmul.mubr.bf16.gmra.mrb[0].mxu0 %v1888
    %v2442 = vpop.f32.mrb[0].mxu0
    %v2443 = vadd.f32 %v1064, %v2442
    %v2444 = vpop.f32.mrb[0].mxu0
    %v2445 = vadd.f32 %v1066, %v2444
    %v2446 = vpop.f32.mrb[0].mxu0
    %v2447 = vadd.f32 %v1068, %v2446
    %v2448 = vpop.f32.mrb[0].mxu0
    %v2449 = vadd.f32 %v1070, %v2448
    %2450 = vmatprep.mubr.bf16.mxu0 %v1893
    %2451 = vmatmul.mubr.bf16.gmra.mrb[0].mxu0 %v1892
    %v2452 = vpop.f32.mrb[0].mxu0
    %v2453 = vadd.f32 %v1074, %v2452
    %v2454 = vpop.f32.mrb[0].mxu0
    %v2455 = vadd.f32 %v1076, %v2454
    %v2456 = vpop.f32.mrb[0].mxu0
    %v2457 = vadd.f32 %v1078, %v2456
    %v2458 = vpop.f32.mrb[0].mxu0
    %v2459 = vadd.f32 %v1080, %v2458
    %2460 = vmatprep.mubr.bf16.mxu0 %v1897
    %2461 = vmatmul.mubr.bf16.gmra.mrb[0].mxu0 %v1896
    %v2462 = vpop.f32.mrb[0].mxu0
    %v2463 = vadd.f32 %v1084, %v2462
    %v2464 = vpop.f32.mrb[0].mxu0
    %v2465 = vadd.f32 %v1086, %v2464
    %v2466 = vpop.f32.mrb[0].mxu0
    %v2467 = vadd.f32 %v1088, %v2466
    %v2468 = vpop.f32.mrb[0].mxu0
    %v2469 = vadd.f32 %v1090, %v2468
    %2470 = vmatprep.mubr.bf16.mxu0 %v1901
    %2471 = vmatmul.mubr.bf16.gmra.mrb[0].mxu0 %v1900
    %v2472 = vpop.f32.mrb[0].mxu0
    %v2473 = vadd.f32 %v1094, %v2472
    %v2474 = vpop.f32.mrb[0].mxu0
    %v2475 = vadd.f32 %v1096, %v2474
    %v2476 = vpop.f32.mrb[0].mxu0
    %v2477 = vadd.f32 %v1098, %v2476
    %v2478 = vpop.f32.mrb[0].mxu0
    %v2479 = vadd.f32 %v1100, %v2478
    %2480 = vdwg.mxu0
    %2481 = vmatprep.subr.bf16.mxu0 %v2193
    %2482 = vmatpush1.bf16.msra.mxu0 %v2192
    %2483 = vmatprep.subr.bf16.mxu0 %v2195
    %2484 = vmatpush1.bf16.msra.mxu0 %v2194
    %2485 = vmatprep.subr.bf16.mxu0 %v2197
    %2486 = vmatpush1.bf16.msra.mxu0 %v2196
    %2487 = vmatprep.subr.bf16.mxu0 %v2199
    %2488 = vmatpush1.bf16.msra.mxu0 %v2198
    %2489 = vmatprep.subr.bf16.mxu0 %v2201
    %2490 = vmatpush1.bf16.msra.mxu0 %v2200
    %2491 = vmatprep.subr.bf16.mxu0 %v2203
    %2492 = vmatpush1.bf16.msra.mxu0 %v2202
    %2493 = vmatprep.subr.bf16.mxu0 %v2205
    %2494 = vmatpush1.bf16.msra.mxu0 %v2204
    %2495 = vmatprep.subr.bf16.mxu0 %v2207
    %2496 = vmatpush1.bf16.msra.mxu0 %v2206
    %2497 = vmatprep.subr.bf16.mxu0 %v2209
    %2498 = vmatpush1.bf16.msra.mxu0 %v2208
    %2499 = vmatprep.subr.bf16.mxu0 %v2211
    %2500 = vmatpush1.bf16.msra.mxu0 %v2210
    %2501 = vmatprep.subr.bf16.mxu0 %v2213
    %2502 = vmatpush1.bf16.msra.mxu0 %v2212
    %2503 = vmatprep.subr.bf16.mxu0 %v2215
    %2504 = vmatpush1.bf16.msra.mxu0 %v2214
    %2505 = vmatprep.subr.bf16.mxu0 %v2217
    %2506 = vmatpush1.bf16.msra.mxu0 %v2216
    %2507 = vmatprep.subr.bf16.mxu0 %v2219
    %2508 = vmatpush1.bf16.msra.mxu0 %v2218
    %2509 = vmatprep.subr.bf16.mxu0 %v2221
    %2510 = vmatpush1.bf16.msra.mxu0 %v2220
    %2511 = vmatprep.subr.bf16.mxu0 %v2223
    %2512 = vmatpush1.bf16.msra.mxu0 %v2222
    %2513 = vmatprep.mubr.bf16.mxu0 %v1843
    %2514 = vmatmul.mubr.bf16.gmra.mrb[0].mxu0 %v1842
    %v2515 = vpop.f32.mrb[0].mxu0
    %v2516 = vadd.f32 %v2323, %v2515
    %v2517 = vpop.f32.mrb[0].mxu0
    %v2518 = vadd.f32 %v2325, %v2517
    %v2519 = vpop.f32.mrb[0].mxu0
    %v2520 = vadd.f32 %v2327, %v2519
    %v2521 = vpop.f32.mrb[0].mxu0
    %v2522 = vadd.f32 %v2329, %v2521
    %2523 = vmatprep.mubr.bf16.mxu0 %v1847
    %2524 = vmatmul.mubr.bf16.gmra.mrb[0].mxu0 %v1846
    %v2525 = vpop.f32.mrb[0].mxu0
    %v2526 = vadd.f32 %v2333, %v2525
    %v2527 = vpop.f32.mrb[0].mxu0
    %v2528 = vadd.f32 %v2335, %v2527
    %v2529 = vpop.f32.mrb[0].mxu0
    %v2530 = vadd.f32 %v2337, %v2529
    %v2531 = vpop.f32.mrb[0].mxu0
    %v2532 = vadd.f32 %v2339, %v2531
    %2533 = vmatprep.mubr.bf16.mxu0 %v1851
    %2534 = vmatmul.mubr.bf16.gmra.mrb[0].mxu0 %v1850
    %v2535 = vpop.f32.mrb[0].mxu0
    %v2536 = vadd.f32 %v2343, %v2535
    %v2537 = vpop.f32.mrb[0].mxu0
    %v2538 = vadd.f32 %v2345, %v2537
    %v2539 = vpop.f32.mrb[0].mxu0
    %v2540 = vadd.f32 %v2347, %v2539
    %v2541 = vpop.f32.mrb[0].mxu0
    %v2542 = vadd.f32 %v2349, %v2541
    %2543 = vmatprep.mubr.bf16.mxu0 %v1855
    %2544 = vmatmul.mubr.bf16.gmra.mrb[0].mxu0 %v1854
    %v2545 = vpop.f32.mrb[0].mxu0
    %v2546 = vadd.f32 %v2353, %v2545
    %v2547 = vpop.f32.mrb[0].mxu0
    %v2548 = vadd.f32 %v2355, %v2547
    %v2549 = vpop.f32.mrb[0].mxu0
    %v2550 = vadd.f32 %v2357, %v2549
    %v2551 = vpop.f32.mrb[0].mxu0
    %v2552 = vadd.f32 %v2359, %v2551
    %2553 = vmatprep.mubr.bf16.mxu0 %v1859
    %2554 = vmatmul.mubr.bf16.gmra.mrb[0].mxu0 %v1858
    %v2555 = vpop.f32.mrb[0].mxu0
    %v2556 = vadd.f32 %v2363, %v2555
    %v2557 = vpop.f32.mrb[0].mxu0
    %v2558 = vadd.f32 %v2365, %v2557
    %v2559 = vpop.f32.mrb[0].mxu0
    %v2560 = vadd.f32 %v2367, %v2559
    %v2561 = vpop.f32.mrb[0].mxu0
    %v2562 = vadd.f32 %v2369, %v2561
    %2563 = vmatprep.mubr.bf16.mxu0 %v1863
    %2564 = vmatmul.mubr.bf16.gmra.mrb[0].mxu0 %v1862
    %v2565 = vpop.f32.mrb[0].mxu0
    %v2566 = vadd.f32 %v2373, %v2565
    %v2567 = vpop.f32.mrb[0].mxu0
    %v2568 = vadd.f32 %v2375, %v2567
    %v2569 = vpop.f32.mrb[0].mxu0
    %v2570 = vadd.f32 %v2377, %v2569
    %v2571 = vpop.f32.mrb[0].mxu0
    %v2572 = vadd.f32 %v2379, %v2571
    %2573 = vmatprep.mubr.bf16.mxu0 %v1867
    %2574 = vmatmul.mubr.bf16.gmra.mrb[0].mxu0 %v1866
    %v2575 = vpop.f32.mrb[0].mxu0
    %v2576 = vadd.f32 %v2383, %v2575
    %v2577 = vpop.f32.mrb[0].mxu0
    %v2578 = vadd.f32 %v2385, %v2577
    %v2579 = vpop.f32.mrb[0].mxu0
    %v2580 = vadd.f32 %v2387, %v2579
    %v2581 = vpop.f32.mrb[0].mxu0
    %v2582 = vadd.f32 %v2389, %v2581
    %2583 = vmatprep.mubr.bf16.mxu0 %v1871
    %2584 = vmatmul.mubr.bf16.gmra.mrb[0].mxu0 %v1870
    %v2585 = vpop.f32.mrb[0].mxu0
    %v2586 = vadd.f32 %v2393, %v2585
    %v2587 = vpop.f32.mrb[0].mxu0
    %v2588 = vadd.f32 %v2395, %v2587
    %v2589 = vpop.f32.mrb[0].mxu0
    %v2590 = vadd.f32 %v2397, %v2589
    %v2591 = vpop.f32.mrb[0].mxu0
    %v2592 = vadd.f32 %v2399, %v2591
    %2593 = vmatprep.mubr.bf16.mxu0 %v1875
    %2594 = vmatmul.mubr.bf16.gmra.mrb[0].mxu0 %v1874
    %v2595 = vpop.f32.mrb[0].mxu0
    %v2596 = vadd.f32 %v2403, %v2595
    %v2597 = vpop.f32.mrb[0].mxu0
    %v2598 = vadd.f32 %v2405, %v2597
    %v2599 = vpop.f32.mrb[0].mxu0
    %v2600 = vadd.f32 %v2407, %v2599
    %v2601 = vpop.f32.mrb[0].mxu0
    %v2602 = vadd.f32 %v2409, %v2601
    %2603 = vmatprep.mubr.bf16.mxu0 %v1879
    %2604 = vmatmul.mubr.bf16.gmra.mrb[0].mxu0 %v1878
    %v2605 = vpop.f32.mrb[0].mxu0
    %v2606 = vadd.f32 %v2413, %v2605
    %v2607 = vpop.f32.mrb[0].mxu0
    %v2608 = vadd.f32 %v2415, %v2607
    %v2609 = vpop.f32.mrb[0].mxu0
    %v2610 = vadd.f32 %v2417, %v2609
    %v2611 = vpop.f32.mrb[0].mxu0
    %v2612 = vadd.f32 %v2419, %v2611
    %2613 = vmatprep.mubr.bf16.mxu0 %v1883
    %2614 = vmatmul.mubr.bf16.gmra.mrb[0].mxu0 %v1882
    %v2615 = vpop.f32.mrb[0].mxu0
    %v2616 = vadd.f32 %v2423, %v2615
    %v2617 = vpop.f32.mrb[0].mxu0
    %v2618 = vadd.f32 %v2425, %v2617
    %v2619 = vpop.f32.mrb[0].mxu0
    %v2620 = vadd.f32 %v2427, %v2619
    %v2621 = vpop.f32.mrb[0].mxu0
    %v2622 = vadd.f32 %v2429, %v2621
    %2623 = vmatprep.mubr.bf16.mxu0 %v1887
    %2624 = vmatmul.mubr.bf16.gmra.mrb[0].mxu0 %v1886
    %v2625 = vpop.f32.mrb[0].mxu0
    %v2626 = vadd.f32 %v2433, %v2625
    %v2627 = vpop.f32.mrb[0].mxu0
    %v2628 = vadd.f32 %v2435, %v2627
    %v2629 = vpop.f32.mrb[0].mxu0
    %v2630 = vadd.f32 %v2437, %v2629
    %v2631 = vpop.f32.mrb[0].mxu0
    %v2632 = vadd.f32 %v2439, %v2631
    %2633 = vmatprep.mubr.bf16.mxu0 %v1891
    %2634 = vmatmul.mubr.bf16.gmra.mrb[0].mxu0 %v1890
    %v2635 = vpop.f32.mrb[0].mxu0
    %v2636 = vadd.f32 %v2443, %v2635
    %v2637 = vpop.f32.mrb[0].mxu0
    %v2638 = vadd.f32 %v2445, %v2637
    %v2639 = vpop.f32.mrb[0].mxu0
    %v2640 = vadd.f32 %v2447, %v2639
    %v2641 = vpop.f32.mrb[0].mxu0
    %v2642 = vadd.f32 %v2449, %v2641
    %2643 = vmatprep.mubr.bf16.mxu0 %v1895
    %2644 = vmatmul.mubr.bf16.gmra.mrb[0].mxu0 %v1894
    %v2645 = vpop.f32.mrb[0].mxu0
    %v2646 = vadd.f32 %v2453, %v2645
    %v2647 = vpop.f32.mrb[0].mxu0
    %v2648 = vadd.f32 %v2455, %v2647
    %v2649 = vpop.f32.mrb[0].mxu0
    %v2650 = vadd.f32 %v2457, %v2649
    %v2651 = vpop.f32.mrb[0].mxu0
    %v2652 = vadd.f32 %v2459, %v2651
    %2653 = vmatprep.mubr.bf16.mxu0 %v1899
    %2654 = vmatmul.mubr.bf16.gmra.mrb[0].mxu0 %v1898
    %v2655 = vpop.f32.mrb[0].mxu0
    %v2656 = vadd.f32 %v2463, %v2655
    %v2657 = vpop.f32.mrb[0].mxu0
    %v2658 = vadd.f32 %v2465, %v2657
    %v2659 = vpop.f32.mrb[0].mxu0
    %v2660 = vadd.f32 %v2467, %v2659
    %v2661 = vpop.f32.mrb[0].mxu0
    %v2662 = vadd.f32 %v2469, %v2661
    %2663 = vmatprep.mubr.bf16.mxu0 %v1903
    %2664 = vmatmul.mubr.bf16.gmra.mrb[0].mxu0 %v1902
    %v2665 = vpop.f32.mrb[0].mxu0
    %v2666 = vadd.f32 %v2473, %v2665
    %v2667 = vpop.f32.mrb[0].mxu0
    %v2668 = vadd.f32 %v2475, %v2667
    %v2669 = vpop.f32.mrb[0].mxu0
    %v2670 = vadd.f32 %v2477, %v2669
    %v2671 = vpop.f32.mrb[0].mxu0
    %v2672 = vadd.f32 %v2479, %v2671
    %2673 = vdwg.mxu0
    %vm2674 = vcmp.gt.f32.partialorder %v2516, 0.0
    %vm2675 = vcmp.gt.f32.partialorder %v2518, 0.0
    %vm2676 = vcmp.gt.f32.partialorder %v2520, 0.0
    %vm2677 = vcmp.gt.f32.partialorder %v2522, 0.0
    %vm2678 = vcmp.gt.f32.partialorder %v2526, 0.0
    %vm2679 = vcmp.gt.f32.partialorder %v2528, 0.0
    %vm2680 = vcmp.gt.f32.partialorder %v2530, 0.0
    %vm2681 = vcmp.gt.f32.partialorder %v2532, 0.0
    %vm2682 = vcmp.gt.f32.partialorder %v2536, 0.0
    %vm2683 = vcmp.gt.f32.partialorder %v2538, 0.0
    %vm2684 = vcmp.gt.f32.partialorder %v2540, 0.0
    %vm2685 = vcmp.gt.f32.partialorder %v2542, 0.0
    %vm2686 = vcmp.gt.f32.partialorder %v2546, 0.0
    %vm2687 = vcmp.gt.f32.partialorder %v2548, 0.0
    %vm2688 = vcmp.gt.f32.partialorder %v2550, 0.0
    %vm2689 = vcmp.gt.f32.partialorder %v2552, 0.0
    %vm2690 = vcmp.gt.f32.partialorder %v2556, 0.0
    %vm2691 = vcmp.gt.f32.partialorder %v2558, 0.0
    %vm2692 = vcmp.gt.f32.partialorder %v2560, 0.0
    %vm2693 = vcmp.gt.f32.partialorder %v2562, 0.0
    %vm2694 = vcmp.gt.f32.partialorder %v2566, 0.0
    %vm2695 = vcmp.gt.f32.partialorder %v2568, 0.0
    %vm2696 = vcmp.gt.f32.partialorder %v2570, 0.0
    %vm2697 = vcmp.gt.f32.partialorder %v2572, 0.0
    %vm2698 = vcmp.gt.f32.partialorder %v2576, 0.0
    %vm2699 = vcmp.gt.f32.partialorder %v2578, 0.0
    %vm2700 = vcmp.gt.f32.partialorder %v2580, 0.0
    %vm2701 = vcmp.gt.f32.partialorder %v2582, 0.0
    %vm2702 = vcmp.gt.f32.partialorder %v2586, 0.0
    %vm2703 = vcmp.gt.f32.partialorder %v2588, 0.0
    %vm2704 = vcmp.gt.f32.partialorder %v2590, 0.0
    %vm2705 = vcmp.gt.f32.partialorder %v2592, 0.0
    %vm2706 = vcmp.gt.f32.partialorder %v2596, 0.0
    %vm2707 = vcmp.gt.f32.partialorder %v2598, 0.0
    %vm2708 = vcmp.gt.f32.partialorder %v2600, 0.0
    %vm2709 = vcmp.gt.f32.partialorder %v2602, 0.0
    %vm2710 = vcmp.gt.f32.partialorder %v2606, 0.0
    %vm2711 = vcmp.gt.f32.partialorder %v2608, 0.0
    %vm2712 = vcmp.gt.f32.partialorder %v2610, 0.0
    %vm2713 = vcmp.gt.f32.partialorder %v2612, 0.0
    %vm2714 = vcmp.gt.f32.partialorder %v2616, 0.0
    %vm2715 = vcmp.gt.f32.partialorder %v2618, 0.0
    %vm2716 = vcmp.gt.f32.partialorder %v2620, 0.0
    %vm2717 = vcmp.gt.f32.partialorder %v2622, 0.0
    %vm2718 = vcmp.gt.f32.partialorder %v2626, 0.0
    %vm2719 = vcmp.gt.f32.partialorder %v2628, 0.0
    %vm2720 = vcmp.gt.f32.partialorder %v2630, 0.0
    %vm2721 = vcmp.gt.f32.partialorder %v2632, 0.0
    %vm2722 = vcmp.gt.f32.partialorder %v2636, 0.0
    %vm2723 = vcmp.gt.f32.partialorder %v2638, 0.0
    %vm2724 = vcmp.gt.f32.partialorder %v2640, 0.0
    %vm2725 = vcmp.gt.f32.partialorder %v2642, 0.0
    %vm2726 = vcmp.gt.f32.partialorder %v2646, 0.0
    %vm2727 = vcmp.gt.f32.partialorder %v2648, 0.0
    %vm2728 = vcmp.gt.f32.partialorder %v2650, 0.0
    %vm2729 = vcmp.gt.f32.partialorder %v2652, 0.0
    %vm2730 = vcmp.gt.f32.partialorder %v2656, 0.0
    %vm2731 = vcmp.gt.f32.partialorder %v2658, 0.0
    %vm2732 = vcmp.gt.f32.partialorder %v2660, 0.0
    %vm2733 = vcmp.gt.f32.partialorder %v2662, 0.0
    %vm2734 = vcmp.gt.f32.partialorder %v2666, 0.0
    %vm2735 = vcmp.gt.f32.partialorder %v2668, 0.0
    %vm2736 = vcmp.gt.f32.partialorder %v2670, 0.0
    %vm2737 = vcmp.gt.f32.partialorder %v2672, 0.0
    %v2738 = vmul.f32 %v2516, 0.01
    %v2739 = vmul.f32 %v2518, 0.01
    %v2740 = vmul.f32 %v2520, 0.01
    %v2741 = vmul.f32 %v2522, 0.01
    %v2742 = vmul.f32 %v2526, 0.01
    %v2743 = vmul.f32 %v2528, 0.01
    %v2744 = vmul.f32 %v2530, 0.01
    %v2745 = vmul.f32 %v2532, 0.01
    %v2746 = vmul.f32 %v2536, 0.01
    %v2747 = vmul.f32 %v2538, 0.01
    %v2748 = vmul.f32 %v2540, 0.01
    %v2749 = vmul.f32 %v2542, 0.01
    %v2750 = vmul.f32 %v2546, 0.01
    %v2751 = vmul.f32 %v2548, 0.01
    %v2752 = vmul.f32 %v2550, 0.01
    %v2753 = vmul.f32 %v2552, 0.01
    %v2754 = vmul.f32 %v2556, 0.01
    %v2755 = vmul.f32 %v2558, 0.01
    %v2756 = vmul.f32 %v2560, 0.01
    %v2757 = vmul.f32 %v2562, 0.01
    %v2758 = vmul.f32 %v2566, 0.01
    %v2759 = vmul.f32 %v2568, 0.01
    %v2760 = vmul.f32 %v2570, 0.01
    %v2761 = vmul.f32 %v2572, 0.01
    %v2762 = vmul.f32 %v2576, 0.01
    %v2763 = vmul.f32 %v2578, 0.01
    %v2764 = vmul.f32 %v2580, 0.01
    %v2765 = vmul.f32 %v2582, 0.01
    %v2766 = vmul.f32 %v2586, 0.01
    %v2767 = vmul.f32 %v2588, 0.01
    %v2768 = vmul.f32 %v2590, 0.01
    %v2769 = vmul.f32 %v2592, 0.01
    %v2770 = vmul.f32 %v2596, 0.01
    %v2771 = vmul.f32 %v2598, 0.01
    %v2772 = vmul.f32 %v2600, 0.01
    %v2773 = vmul.f32 %v2602, 0.01
    %v2774 = vmul.f32 %v2606, 0.01
    %v2775 = vmul.f32 %v2608, 0.01
    %v2776 = vmul.f32 %v2610, 0.01
    %v2777 = vmul.f32 %v2612, 0.01
    %v2778 = vmul.f32 %v2616, 0.01
    %v2779 = vmul.f32 %v2618, 0.01
    %v2780 = vmul.f32 %v2620, 0.01
    %v2781 = vmul.f32 %v2622, 0.01
    %v2782 = vmul.f32 %v2626, 0.01
    %v2783 = vmul.f32 %v2628, 0.01
    %v2784 = vmul.f32 %v2630, 0.01
    %v2785 = vmul.f32 %v2632, 0.01
    %v2786 = vmul.f32 %v2636, 0.01
    %v2787 = vmul.f32 %v2638, 0.01
    %v2788 = vmul.f32 %v2640, 0.01
    %v2789 = vmul.f32 %v2642, 0.01
    %v2790 = vmul.f32 %v2646, 0.01
    %v2791 = vmul.f32 %v2648, 0.01
    %v2792 = vmul.f32 %v2650, 0.01
    %v2793 = vmul.f32 %v2652, 0.01
    %v2794 = vmul.f32 %v2656, 0.01
    %v2795 = vmul.f32 %v2658, 0.01
    %v2796 = vmul.f32 %v2660, 0.01
    %v2797 = vmul.f32 %v2662, 0.01
    %v2798 = vmul.f32 %v2666, 0.01
    %v2799 = vmul.f32 %v2668, 0.01
    %v2800 = vmul.f32 %v2670, 0.01
    %v2801 = vmul.f32 %v2672, 0.01
    %v2802 = vsel %vm2674, %v2516, %v2738
    %v2803 = vsel %vm2675, %v2518, %v2739
    %v2804 = vsel %vm2676, %v2520, %v2740
    %v2805 = vsel %vm2677, %v2522, %v2741
    %v2806 = vsel %vm2678, %v2526, %v2742
    %v2807 = vsel %vm2679, %v2528, %v2743
    %v2808 = vsel %vm2680, %v2530, %v2744
    %v2809 = vsel %vm2681, %v2532, %v2745
    %v2810 = vsel %vm2682, %v2536, %v2746
    %v2811 = vsel %vm2683, %v2538, %v2747
    %v2812 = vsel %vm2684, %v2540, %v2748
    %v2813 = vsel %vm2685, %v2542, %v2749
    %v2814 = vsel %vm2686, %v2546, %v2750
    %v2815 = vsel %vm2687, %v2548, %v2751
    %v2816 = vsel %vm2688, %v2550, %v2752
    %v2817 = vsel %vm2689, %v2552, %v2753
    %v2818 = vsel %vm2690, %v2556, %v2754
    %v2819 = vsel %vm2691, %v2558, %v2755
    %v2820 = vsel %vm2692, %v2560, %v2756
    %v2821 = vsel %vm2693, %v2562, %v2757
    %v2822 = vsel %vm2694, %v2566, %v2758
    %v2823 = vsel %vm2695, %v2568, %v2759
    %v2824 = vsel %vm2696, %v2570, %v2760
    %v2825 = vsel %vm2697, %v2572, %v2761
    %v2826 = vsel %vm2698, %v2576, %v2762
    %v2827 = vsel %vm2699, %v2578, %v2763
    %v2828 = vsel %vm2700, %v2580, %v2764
    %v2829 = vsel %vm2701, %v2582, %v2765
    %v2830 = vsel %vm2702, %v2586, %v2766
    %v2831 = vsel %vm2703, %v2588, %v2767
    %v2832 = vsel %vm2704, %v2590, %v2768
    %v2833 = vsel %vm2705, %v2592, %v2769
    %v2834 = vsel %vm2706, %v2596, %v2770
    %v2835 = vsel %vm2707, %v2598, %v2771
    %v2836 = vsel %vm2708, %v2600, %v2772
    %v2837 = vsel %vm2709, %v2602, %v2773
    %v2838 = vsel %vm2710, %v2606, %v2774
    %v2839 = vsel %vm2711, %v2608, %v2775
    %v2840 = vsel %vm2712, %v2610, %v2776
    %v2841 = vsel %vm2713, %v2612, %v2777
    %v2842 = vsel %vm2714, %v2616, %v2778
    %v2843 = vsel %vm2715, %v2618, %v2779
    %v2844 = vsel %vm2716, %v2620, %v2780
    %v2845 = vsel %vm2717, %v2622, %v2781
    %v2846 = vsel %vm2718, %v2626, %v2782
    %v2847 = vsel %vm2719, %v2628, %v2783
    %v2848 = vsel %vm2720, %v2630, %v2784
    %v2849 = vsel %vm2721, %v2632, %v2785
    %v2850 = vsel %vm2722, %v2636, %v2786
    %v2851 = vsel %vm2723, %v2638, %v2787
    %v2852 = vsel %vm2724, %v2640, %v2788
    %v2853 = vsel %vm2725, %v2642, %v2789
    %v2854 = vsel %vm2726, %v2646, %v2790
    %v2855 = vsel %vm2727, %v2648, %v2791
    %v2856 = vsel %vm2728, %v2650, %v2792
    %v2857 = vsel %vm2729, %v2652, %v2793
    %v2858 = vsel %vm2730, %v2656, %v2794
    %v2859 = vsel %vm2731, %v2658, %v2795
    %v2860 = vsel %vm2732, %v2660, %v2796
    %v2861 = vsel %vm2733, %v2662, %v2797
    %v2862 = vsel %vm2734, %v2666, %v2798
    %v2863 = vsel %vm2735, %v2668, %v2799
    %v2864 = vsel %vm2736, %v2670, %v2800
    %v2865 = vsel %vm2737, %v2672, %v2801
    %v2866 = vpack.c.bf16 %v2804, %v2802
    %v2867 = vpack.c.bf16 %v2805, %v2803
    %v2868 = vpack.c.bf16 %v2808, %v2806
    %v2869 = vpack.c.bf16 %v2809, %v2807
    %v2870 = vpack.c.bf16 %v2812, %v2810
    %v2871 = vpack.c.bf16 %v2813, %v2811
    %v2872 = vpack.c.bf16 %v2816, %v2814
    %v2873 = vpack.c.bf16 %v2817, %v2815
    %v2874 = vpack.c.bf16 %v2820, %v2818
    %v2875 = vpack.c.bf16 %v2821, %v2819
    %v2876 = vpack.c.bf16 %v2824, %v2822
    %v2877 = vpack.c.bf16 %v2825, %v2823
    %v2878 = vpack.c.bf16 %v2828, %v2826
    %v2879 = vpack.c.bf16 %v2829, %v2827
    %v2880 = vpack.c.bf16 %v2832, %v2830
    %v2881 = vpack.c.bf16 %v2833, %v2831
    %v2882 = vpack.c.bf16 %v2836, %v2834
    %v2883 = vpack.c.bf16 %v2837, %v2835
    %v2884 = vpack.c.bf16 %v2840, %v2838
    %v2885 = vpack.c.bf16 %v2841, %v2839
    %v2886 = vpack.c.bf16 %v2844, %v2842
    %v2887 = vpack.c.bf16 %v2845, %v2843
    %v2888 = vpack.c.bf16 %v2848, %v2846
    %v2889 = vpack.c.bf16 %v2849, %v2847
    %v2890 = vpack.c.bf16 %v2852, %v2850
    %v2891 = vpack.c.bf16 %v2853, %v2851
    %v2892 = vpack.c.bf16 %v2856, %v2854
    %v2893 = vpack.c.bf16 %v2857, %v2855
    %v2894 = vpack.c.bf16 %v2860, %v2858
    %v2895 = vpack.c.bf16 %v2861, %v2859
    %v2896 = vpack.c.bf16 %v2864, %v2862
    %v2897 = vpack.c.bf16 %v2865, %v2863
    %v2898 = vld [vmem:[%s4] sm:$0xf]
    %v2899 = vld [vmem:[%s4 + $0x4] sm:$0xf]
    %v2900 = vld [vmem:[%s4 + $0x8] sm:$0xf]
    %v2901 = vld [vmem:[%s4 + $0xc] sm:$0xf]
    %v2902 = vld [vmem:[%s4 + $0x10] sm:$0xf]
    %v2903 = vld [vmem:[%s4 + $0x14] sm:$0xf]
    %v2904 = vld [vmem:[%s4 + $0x18] sm:$0xf]
    %v2905 = vld [vmem:[%s4 + $0x1c] sm:$0xf]
    %v2906 = vld [vmem:[%s4 + $0x20] sm:$0xf]
    %v2907 = vld [vmem:[%s4 + $0x24] sm:$0xf]
    %v2908 = vld [vmem:[%s4 + $0x28] sm:$0xf]
    %v2909 = vld [vmem:[%s4 + $0x2c] sm:$0xf]
    %v2910 = vld [vmem:[%s4 + $0x30] sm:$0xf]
    %v2911 = vld [vmem:[%s4 + $0x34] sm:$0xf]
    %v2912 = vld [vmem:[%s4 + $0x38] sm:$0xf]
    %v2913 = vld [vmem:[%s4 + $0x3c] sm:$0xf]
    %v2914 = vld [vmem:[%s4 + $0x40] sm:$0xf]
    %v2915 = vld [vmem:[%s4 + $0x44] sm:$0xf]
    %v2916 = vld [vmem:[%s4 + $0x48] sm:$0xf]
    %v2917 = vld [vmem:[%s4 + $0x4c] sm:$0xf]
    %v2918 = vld [vmem:[%s4 + $0x50] sm:$0xf]
    %v2919 = vld [vmem:[%s4 + $0x54] sm:$0xf]
    %v2920 = vld [vmem:[%s4 + $0x58] sm:$0xf]
    %v2921 = vld [vmem:[%s4 + $0x5c] sm:$0xf]
    %v2922 = vld [vmem:[%s4 + $0x60] sm:$0xf]
    %v2923 = vld [vmem:[%s4 + $0x64] sm:$0xf]
    %v2924 = vld [vmem:[%s4 + $0x68] sm:$0xf]
    %v2925 = vld [vmem:[%s4 + $0x6c] sm:$0xf]
    %v2926 = vld [vmem:[%s4 + $0x70] sm:$0xf]
    %v2927 = vld [vmem:[%s4 + $0x74] sm:$0xf]
    %v2928 = vld [vmem:[%s4 + $0x78] sm:$0xf]
    %v2929 = vld [vmem:[%s4 + $0x7c] sm:$0xf]
    %v2962 = vunpack.c.l.b16 %v2898
    %v2963 = vunpack.c.l.b16 %v2899
    %v2964 = vunpack.c.l.b16 %v2900
    %v2965 = vunpack.c.l.b16 %v2901
    %v2966 = vunpack.c.l.b16 %v2902
    %v2967 = vunpack.c.l.b16 %v2903
    %v2968 = vunpack.c.l.b16 %v2904
    %v2969 = vunpack.c.l.b16 %v2905
    %v2970 = vunpack.c.l.b16 %v2906
    %v2971 = vunpack.c.l.b16 %v2907
    %v2972 = vunpack.c.l.b16 %v2908
    %v2973 = vunpack.c.l.b16 %v2909
    %v2974 = vunpack.c.l.b16 %v2910
    %v2975 = vunpack.c.l.b16 %v2911
    %v2976 = vunpack.c.l.b16 %v2912
    %v2977 = vunpack.c.l.b16 %v2913
    %v2978 = vunpack.c.l.b16 %v2914
    %v2979 = vunpack.c.l.b16 %v2915
    %v2980 = vunpack.c.l.b16 %v2916
    %v2981 = vunpack.c.l.b16 %v2917
    %v2982 = vunpack.c.l.b16 %v2918
    %v2983 = vunpack.c.l.b16 %v2919
    %v2984 = vunpack.c.l.b16 %v2920
    %v2985 = vunpack.c.l.b16 %v2921
    %v2986 = vunpack.c.l.b16 %v2922
    %v2987 = vunpack.c.l.b16 %v2923
    %v2988 = vunpack.c.l.b16 %v2924
    %v2989 = vunpack.c.l.b16 %v2925
    %v2990 = vunpack.c.l.b16 %v2926
    %v2991 = vunpack.c.l.b16 %v2927
    %v2992 = vunpack.c.l.b16 %v2928
    %v2993 = vunpack.c.l.b16 %v2929
    %v2994 = vpack.c.b16 %v2963, %v2962
    %v2995 = vpack.c.b16 %v2965, %v2964
    %v2996 = vpack.c.b16 %v2967, %v2966
    %v2997 = vpack.c.b16 %v2969, %v2968
    %v2998 = vpack.c.b16 %v2971, %v2970
    %v2999 = vpack.c.b16 %v2973, %v2972
    %v3000 = vpack.c.b16 %v2975, %v2974
    %v3001 = vpack.c.b16 %v2977, %v2976
    %v3002 = vpack.c.b16 %v2979, %v2978
    %v3003 = vpack.c.b16 %v2981, %v2980
    %v3004 = vpack.c.b16 %v2983, %v2982
    %v3005 = vpack.c.b16 %v2985, %v2984
    %v3006 = vpack.c.b16 %v2987, %v2986
    %v3007 = vpack.c.b16 %v2989, %v2988
    %v3008 = vpack.c.b16 %v2991, %v2990
    %v3009 = vpack.c.b16 %v2993, %v2992
    %3026 = vmatprep.subr.bf16.mxu0 0
    %3027 = vmatpush1.bf16.msra.mxu0 %v2994
    %3028 = vmatprep.subr.bf16.mxu0 0
    %3029 = vmatpush1.bf16.msra.mxu0 %v2995
    %3030 = vmatprep.subr.bf16.mxu0 0
    %3031 = vmatpush1.bf16.msra.mxu0 %v2996
    %3032 = vmatprep.subr.bf16.mxu0 0
    %3033 = vmatpush1.bf16.msra.mxu0 %v2997
    %3034 = vmatprep.subr.bf16.mxu0 0
    %3035 = vmatpush1.bf16.msra.mxu0 %v2998
    %3036 = vmatprep.subr.bf16.mxu0 0
    %3037 = vmatpush1.bf16.msra.mxu0 %v2999
    %3038 = vmatprep.subr.bf16.mxu0 0
    %3039 = vmatpush1.bf16.msra.mxu0 %v3000
    %3040 = vmatprep.subr.bf16.mxu0 0
    %3041 = vmatpush1.bf16.msra.mxu0 %v3001
    %3042 = vmatprep.subr.bf16.mxu0 0
    %3043 = vmatpush1.bf16.msra.mxu0 %v3002
    %3044 = vmatprep.subr.bf16.mxu0 0
    %3045 = vmatpush1.bf16.msra.mxu0 %v3003
    %3046 = vmatprep.subr.bf16.mxu0 0
    %3047 = vmatpush1.bf16.msra.mxu0 %v3004
    %3048 = vmatprep.subr.bf16.mxu0 0
    %3049 = vmatpush1.bf16.msra.mxu0 %v3005
    %3050 = vmatprep.subr.bf16.mxu0 0
    %3051 = vmatpush1.bf16.msra.mxu0 %v3006
    %3052 = vmatprep.subr.bf16.mxu0 0
    %3053 = vmatpush1.bf16.msra.mxu0 %v3007
    %3054 = vmatprep.subr.bf16.mxu0 0
    %3055 = vmatpush1.bf16.msra.mxu0 %v3008
    %3056 = vmatprep.subr.bf16.mxu0 0
    %3057 = vmatpush1.bf16.msra.mxu0 %v3009
    %3058 = vmatprep.mubr.bf16.mxu0 %v2867
    %3059 = vmatmul.mubr.bf16.gmra.mrb[0].mxu0 %v2866
    %v3060 = vpop.f32.mrb[0].mxu0
    %v3061 = vadd.f32 %v1137, %v3060
    %v3062 = vpop.f32.mrb[0].mxu0
    %v3063 = vpop.f32.mrb[0].mxu0
    %v3064 = vadd.f32 %v1141, %v3063
    %v3065 = vpop.f32.mrb[0].mxu0
    %3066 = vmatprep.mubr.bf16.mxu0 %v2869
    %3067 = vmatmul.mubr.bf16.gmra.mrb[0].mxu0 %v2868
    %v3068 = vpop.f32.mrb[0].mxu0
    %v3069 = vadd.f32 %v1147, %v3068
    %v3070 = vpop.f32.mrb[0].mxu0
    %v3071 = vpop.f32.mrb[0].mxu0
    %v3072 = vadd.f32 %v1151, %v3071
    %v3073 = vpop.f32.mrb[0].mxu0
    %3074 = vmatprep.mubr.bf16.mxu0 %v2871
    %3075 = vmatmul.mubr.bf16.gmra.mrb[0].mxu0 %v2870
    %v3076 = vpop.f32.mrb[0].mxu0
    %v3077 = vadd.f32 %v1157, %v3076
    %v3078 = vpop.f32.mrb[0].mxu0
    %v3079 = vpop.f32.mrb[0].mxu0
    %v3080 = vadd.f32 %v1161, %v3079
    %v3081 = vpop.f32.mrb[0].mxu0
    %3082 = vmatprep.mubr.bf16.mxu0 %v2873
    %3083 = vmatmul.mubr.bf16.gmra.mrb[0].mxu0 %v2872
    %v3084 = vpop.f32.mrb[0].mxu0
    %v3085 = vadd.f32 %v1167, %v3084
    %v3086 = vpop.f32.mrb[0].mxu0
    %v3087 = vpop.f32.mrb[0].mxu0
    %v3088 = vadd.f32 %v1171, %v3087
    %v3089 = vpop.f32.mrb[0].mxu0
    %3090 = vmatprep.mubr.bf16.mxu0 %v2875
    %3091 = vmatmul.mubr.bf16.gmra.mrb[0].mxu0 %v2874
    %v3092 = vpop.f32.mrb[0].mxu0
    %v3093 = vadd.f32 %v1177, %v3092
    %v3094 = vpop.f32.mrb[0].mxu0
    %v3095 = vpop.f32.mrb[0].mxu0
    %v3096 = vadd.f32 %v1181, %v3095
    %v3097 = vpop.f32.mrb[0].mxu0
    %3098 = vmatprep.mubr.bf16.mxu0 %v2877
    %3099 = vmatmul.mubr.bf16.gmra.mrb[0].mxu0 %v2876
    %v3100 = vpop.f32.mrb[0].mxu0
    %v3101 = vadd.f32 %v1187, %v3100
    %v3102 = vpop.f32.mrb[0].mxu0
    %v3103 = vpop.f32.mrb[0].mxu0
    %v3104 = vadd.f32 %v1191, %v3103
    %v3105 = vpop.f32.mrb[0].mxu0
    %3106 = vmatprep.mubr.bf16.mxu0 %v2879
    %3107 = vmatmul.mubr.bf16.gmra.mrb[0].mxu0 %v2878
    %v3108 = vpop.f32.mrb[0].mxu0
    %v3109 = vadd.f32 %v1197, %v3108
    %v3110 = vpop.f32.mrb[0].mxu0
    %v3111 = vpop.f32.mrb[0].mxu0
    %v3112 = vadd.f32 %v1201, %v3111
    %v3113 = vpop.f32.mrb[0].mxu0
    %3114 = vmatprep.mubr.bf16.mxu0 %v2881
    %3115 = vmatmul.mubr.bf16.gmra.mrb[0].mxu0 %v2880
    %v3116 = vpop.f32.mrb[0].mxu0
    %v3117 = vadd.f32 %v1207, %v3116
    %v3118 = vpop.f32.mrb[0].mxu0
    %v3119 = vpop.f32.mrb[0].mxu0
    %v3120 = vadd.f32 %v1211, %v3119
    %v3121 = vpop.f32.mrb[0].mxu0
    %3122 = vmatprep.mubr.bf16.mxu0 %v2883
    %3123 = vmatmul.mubr.bf16.gmra.mrb[0].mxu0 %v2882
    %v3124 = vpop.f32.mrb[0].mxu0
    %v3125 = vadd.f32 %v1217, %v3124
    %v3126 = vpop.f32.mrb[0].mxu0
    %v3127 = vpop.f32.mrb[0].mxu0
    %v3128 = vadd.f32 %v1221, %v3127
    %v3129 = vpop.f32.mrb[0].mxu0
    %3130 = vmatprep.mubr.bf16.mxu0 %v2885
    %3131 = vmatmul.mubr.bf16.gmra.mrb[0].mxu0 %v2884
    %v3132 = vpop.f32.mrb[0].mxu0
    %v3133 = vadd.f32 %v1227, %v3132
    %v3134 = vpop.f32.mrb[0].mxu0
    %v3135 = vpop.f32.mrb[0].mxu0
    %v3136 = vadd.f32 %v1231, %v3135
    %v3137 = vpop.f32.mrb[0].mxu0
    %3138 = vmatprep.mubr.bf16.mxu0 %v2887
    %3139 = vmatmul.mubr.bf16.gmra.mrb[0].mxu0 %v2886
    %v3140 = vpop.f32.mrb[0].mxu0
    %v3141 = vadd.f32 %v1237, %v3140
    %v3142 = vpop.f32.mrb[0].mxu0
    %v3143 = vpop.f32.mrb[0].mxu0
    %v3144 = vadd.f32 %v1241, %v3143
    %v3145 = vpop.f32.mrb[0].mxu0
    %3146 = vmatprep.mubr.bf16.mxu0 %v2889
    %3147 = vmatmul.mubr.bf16.gmra.mrb[0].mxu0 %v2888
    %v3148 = vpop.f32.mrb[0].mxu0
    %v3149 = vadd.f32 %v1247, %v3148
    %v3150 = vpop.f32.mrb[0].mxu0
    %v3151 = vpop.f32.mrb[0].mxu0
    %v3152 = vadd.f32 %v1251, %v3151
    %v3153 = vpop.f32.mrb[0].mxu0
    %3154 = vmatprep.mubr.bf16.mxu0 %v2891
    %3155 = vmatmul.mubr.bf16.gmra.mrb[0].mxu0 %v2890
    %v3156 = vpop.f32.mrb[0].mxu0
    %v3157 = vadd.f32 %v1257, %v3156
    %v3158 = vpop.f32.mrb[0].mxu0
    %v3159 = vpop.f32.mrb[0].mxu0
    %v3160 = vadd.f32 %v1261, %v3159
    %v3161 = vpop.f32.mrb[0].mxu0
    %3162 = vmatprep.mubr.bf16.mxu0 %v2893
    %3163 = vmatmul.mubr.bf16.gmra.mrb[0].mxu0 %v2892
    %v3164 = vpop.f32.mrb[0].mxu0
    %v3165 = vadd.f32 %v1267, %v3164
    %v3166 = vpop.f32.mrb[0].mxu0
    %v3167 = vpop.f32.mrb[0].mxu0
    %v3168 = vadd.f32 %v1271, %v3167
    %v3169 = vpop.f32.mrb[0].mxu0
    %3170 = vmatprep.mubr.bf16.mxu0 %v2895
    %3171 = vmatmul.mubr.bf16.gmra.mrb[0].mxu0 %v2894
    %v3172 = vpop.f32.mrb[0].mxu0
    %v3173 = vadd.f32 %v1277, %v3172
    %v3174 = vpop.f32.mrb[0].mxu0
    %v3175 = vpop.f32.mrb[0].mxu0
    %v3176 = vadd.f32 %v1281, %v3175
    %v3177 = vpop.f32.mrb[0].mxu0
    %3178 = vmatprep.mubr.bf16.mxu0 %v2897
    %3179 = vmatmul.mubr.bf16.gmra.mrb[0].mxu0 %v2896
    %v3180 = vpop.f32.mrb[0].mxu0
    %v3181 = vadd.f32 %v1287, %v3180
    %v3182 = vpop.f32.mrb[0].mxu0
    %v3183 = vpop.f32.mrb[0].mxu0
    %v3184 = vadd.f32 %v1291, %v3183
    %v3185 = vpop.f32.mrb[0].mxu0
    %3186 = vdwg.mxu0
    %vm3187 = vcmp.gt.f32.partialorder %v3061, 0.0
    %vm3188 = vcmp.gt.f32.partialorder %v3064, 0.0
    %vm3189 = vcmp.gt.f32.partialorder %v3069, 0.0
    %vm3190 = vcmp.gt.f32.partialorder %v3072, 0.0
    %vm3191 = vcmp.gt.f32.partialorder %v3077, 0.0
    %vm3192 = vcmp.gt.f32.partialorder %v3080, 0.0
    %vm3193 = vcmp.gt.f32.partialorder %v3085, 0.0
    %vm3194 = vcmp.gt.f32.partialorder %v3088, 0.0
    %vm3195 = vcmp.gt.f32.partialorder %v3093, 0.0
    %vm3196 = vcmp.gt.f32.partialorder %v3096, 0.0
    %vm3197 = vcmp.gt.f32.partialorder %v3101, 0.0
    %vm3198 = vcmp.gt.f32.partialorder %v3104, 0.0
    %vm3199 = vcmp.gt.f32.partialorder %v3109, 0.0
    %vm3200 = vcmp.gt.f32.partialorder %v3112, 0.0
    %vm3201 = vcmp.gt.f32.partialorder %v3117, 0.0
    %vm3202 = vcmp.gt.f32.partialorder %v3120, 0.0
    %vm3203 = vcmp.gt.f32.partialorder %v3125, 0.0
    %vm3204 = vcmp.gt.f32.partialorder %v3128, 0.0
    %vm3205 = vcmp.gt.f32.partialorder %v3133, 0.0
    %vm3206 = vcmp.gt.f32.partialorder %v3136, 0.0
    %vm3207 = vcmp.gt.f32.partialorder %v3141, 0.0
    %vm3208 = vcmp.gt.f32.partialorder %v3144, 0.0
    %vm3209 = vcmp.gt.f32.partialorder %v3149, 0.0
    %vm3210 = vcmp.gt.f32.partialorder %v3152, 0.0
    %vm3211 = vcmp.gt.f32.partialorder %v3157, 0.0
    %vm3212 = vcmp.gt.f32.partialorder %v3160, 0.0
    %vm3213 = vcmp.gt.f32.partialorder %v3165, 0.0
    %vm3214 = vcmp.gt.f32.partialorder %v3168, 0.0
    %vm3215 = vcmp.gt.f32.partialorder %v3173, 0.0
    %vm3216 = vcmp.gt.f32.partialorder %v3176, 0.0
    %vm3217 = vcmp.gt.f32.partialorder %v3181, 0.0
    %vm3218 = vcmp.gt.f32.partialorder %v3184, 0.0
    %v3219 = vmul.f32 %v3061, 0.01
    %v3220 = vmul.f32 %v3064, 0.01
    %v3221 = vmul.f32 %v3069, 0.01
    %v3222 = vmul.f32 %v3072, 0.01
    %v3223 = vmul.f32 %v3077, 0.01
    %v3224 = vmul.f32 %v3080, 0.01
    %v3225 = vmul.f32 %v3085, 0.01
    %v3226 = vmul.f32 %v3088, 0.01
    %v3227 = vmul.f32 %v3093, 0.01
    %v3228 = vmul.f32 %v3096, 0.01
    %v3229 = vmul.f32 %v3101, 0.01
    %v3230 = vmul.f32 %v3104, 0.01
    %v3231 = vmul.f32 %v3109, 0.01
    %v3232 = vmul.f32 %v3112, 0.01
    %v3233 = vmul.f32 %v3117, 0.01
    %v3234 = vmul.f32 %v3120, 0.01
    %v3235 = vmul.f32 %v3125, 0.01
    %v3236 = vmul.f32 %v3128, 0.01
    %v3237 = vmul.f32 %v3133, 0.01
    %v3238 = vmul.f32 %v3136, 0.01
    %v3239 = vmul.f32 %v3141, 0.01
    %v3240 = vmul.f32 %v3144, 0.01
    %v3241 = vmul.f32 %v3149, 0.01
    %v3242 = vmul.f32 %v3152, 0.01
    %v3243 = vmul.f32 %v3157, 0.01
    %v3244 = vmul.f32 %v3160, 0.01
    %v3245 = vmul.f32 %v3165, 0.01
    %v3246 = vmul.f32 %v3168, 0.01
    %v3247 = vmul.f32 %v3173, 0.01
    %v3248 = vmul.f32 %v3176, 0.01
    %v3249 = vmul.f32 %v3181, 0.01
    %v3250 = vmul.f32 %v3184, 0.01
    %v3251 = vsel %vm3187, %v3061, %v3219
    %v3252 = vsel %vm3188, %v3064, %v3220
    %v3253 = vsel %vm3189, %v3069, %v3221
    %v3254 = vsel %vm3190, %v3072, %v3222
    %v3255 = vsel %vm3191, %v3077, %v3223
    %v3256 = vsel %vm3192, %v3080, %v3224
    %v3257 = vsel %vm3193, %v3085, %v3225
    %v3258 = vsel %vm3194, %v3088, %v3226
    %v3259 = vsel %vm3195, %v3093, %v3227
    %v3260 = vsel %vm3196, %v3096, %v3228
    %v3261 = vsel %vm3197, %v3101, %v3229
    %v3262 = vsel %vm3198, %v3104, %v3230
    %v3263 = vsel %vm3199, %v3109, %v3231
    %v3264 = vsel %vm3200, %v3112, %v3232
    %v3265 = vsel %vm3201, %v3117, %v3233
    %v3266 = vsel %vm3202, %v3120, %v3234
    %v3267 = vsel %vm3203, %v3125, %v3235
    %v3268 = vsel %vm3204, %v3128, %v3236
    %v3269 = vsel %vm3205, %v3133, %v3237
    %v3270 = vsel %vm3206, %v3136, %v3238
    %v3271 = vsel %vm3207, %v3141, %v3239
    %v3272 = vsel %vm3208, %v3144, %v3240
    %v3273 = vsel %vm3209, %v3149, %v3241
    %v3274 = vsel %vm3210, %v3152, %v3242
    %v3275 = vsel %vm3211, %v3157, %v3243
    %v3276 = vsel %vm3212, %v3160, %v3244
    %v3277 = vsel %vm3213, %v3165, %v3245
    %v3278 = vsel %vm3214, %v3168, %v3246
    %v3279 = vsel %vm3215, %v3173, %v3247
    %v3280 = vsel %vm3216, %v3176, %v3248
    %v3281 = vsel %vm3217, %v3181, %v3249
    %v3282 = vsel %vm3218, %v3184, %v3250
    %v3283 = vpack.c.bf16 %v3252, %v3251
    %v3284 = vpack.c.bf16 %v3254, %v3253
    %v3285 = vpack.c.bf16 %v3256, %v3255
    %v3286 = vpack.c.bf16 %v3258, %v3257
    %v3287 = vpack.c.bf16 %v3260, %v3259
    %v3288 = vpack.c.bf16 %v3262, %v3261
    %v3289 = vpack.c.bf16 %v3264, %v3263
    %v3290 = vpack.c.bf16 %v3266, %v3265
    %v3291 = vpack.c.bf16 %v3268, %v3267
    %v3292 = vpack.c.bf16 %v3270, %v3269
    %v3293 = vpack.c.bf16 %v3272, %v3271
    %v3294 = vpack.c.bf16 %v3274, %v3273
    %v3295 = vpack.c.bf16 %v3276, %v3275
    %v3296 = vpack.c.bf16 %v3278, %v3277
    %v3297 = vpack.c.bf16 %v3280, %v3279
    %v3298 = vpack.c.bf16 %v3282, %v3281
    %v3299 = vld [vmem:[%s5] sm:$0xf]
    %v3300 = vld [vmem:[%s5 + $0x4] sm:$0xf]
    %v3301 = vld [vmem:[%s5 + $0x8] sm:$0xf]
    %v3302 = vld [vmem:[%s5 + $0xc] sm:$0xf]
    %v3303 = vld [vmem:[%s5 + $0x10] sm:$0xf]
    %v3304 = vld [vmem:[%s5 + $0x14] sm:$0xf]
    %v3305 = vld [vmem:[%s5 + $0x18] sm:$0xf]
    %v3306 = vld [vmem:[%s5 + $0x1c] sm:$0xf]
    %v3307 = vld [vmem:[%s5 + $0x20] sm:$0xf]
    %v3308 = vld [vmem:[%s5 + $0x24] sm:$0xf]
    %v3309 = vld [vmem:[%s5 + $0x28] sm:$0xf]
    %v3310 = vld [vmem:[%s5 + $0x2c] sm:$0xf]
    %v3311 = vld [vmem:[%s5 + $0x30] sm:$0xf]
    %v3312 = vld [vmem:[%s5 + $0x34] sm:$0xf]
    %v3313 = vld [vmem:[%s5 + $0x38] sm:$0xf]
    %v3314 = vld [vmem:[%s5 + $0x3c] sm:$0xf]
    %v3331 = vunpack.c.l.b16 %v3299
    %v3332 = vunpack.c.l.b16 %v3300
    %v3333 = vunpack.c.l.b16 %v3301
    %v3334 = vunpack.c.l.b16 %v3302
    %v3335 = vunpack.c.l.b16 %v3303
    %v3336 = vunpack.c.l.b16 %v3304
    %v3337 = vunpack.c.l.b16 %v3305
    %v3338 = vunpack.c.l.b16 %v3306
    %v3339 = vunpack.c.l.b16 %v3307
    %v3340 = vunpack.c.l.b16 %v3308
    %v3341 = vunpack.c.l.b16 %v3309
    %v3342 = vunpack.c.l.b16 %v3310
    %v3343 = vunpack.c.l.b16 %v3311
    %v3344 = vunpack.c.l.b16 %v3312
    %v3345 = vunpack.c.l.b16 %v3313
    %v3346 = vunpack.c.l.b16 %v3314
    %v3347 = vpack.c.b16 %v3332, %v3331
    %v3348 = vpack.c.b16 %v3334, %v3333
    %v3349 = vpack.c.b16 %v3336, %v3335
    %v3350 = vpack.c.b16 %v3338, %v3337
    %v3351 = vpack.c.b16 %v3340, %v3339
    %v3352 = vpack.c.b16 %v3342, %v3341
    %v3353 = vpack.c.b16 %v3344, %v3343
    %v3354 = vpack.c.b16 %v3346, %v3345
    %3363 = vmatprep.subr.bf16.mxu0 0
    %3364 = vmatpush1.bf16.msra.mxu0 %v3347
    %3365 = vmatprep.subr.bf16.mxu0 0
    %3366 = vmatpush1.bf16.msra.mxu0 %v3348
    %3367 = vmatprep.subr.bf16.mxu0 0
    %3368 = vmatpush1.bf16.msra.mxu0 %v3349
    %3369 = vmatprep.subr.bf16.mxu0 0
    %3370 = vmatpush1.bf16.msra.mxu0 %v3350
    %3371 = vmatprep.subr.bf16.mxu0 0
    %3372 = vmatpush1.bf16.msra.mxu0 %v3351
    %3373 = vmatprep.subr.bf16.mxu0 0
    %3374 = vmatpush1.bf16.msra.mxu0 %v3352
    %3375 = vmatprep.subr.bf16.mxu0 0
    %3376 = vmatpush1.bf16.msra.mxu0 %v3353
    %3377 = vmatprep.subr.bf16.mxu0 0
    %3378 = vmatpush1.bf16.msra.mxu0 %v3354
    %3379 = vmatprep.subr.bf16.mxu0 0
    %3380 = vmatpush1.bf16.msra.mxu0 0
    %3381 = vmatprep.subr.bf16.mxu0 0
    %3382 = vmatpush1.bf16.msra.mxu0 0
    %3383 = vmatprep.subr.bf16.mxu0 0
    %3384 = vmatpush1.bf16.msra.mxu0 0
    %3385 = vmatprep.subr.bf16.mxu0 0
    %3386 = vmatpush1.bf16.msra.mxu0 0
    %3387 = vmatprep.subr.bf16.mxu0 0
    %3388 = vmatpush1.bf16.msra.mxu0 0
    %3389 = vmatprep.subr.bf16.mxu0 0
    %3390 = vmatpush1.bf16.msra.mxu0 0
    %3391 = vmatprep.subr.bf16.mxu0 0
    %3392 = vmatpush1.bf16.msra.mxu0 0
    %3393 = vmatprep.subr.bf16.mxu0 0
    %3394 = vmatpush1.bf16.msra.mxu0 0
    %3395 = vmatprep.mubr.bf16.mxu0 0
    %3396 = vmatmul.mubr.bf16.gmra.mrb[0].mxu0 %v3283
    %v3397 = vpop.f32.mrb[0].mxu0
    %v3398 = vadd.f32 %v1139, %v3397
    %v3399 = vpop.f32.mrb[0].mxu0
    %v3400 = vpop.f32.mrb[0].mxu0
    %v3401 = vadd.f32 %v1143, %v3400
    %v3402 = vpop.f32.mrb[0].mxu0
    %3403 = vmatprep.mubr.bf16.mxu0 0
    %3404 = vmatmul.mubr.bf16.gmra.mrb[0].mxu0 %v3284
    %v3405 = vpop.f32.mrb[0].mxu0
    %v3406 = vadd.f32 %v1149, %v3405
    %v3407 = vpop.f32.mrb[0].mxu0
    %v3408 = vpop.f32.mrb[0].mxu0
    %v3409 = vadd.f32 %v1153, %v3408
    %v3410 = vpop.f32.mrb[0].mxu0
    %3411 = vmatprep.mubr.bf16.mxu0 0
    %3412 = vmatmul.mubr.bf16.gmra.mrb[0].mxu0 %v3285
    %v3413 = vpop.f32.mrb[0].mxu0
    %v3414 = vadd.f32 %v1159, %v3413
    %v3415 = vpop.f32.mrb[0].mxu0
    %v3416 = vpop.f32.mrb[0].mxu0
    %v3417 = vadd.f32 %v1163, %v3416
    %v3418 = vpop.f32.mrb[0].mxu0
    %3419 = vmatprep.mubr.bf16.mxu0 0
    %3420 = vmatmul.mubr.bf16.gmra.mrb[0].mxu0 %v3286
    %v3421 = vpop.f32.mrb[0].mxu0
    %v3422 = vadd.f32 %v1169, %v3421
    %v3423 = vpop.f32.mrb[0].mxu0
    %v3424 = vpop.f32.mrb[0].mxu0
    %v3425 = vadd.f32 %v1173, %v3424
    %v3426 = vpop.f32.mrb[0].mxu0
    %3427 = vmatprep.mubr.bf16.mxu0 0
    %3428 = vmatmul.mubr.bf16.gmra.mrb[0].mxu0 %v3287
    %v3429 = vpop.f32.mrb[0].mxu0
    %v3430 = vadd.f32 %v1179, %v3429
    %v3431 = vpop.f32.mrb[0].mxu0
    %v3432 = vpop.f32.mrb[0].mxu0
    %v3433 = vadd.f32 %v1183, %v3432
    %v3434 = vpop.f32.mrb[0].mxu0
    %3435 = vmatprep.mubr.bf16.mxu0 0
    %3436 = vmatmul.mubr.bf16.gmra.mrb[0].mxu0 %v3288
    %v3437 = vpop.f32.mrb[0].mxu0
    %v3438 = vadd.f32 %v1189, %v3437
    %v3439 = vpop.f32.mrb[0].mxu0
    %v3440 = vpop.f32.mrb[0].mxu0
    %v3441 = vadd.f32 %v1193, %v3440
    %v3442 = vpop.f32.mrb[0].mxu0
    %3443 = vmatprep.mubr.bf16.mxu0 0
    %3444 = vmatmul.mubr.bf16.gmra.mrb[0].mxu0 %v3289
    %v3445 = vpop.f32.mrb[0].mxu0
    %v3446 = vadd.f32 %v1199, %v3445
    %v3447 = vpop.f32.mrb[0].mxu0
    %v3448 = vpop.f32.mrb[0].mxu0
    %v3449 = vadd.f32 %v1203, %v3448
    %v3450 = vpop.f32.mrb[0].mxu0
    %3451 = vmatprep.mubr.bf16.mxu0 0
    %3452 = vmatmul.mubr.bf16.gmra.mrb[0].mxu0 %v3290
    %v3453 = vpop.f32.mrb[0].mxu0
    %v3454 = vadd.f32 %v1209, %v3453
    %v3455 = vpop.f32.mrb[0].mxu0
    %v3456 = vpop.f32.mrb[0].mxu0
    %v3457 = vadd.f32 %v1213, %v3456
    %v3458 = vpop.f32.mrb[0].mxu0
    %3459 = vmatprep.mubr.bf16.mxu0 0
    %3460 = vmatmul.mubr.bf16.gmra.mrb[0].mxu0 %v3291
    %v3461 = vpop.f32.mrb[0].mxu0
    %v3462 = vadd.f32 %v1219, %v3461
    %v3463 = vpop.f32.mrb[0].mxu0
    %v3464 = vpop.f32.mrb[0].mxu0
    %v3465 = vadd.f32 %v1223, %v3464
    %v3466 = vpop.f32.mrb[0].mxu0
    %3467 = vmatprep.mubr.bf16.mxu0 0
    %3468 = vmatmul.mubr.bf16.gmra.mrb[0].mxu0 %v3292
    %v3469 = vpop.f32.mrb[0].mxu0
    %v3470 = vadd.f32 %v1229, %v3469
    %v3471 = vpop.f32.mrb[0].mxu0
    %v3472 = vpop.f32.mrb[0].mxu0
    %v3473 = vadd.f32 %v1233, %v3472
    %v3474 = vpop.f32.mrb[0].mxu0
    %3475 = vmatprep.mubr.bf16.mxu0 0
    %3476 = vmatmul.mubr.bf16.gmra.mrb[0].mxu0 %v3293
    %v3477 = vpop.f32.mrb[0].mxu0
    %v3478 = vadd.f32 %v1239, %v3477
    %v3479 = vpop.f32.mrb[0].mxu0
    %v3480 = vpop.f32.mrb[0].mxu0
    %v3481 = vadd.f32 %v1243, %v3480
    %v3482 = vpop.f32.mrb[0].mxu0
    %3483 = vmatprep.mubr.bf16.mxu0 0
    %3484 = vmatmul.mubr.bf16.gmra.mrb[0].mxu0 %v3294
    %v3485 = vpop.f32.mrb[0].mxu0
    %v3486 = vadd.f32 %v1249, %v3485
    %v3487 = vpop.f32.mrb[0].mxu0
    %v3488 = vpop.f32.mrb[0].mxu0
    %v3489 = vadd.f32 %v1253, %v3488
    %v3490 = vpop.f32.mrb[0].mxu0
    %3491 = vmatprep.mubr.bf16.mxu0 0
    %3492 = vmatmul.mubr.bf16.gmra.mrb[0].mxu0 %v3295
    %v3493 = vpop.f32.mrb[0].mxu0
    %v3494 = vadd.f32 %v1259, %v3493
    %v3495 = vpop.f32.mrb[0].mxu0
    %v3496 = vpop.f32.mrb[0].mxu0
    %v3497 = vadd.f32 %v1263, %v3496
    %v3498 = vpop.f32.mrb[0].mxu0
    %3499 = vmatprep.mubr.bf16.mxu0 0
    %3500 = vmatmul.mubr.bf16.gmra.mrb[0].mxu0 %v3296
    %v3501 = vpop.f32.mrb[0].mxu0
    %v3502 = vadd.f32 %v1269, %v3501
    %v3503 = vpop.f32.mrb[0].mxu0
    %v3504 = vpop.f32.mrb[0].mxu0
    %v3505 = vadd.f32 %v1273, %v3504
    %v3506 = vpop.f32.mrb[0].mxu0
    %3507 = vmatprep.mubr.bf16.mxu0 0
    %3508 = vmatmul.mubr.bf16.gmra.mrb[0].mxu0 %v3297
    %v3509 = vpop.f32.mrb[0].mxu0
    %v3510 = vadd.f32 %v1279, %v3509
    %v3511 = vpop.f32.mrb[0].mxu0
    %v3512 = vpop.f32.mrb[0].mxu0
    %v3513 = vadd.f32 %v1283, %v3512
    %v3514 = vpop.f32.mrb[0].mxu0
    %3515 = vmatprep.mubr.bf16.mxu0 0
    %3516 = vmatmul.mubr.bf16.gmra.mrb[0].mxu0 %v3298
    %v3517 = vpop.f32.mrb[0].mxu0
    %v3518 = vadd.f32 %v1289, %v3517
    %v3519 = vpop.f32.mrb[0].mxu0
    %v3520 = vpop.f32.mrb[0].mxu0
    %v3521 = vadd.f32 %v1293, %v3520
    %v3522 = vpop.f32.mrb[0].mxu0
    %3523 = vdwg.mxu0
    %vm3524 = vcmp.gt.f32.partialorder %v3398, 0.0
    %vm3525 = vcmp.gt.f32.partialorder %v3401, 0.0
    %vm3526 = vcmp.gt.f32.partialorder %v3406, 0.0
    %vm3527 = vcmp.gt.f32.partialorder %v3409, 0.0
    %vm3528 = vcmp.gt.f32.partialorder %v3414, 0.0
    %vm3529 = vcmp.gt.f32.partialorder %v3417, 0.0
    %vm3530 = vcmp.gt.f32.partialorder %v3422, 0.0
    %vm3531 = vcmp.gt.f32.partialorder %v3425, 0.0
    %vm3532 = vcmp.gt.f32.partialorder %v3430, 0.0
    %vm3533 = vcmp.gt.f32.partialorder %v3433, 0.0
    %vm3534 = vcmp.gt.f32.partialorder %v3438, 0.0
    %vm3535 = vcmp.gt.f32.partialorder %v3441, 0.0
    %vm3536 = vcmp.gt.f32.partialorder %v3446, 0.0
    %vm3537 = vcmp.gt.f32.partialorder %v3449, 0.0
    %vm3538 = vcmp.gt.f32.partialorder %v3454, 0.0
    %vm3539 = vcmp.gt.f32.partialorder %v3457, 0.0
    %vm3540 = vcmp.gt.f32.partialorder %v3462, 0.0
    %vm3541 = vcmp.gt.f32.partialorder %v3465, 0.0
    %vm3542 = vcmp.gt.f32.partialorder %v3470, 0.0
    %vm3543 = vcmp.gt.f32.partialorder %v3473, 0.0
    %vm3544 = vcmp.gt.f32.partialorder %v3478, 0.0
    %vm3545 = vcmp.gt.f32.partialorder %v3481, 0.0
    %vm3546 = vcmp.gt.f32.partialorder %v3486, 0.0
    %vm3547 = vcmp.gt.f32.partialorder %v3489, 0.0
    %vm3548 = vcmp.gt.f32.partialorder %v3494, 0.0
    %vm3549 = vcmp.gt.f32.partialorder %v3497, 0.0
    %vm3550 = vcmp.gt.f32.partialorder %v3502, 0.0
    %vm3551 = vcmp.gt.f32.partialorder %v3505, 0.0
    %vm3552 = vcmp.gt.f32.partialorder %v3510, 0.0
    %vm3553 = vcmp.gt.f32.partialorder %v3513, 0.0
    %vm3554 = vcmp.gt.f32.partialorder %v3518, 0.0
    %vm3555 = vcmp.gt.f32.partialorder %v3521, 0.0
    %v3556 = vmul.f32 %v3398, 0.01
    %v3557 = vmul.f32 %v3401, 0.01
    %v3558 = vmul.f32 %v3406, 0.01
    %v3559 = vmul.f32 %v3409, 0.01
    %v3560 = vmul.f32 %v3414, 0.01
    %v3561 = vmul.f32 %v3417, 0.01
    %v3562 = vmul.f32 %v3422, 0.01
    %v3563 = vmul.f32 %v3425, 0.01
    %v3564 = vmul.f32 %v3430, 0.01
    %v3565 = vmul.f32 %v3433, 0.01
    %v3566 = vmul.f32 %v3438, 0.01
    %v3567 = vmul.f32 %v3441, 0.01
    %v3568 = vmul.f32 %v3446, 0.01
    %v3569 = vmul.f32 %v3449, 0.01
    %v3570 = vmul.f32 %v3454, 0.01
    %v3571 = vmul.f32 %v3457, 0.01
    %v3572 = vmul.f32 %v3462, 0.01
    %v3573 = vmul.f32 %v3465, 0.01
    %v3574 = vmul.f32 %v3470, 0.01
    %v3575 = vmul.f32 %v3473, 0.01
    %v3576 = vmul.f32 %v3478, 0.01
    %v3577 = vmul.f32 %v3481, 0.01
    %v3578 = vmul.f32 %v3486, 0.01
    %v3579 = vmul.f32 %v3489, 0.01
    %v3580 = vmul.f32 %v3494, 0.01
    %v3581 = vmul.f32 %v3497, 0.01
    %v3582 = vmul.f32 %v3502, 0.01
    %v3583 = vmul.f32 %v3505, 0.01
    %v3584 = vmul.f32 %v3510, 0.01
    %v3585 = vmul.f32 %v3513, 0.01
    %v3586 = vmul.f32 %v3518, 0.01
    %v3587 = vmul.f32 %v3521, 0.01
    %v3588 = vsel %vm3524, %v3398, %v3556
    %v3589 = vsel %vm3525, %v3401, %v3557
    %v3590 = vsel %vm3526, %v3406, %v3558
    %v3591 = vsel %vm3527, %v3409, %v3559
    %v3592 = vsel %vm3528, %v3414, %v3560
    %v3593 = vsel %vm3529, %v3417, %v3561
    %v3594 = vsel %vm3530, %v3422, %v3562
    %v3595 = vsel %vm3531, %v3425, %v3563
    %v3596 = vsel %vm3532, %v3430, %v3564
    %v3597 = vsel %vm3533, %v3433, %v3565
    %v3598 = vsel %vm3534, %v3438, %v3566
    %v3599 = vsel %vm3535, %v3441, %v3567
    %v3600 = vsel %vm3536, %v3446, %v3568
    %v3601 = vsel %vm3537, %v3449, %v3569
    %v3602 = vsel %vm3538, %v3454, %v3570
    %v3603 = vsel %vm3539, %v3457, %v3571
    %v3604 = vsel %vm3540, %v3462, %v3572
    %v3605 = vsel %vm3541, %v3465, %v3573
    %v3606 = vsel %vm3542, %v3470, %v3574
    %v3607 = vsel %vm3543, %v3473, %v3575
    %v3608 = vsel %vm3544, %v3478, %v3576
    %v3609 = vsel %vm3545, %v3481, %v3577
    %v3610 = vsel %vm3546, %v3486, %v3578
    %v3611 = vsel %vm3547, %v3489, %v3579
    %v3612 = vsel %vm3548, %v3494, %v3580
    %v3613 = vsel %vm3549, %v3497, %v3581
    %v3614 = vsel %vm3550, %v3502, %v3582
    %v3615 = vsel %vm3551, %v3505, %v3583
    %v3616 = vsel %vm3552, %v3510, %v3584
    %v3617 = vsel %vm3553, %v3513, %v3585
    %v3618 = vsel %vm3554, %v3518, %v3586
    %v3619 = vsel %vm3555, %v3521, %v3587
    %v3620 = vpack.c.bf16 %v3589, %v3588
    %v3621 = vpack.c.bf16 %v3591, %v3590
    %v3622 = vpack.c.bf16 %v3593, %v3592
    %v3623 = vpack.c.bf16 %v3595, %v3594
    %v3624 = vpack.c.bf16 %v3597, %v3596
    %v3625 = vpack.c.bf16 %v3599, %v3598
    %v3626 = vpack.c.bf16 %v3601, %v3600
    %v3627 = vpack.c.bf16 %v3603, %v3602
    %v3628 = vpack.c.bf16 %v3605, %v3604
    %v3629 = vpack.c.bf16 %v3607, %v3606
    %v3630 = vpack.c.bf16 %v3609, %v3608
    %v3631 = vpack.c.bf16 %v3611, %v3610
    %v3632 = vpack.c.bf16 %v3613, %v3612
    %v3633 = vpack.c.bf16 %v3615, %v3614
    %v3634 = vpack.c.bf16 %v3617, %v3616
    %v3635 = vpack.c.bf16 %v3619, %v3618
    %v3636 = vld [vmem:[#allocation7] sm:$0xf]
    %v3637 = vld [vmem:[#allocation7 + $0x4] sm:$0xf]
    %v3638 = vld [vmem:[#allocation7 + $0x8] sm:$0xf]
    %v3639 = vld [vmem:[#allocation7 + $0xc] sm:$0xf]
    %v3640 = vld [vmem:[#allocation7 + $0x10] sm:$0xf]
    %v3641 = vld [vmem:[#allocation7 + $0x14] sm:$0xf]
    %v3642 = vld [vmem:[#allocation7 + $0x18] sm:$0xf]
    %v3643 = vld [vmem:[#allocation7 + $0x1c] sm:$0xf]
    %v3644 = vld [vmem:[#allocation7 + $0x20] sm:$0xf]
    %v3645 = vld [vmem:[#allocation7 + $0x24] sm:$0xf]
    %v3646 = vld [vmem:[#allocation7 + $0x28] sm:$0xf]
    %v3647 = vld [vmem:[#allocation7 + $0x2c] sm:$0xf]
    %v3648 = vld [vmem:[#allocation7 + $0x30] sm:$0xf]
    %v3649 = vld [vmem:[#allocation7 + $0x34] sm:$0xf]
    %v3650 = vld [vmem:[#allocation7 + $0x38] sm:$0xf]
    %v3651 = vld [vmem:[#allocation7 + $0x3c] sm:$0xf]
    %v3668 = vunpack.c.l.b16 %v3636
    %v3669 = vunpack.c.l.b16 %v3637
    %v3670 = vunpack.c.l.b16 %v3638
    %v3671 = vunpack.c.l.b16 %v3639
    %v3672 = vunpack.c.l.b16 %v3640
    %v3673 = vunpack.c.l.b16 %v3641
    %v3674 = vunpack.c.l.b16 %v3642
    %v3675 = vunpack.c.l.b16 %v3643
    %v3676 = vunpack.c.l.b16 %v3644
    %v3677 = vunpack.c.l.b16 %v3645
    %v3678 = vunpack.c.l.b16 %v3646
    %v3679 = vunpack.c.l.b16 %v3647
    %v3680 = vunpack.c.l.b16 %v3648
    %v3681 = vunpack.c.l.b16 %v3649
    %v3682 = vunpack.c.l.b16 %v3650
    %v3683 = vunpack.c.l.b16 %v3651
    %v3684 = vpack.c.b16 %v3669, %v3668
    %v3685 = vpack.c.b16 %v3671, %v3670
    %v3686 = vpack.c.b16 %v3673, %v3672
    %v3687 = vpack.c.b16 %v3675, %v3674
    %v3688 = vpack.c.b16 %v3677, %v3676
    %v3689 = vpack.c.b16 %v3679, %v3678
    %v3690 = vpack.c.b16 %v3681, %v3680
    %v3691 = vpack.c.b16 %v3683, %v3682
    %3700 = vmatprep.subr.bf16.mxu0 0
    %3701 = vmatpush1.bf16.msra.mxu0 %v3684
    %3702 = vmatprep.subr.bf16.mxu0 0
    %3703 = vmatpush1.bf16.msra.mxu0 %v3685
    %3704 = vmatprep.subr.bf16.mxu0 0
    %3705 = vmatpush1.bf16.msra.mxu0 %v3686
    %3706 = vmatprep.subr.bf16.mxu0 0
    %3707 = vmatpush1.bf16.msra.mxu0 %v3687
    %3708 = vmatprep.subr.bf16.mxu0 0
    %3709 = vmatpush1.bf16.msra.mxu0 %v3688
    %3710 = vmatprep.subr.bf16.mxu0 0
    %3711 = vmatpush1.bf16.msra.mxu0 %v3689
    %3712 = vmatprep.subr.bf16.mxu0 0
    %3713 = vmatpush1.bf16.msra.mxu0 %v3690
    %3714 = vmatprep.subr.bf16.mxu0 0
    %3715 = vmatpush1.bf16.msra.mxu0 %v3691
    %3716 = vmatprep.subr.bf16.mxu0 0
    %3717 = vmatpush1.bf16.msra.mxu0 0
    %3718 = vmatprep.subr.bf16.mxu0 0
    %3719 = vmatpush1.bf16.msra.mxu0 0
    %3720 = vmatprep.subr.bf16.mxu0 0
    %3721 = vmatpush1.bf16.msra.mxu0 0
    %3722 = vmatprep.subr.bf16.mxu0 0
    %3723 = vmatpush1.bf16.msra.mxu0 0
    %3724 = vmatprep.subr.bf16.mxu0 0
    %3725 = vmatpush1.bf16.msra.mxu0 0
    %3726 = vmatprep.subr.bf16.mxu0 0
    %3727 = vmatpush1.bf16.msra.mxu0 0
    %3728 = vmatprep.subr.bf16.mxu0 0
    %3729 = vmatpush1.bf16.msra.mxu0 0
    %3730 = vmatprep.subr.bf16.mxu0 0
    %3731 = vmatpush1.bf16.msra.mxu0 0
    %3732 = vmatprep.mubr.bf16.mxu0 0
    %3733 = vmatmul.mubr.bf16.gmra.mrb[0].mxu0 %v3620
    %v3734 = vpop.f32.mrb[0].mxu0
    %v3735 = vadd.f32 %v1330, %v3734
    %v3736 = vpop.f32.mrb[0].mxu0
    %v3737 = vpop.f32.mrb[0].mxu0
    %v3738 = vadd.f32 %v1333, %v3737
    %v3739 = vpop.f32.mrb[0].mxu0
    %3740 = vmatprep.mubr.bf16.mxu0 0
    %3741 = vmatmul.mubr.bf16.gmra.mrb[0].mxu0 %v3621
    %v3742 = vpop.f32.mrb[0].mxu0
    %v3743 = vadd.f32 %v1338, %v3742
    %v3744 = vpop.f32.mrb[0].mxu0
    %v3745 = vpop.f32.mrb[0].mxu0
    %v3746 = vadd.f32 %v1341, %v3745
    %v3747 = vpop.f32.mrb[0].mxu0
    %3748 = vmatprep.mubr.bf16.mxu0 0
    %3749 = vmatmul.mubr.bf16.gmra.mrb[0].mxu0 %v3622
    %v3750 = vpop.f32.mrb[0].mxu0
    %v3751 = vadd.f32 %v1346, %v3750
    %v3752 = vpop.f32.mrb[0].mxu0
    %v3753 = vpop.f32.mrb[0].mxu0
    %v3754 = vadd.f32 %v1349, %v3753
    %v3755 = vpop.f32.mrb[0].mxu0
    %3756 = vmatprep.mubr.bf16.mxu0 0
    %3757 = vmatmul.mubr.bf16.gmra.mrb[0].mxu0 %v3623
    %v3758 = vpop.f32.mrb[0].mxu0
    %v3759 = vadd.f32 %v1354, %v3758
    %v3760 = vpop.f32.mrb[0].mxu0
    %v3761 = vpop.f32.mrb[0].mxu0
    %v3762 = vadd.f32 %v1357, %v3761
    %v3763 = vpop.f32.mrb[0].mxu0
    %3764 = vmatprep.mubr.bf16.mxu0 0
    %3765 = vmatmul.mubr.bf16.gmra.mrb[0].mxu0 %v3624
    %v3766 = vpop.f32.mrb[0].mxu0
    %v3767 = vadd.f32 %v1362, %v3766
    %v3768 = vpop.f32.mrb[0].mxu0
    %v3769 = vpop.f32.mrb[0].mxu0
    %v3770 = vadd.f32 %v1365, %v3769
    %v3771 = vpop.f32.mrb[0].mxu0
    %3772 = vmatprep.mubr.bf16.mxu0 0
    %3773 = vmatmul.mubr.bf16.gmra.mrb[0].mxu0 %v3625
    %v3774 = vpop.f32.mrb[0].mxu0
    %v3775 = vadd.f32 %v1370, %v3774
    %v3776 = vpop.f32.mrb[0].mxu0
    %v3777 = vpop.f32.mrb[0].mxu0
    %v3778 = vadd.f32 %v1373, %v3777
    %v3779 = vpop.f32.mrb[0].mxu0
    %3780 = vmatprep.mubr.bf16.mxu0 0
    %3781 = vmatmul.mubr.bf16.gmra.mrb[0].mxu0 %v3626
    %v3782 = vpop.f32.mrb[0].mxu0
    %v3783 = vadd.f32 %v1378, %v3782
    %v3784 = vpop.f32.mrb[0].mxu0
    %v3785 = vpop.f32.mrb[0].mxu0
    %v3786 = vadd.f32 %v1381, %v3785
    %v3787 = vpop.f32.mrb[0].mxu0
    %3788 = vmatprep.mubr.bf16.mxu0 0
    %3789 = vmatmul.mubr.bf16.gmra.mrb[0].mxu0 %v3627
    %v3790 = vpop.f32.mrb[0].mxu0
    %v3791 = vadd.f32 %v1386, %v3790
    %v3792 = vpop.f32.mrb[0].mxu0
    %v3793 = vpop.f32.mrb[0].mxu0
    %v3794 = vadd.f32 %v1389, %v3793
    %v3795 = vpop.f32.mrb[0].mxu0
    %3796 = vmatprep.mubr.bf16.mxu0 0
    %3797 = vmatmul.mubr.bf16.gmra.mrb[0].mxu0 %v3628
    %v3798 = vpop.f32.mrb[0].mxu0
    %v3799 = vadd.f32 %v1394, %v3798
    %v3800 = vpop.f32.mrb[0].mxu0
    %v3801 = vpop.f32.mrb[0].mxu0
    %v3802 = vadd.f32 %v1397, %v3801
    %v3803 = vpop.f32.mrb[0].mxu0
    %3804 = vmatprep.mubr.bf16.mxu0 0
    %3805 = vmatmul.mubr.bf16.gmra.mrb[0].mxu0 %v3629
    %v3806 = vpop.f32.mrb[0].mxu0
    %v3807 = vadd.f32 %v1402, %v3806
    %v3808 = vpop.f32.mrb[0].mxu0
    %v3809 = vpop.f32.mrb[0].mxu0
    %v3810 = vadd.f32 %v1405, %v3809
    %v3811 = vpop.f32.mrb[0].mxu0
    %3812 = vmatprep.mubr.bf16.mxu0 0
    %3813 = vmatmul.mubr.bf16.gmra.mrb[0].mxu0 %v3630
    %v3814 = vpop.f32.mrb[0].mxu0
    %v3815 = vadd.f32 %v1410, %v3814
    %v3816 = vpop.f32.mrb[0].mxu0
    %v3817 = vpop.f32.mrb[0].mxu0
    %v3818 = vadd.f32 %v1413, %v3817
    %v3819 = vpop.f32.mrb[0].mxu0
    %3820 = vmatprep.mubr.bf16.mxu0 0
    %3821 = vmatmul.mubr.bf16.gmra.mrb[0].mxu0 %v3631
    %v3822 = vpop.f32.mrb[0].mxu0
    %v3823 = vadd.f32 %v1418, %v3822
    %v3824 = vpop.f32.mrb[0].mxu0
    %v3825 = vpop.f32.mrb[0].mxu0
    %v3826 = vadd.f32 %v1421, %v3825
    %v3827 = vpop.f32.mrb[0].mxu0
    %3828 = vmatprep.mubr.bf16.mxu0 0
    %3829 = vmatmul.mubr.bf16.gmra.mrb[0].mxu0 %v3632
    %v3830 = vpop.f32.mrb[0].mxu0
    %v3831 = vadd.f32 %v1426, %v3830
    %v3832 = vpop.f32.mrb[0].mxu0
    %v3833 = vpop.f32.mrb[0].mxu0
    %v3834 = vadd.f32 %v1429, %v3833
    %v3835 = vpop.f32.mrb[0].mxu0
    %3836 = vmatprep.mubr.bf16.mxu0 0
    %3837 = vmatmul.mubr.bf16.gmra.mrb[0].mxu0 %v3633
    %v3838 = vpop.f32.mrb[0].mxu0
    %v3839 = vadd.f32 %v1434, %v3838
    %v3840 = vpop.f32.mrb[0].mxu0
    %v3841 = vpop.f32.mrb[0].mxu0
    %v3842 = vadd.f32 %v1437, %v3841
    %v3843 = vpop.f32.mrb[0].mxu0
    %3844 = vmatprep.mubr.bf16.mxu0 0
    %3845 = vmatmul.mubr.bf16.gmra.mrb[0].mxu0 %v3634
    %v3846 = vpop.f32.mrb[0].mxu0
    %v3847 = vadd.f32 %v1442, %v3846
    %v3848 = vpop.f32.mrb[0].mxu0
    %v3849 = vpop.f32.mrb[0].mxu0
    %v3850 = vadd.f32 %v1445, %v3849
    %v3851 = vpop.f32.mrb[0].mxu0
    %3852 = vmatprep.mubr.bf16.mxu0 0
    %3853 = vmatmul.mubr.bf16.gmra.mrb[0].mxu0 %v3635
    %v3854 = vpop.f32.mrb[0].mxu0
    %v3855 = vadd.f32 %v1450, %v3854
    %v3856 = vpop.f32.mrb[0].mxu0
    %v3857 = vpop.f32.mrb[0].mxu0
    %v3858 = vadd.f32 %v1453, %v3857
    %v3859 = vpop.f32.mrb[0].mxu0
    %3860 = vdwg.mxu0
    %vm3861 = vcmp.gt.f32.partialorder %v3735, 0.0
    %vm3862 = vcmp.gt.f32.partialorder %v3738, 0.0
    %vm3863 = vcmp.gt.f32.partialorder %v3743, 0.0
    %vm3864 = vcmp.gt.f32.partialorder %v3746, 0.0
    %vm3865 = vcmp.gt.f32.partialorder %v3751, 0.0
    %vm3866 = vcmp.gt.f32.partialorder %v3754, 0.0
    %vm3867 = vcmp.gt.f32.partialorder %v3759, 0.0
    %vm3868 = vcmp.gt.f32.partialorder %v3762, 0.0
    %vm3869 = vcmp.gt.f32.partialorder %v3767, 0.0
    %vm3870 = vcmp.gt.f32.partialorder %v3770, 0.0
    %vm3871 = vcmp.gt.f32.partialorder %v3775, 0.0
    %vm3872 = vcmp.gt.f32.partialorder %v3778, 0.0
    %vm3873 = vcmp.gt.f32.partialorder %v3783, 0.0
    %vm3874 = vcmp.gt.f32.partialorder %v3786, 0.0
    %vm3875 = vcmp.gt.f32.partialorder %v3791, 0.0
    %vm3876 = vcmp.gt.f32.partialorder %v3794, 0.0
    %vm3877 = vcmp.gt.f32.partialorder %v3799, 0.0
    %vm3878 = vcmp.gt.f32.partialorder %v3802, 0.0
    %vm3879 = vcmp.gt.f32.partialorder %v3807, 0.0
    %vm3880 = vcmp.gt.f32.partialorder %v3810, 0.0
    %vm3881 = vcmp.gt.f32.partialorder %v3815, 0.0
    %vm3882 = vcmp.gt.f32.partialorder %v3818, 0.0
    %vm3883 = vcmp.gt.f32.partialorder %v3823, 0.0
    %vm3884 = vcmp.gt.f32.partialorder %v3826, 0.0
    %vm3885 = vcmp.gt.f32.partialorder %v3831, 0.0
    %vm3886 = vcmp.gt.f32.partialorder %v3834, 0.0
    %vm3887 = vcmp.gt.f32.partialorder %v3839, 0.0
    %vm3888 = vcmp.gt.f32.partialorder %v3842, 0.0
    %vm3889 = vcmp.gt.f32.partialorder %v3847, 0.0
    %vm3890 = vcmp.gt.f32.partialorder %v3850, 0.0
    %vm3891 = vcmp.gt.f32.partialorder %v3855, 0.0
    %vm3892 = vcmp.gt.f32.partialorder %v3858, 0.0
    %v3893 = vmul.f32 %v3735, 0.01
    %v3894 = vmul.f32 %v3738, 0.01
    %v3895 = vmul.f32 %v3743, 0.01
    %v3896 = vmul.f32 %v3746, 0.01
    %v3897 = vmul.f32 %v3751, 0.01
    %v3898 = vmul.f32 %v3754, 0.01
    %v3899 = vmul.f32 %v3759, 0.01
    %v3900 = vmul.f32 %v3762, 0.01
    %v3901 = vmul.f32 %v3767, 0.01
    %v3902 = vmul.f32 %v3770, 0.01
    %v3903 = vmul.f32 %v3775, 0.01
    %v3904 = vmul.f32 %v3778, 0.01
    %v3905 = vmul.f32 %v3783, 0.01
    %v3906 = vmul.f32 %v3786, 0.01
    %v3907 = vmul.f32 %v3791, 0.01
    %v3908 = vmul.f32 %v3794, 0.01
    %v3909 = vmul.f32 %v3799, 0.01
    %v3910 = vmul.f32 %v3802, 0.01
    %v3911 = vmul.f32 %v3807, 0.01
    %v3912 = vmul.f32 %v3810, 0.01
    %v3913 = vmul.f32 %v3815, 0.01
    %v3914 = vmul.f32 %v3818, 0.01
    %v3915 = vmul.f32 %v3823, 0.01
    %v3916 = vmul.f32 %v3826, 0.01
    %v3917 = vmul.f32 %v3831, 0.01
    %v3918 = vmul.f32 %v3834, 0.01
    %v3919 = vmul.f32 %v3839, 0.01
    %v3920 = vmul.f32 %v3842, 0.01
    %v3921 = vmul.f32 %v3847, 0.01
    %v3922 = vmul.f32 %v3850, 0.01
    %v3923 = vmul.f32 %v3855, 0.01
    %v3924 = vmul.f32 %v3858, 0.01
    %v3925 = vsel %vm3861, %v3735, %v3893
    %v3926 = vsel %vm3862, %v3738, %v3894
    %v3927 = vsel %vm3863, %v3743, %v3895
    %v3928 = vsel %vm3864, %v3746, %v3896
    %v3929 = vsel %vm3865, %v3751, %v3897
    %v3930 = vsel %vm3866, %v3754, %v3898
    %v3931 = vsel %vm3867, %v3759, %v3899
    %v3932 = vsel %vm3868, %v3762, %v3900
    %v3933 = vsel %vm3869, %v3767, %v3901
    %v3934 = vsel %vm3870, %v3770, %v3902
    %v3935 = vsel %vm3871, %v3775, %v3903
    %v3936 = vsel %vm3872, %v3778, %v3904
    %v3937 = vsel %vm3873, %v3783, %v3905
    %v3938 = vsel %vm3874, %v3786, %v3906
    %v3939 = vsel %vm3875, %v3791, %v3907
    %v3940 = vsel %vm3876, %v3794, %v3908
    %v3941 = vsel %vm3877, %v3799, %v3909
    %v3942 = vsel %vm3878, %v3802, %v3910
    %v3943 = vsel %vm3879, %v3807, %v3911
    %v3944 = vsel %vm3880, %v3810, %v3912
    %v3945 = vsel %vm3881, %v3815, %v3913
    %v3946 = vsel %vm3882, %v3818, %v3914
    %v3947 = vsel %vm3883, %v3823, %v3915
    %v3948 = vsel %vm3884, %v3826, %v3916
    %v3949 = vsel %vm3885, %v3831, %v3917
    %v3950 = vsel %vm3886, %v3834, %v3918
    %v3951 = vsel %vm3887, %v3839, %v3919
    %v3952 = vsel %vm3888, %v3842, %v3920
    %v3953 = vsel %vm3889, %v3847, %v3921
    %v3954 = vsel %vm3890, %v3850, %v3922
    %v3955 = vsel %vm3891, %v3855, %v3923
    %v3956 = vsel %vm3892, %v3858, %v3924
    %v3957 = vpack.c.bf16 %v3926, %v3925
    %v3958 = vpack.c.bf16 %v3928, %v3927
    %v3959 = vpack.c.bf16 %v3930, %v3929
    %v3960 = vpack.c.bf16 %v3932, %v3931
    %v3961 = vpack.c.bf16 %v3934, %v3933
    %v3962 = vpack.c.bf16 %v3936, %v3935
    %v3963 = vpack.c.bf16 %v3938, %v3937
    %v3964 = vpack.c.bf16 %v3940, %v3939
    %v3965 = vpack.c.bf16 %v3942, %v3941
    %v3966 = vpack.c.bf16 %v3944, %v3943
    %v3967 = vpack.c.bf16 %v3946, %v3945
    %v3968 = vpack.c.bf16 %v3948, %v3947
    %v3969 = vpack.c.bf16 %v3950, %v3949
    %v3970 = vpack.c.bf16 %v3952, %v3951
    %v3971 = vpack.c.bf16 %v3954, %v3953
    %v3972 = vpack.c.bf16 %v3956, %v3955
    %v3973 = vld [vmem:[#allocation8] sm:$0xf]
    %v3974 = vld [vmem:[#allocation8 + $0x4] sm:$0xf]
    %v3975 = vld [vmem:[#allocation8 + $0x8] sm:$0xf]
    %v3976 = vld [vmem:[#allocation8 + $0xc] sm:$0xf]
    %v3977 = vld [vmem:[#allocation8 + $0x10] sm:$0xf]
    %v3978 = vld [vmem:[#allocation8 + $0x14] sm:$0xf]
    %v3979 = vld [vmem:[#allocation8 + $0x18] sm:$0xf]
    %v3980 = vld [vmem:[#allocation8 + $0x1c] sm:$0xf]
    %v3981 = vld [vmem:[#allocation8 + $0x20] sm:$0xf]
    %v3982 = vld [vmem:[#allocation8 + $0x24] sm:$0xf]
    %v3983 = vld [vmem:[#allocation8 + $0x28] sm:$0xf]
    %v3984 = vld [vmem:[#allocation8 + $0x2c] sm:$0xf]
    %v3985 = vld [vmem:[#allocation8 + $0x30] sm:$0xf]
    %v3986 = vld [vmem:[#allocation8 + $0x34] sm:$0xf]
    %v3987 = vld [vmem:[#allocation8 + $0x38] sm:$0xf]
    %v3988 = vld [vmem:[#allocation8 + $0x3c] sm:$0xf]
    %v3989 = vld [vmem:[%s8] sm:$0x1]
    %v3991 = vlaneseq
    %v3992 = vshrl.u32 %v3991, 7
    %v3993 = vsub.s32 0, %v3992
    %v3994 = vrot.slane %v3989, %v3993
    %v4012 = vunpack.c.l.b16 %v3973
    %v4013 = vunpack.c.l.b16 %v3974
    %v4014 = vunpack.c.l.b16 %v3975
    %v4015 = vunpack.c.l.b16 %v3976
    %v4016 = vunpack.c.l.b16 %v3977
    %v4017 = vunpack.c.l.b16 %v3978
    %v4018 = vunpack.c.l.b16 %v3979
    %v4019 = vunpack.c.l.b16 %v3980
    %v4020 = vunpack.c.l.b16 %v3981
    %v4021 = vunpack.c.l.b16 %v3982
    %v4022 = vunpack.c.l.b16 %v3983
    %v4023 = vunpack.c.l.b16 %v3984
    %v4024 = vunpack.c.l.b16 %v3985
    %v4025 = vunpack.c.l.b16 %v3986
    %v4026 = vunpack.c.l.b16 %v3987
    %v4027 = vunpack.c.l.b16 %v3988
    %v4028 = vpack.c.b16 %v4013, %v4012
    %v4029 = vpack.c.b16 %v4015, %v4014
    %v4030 = vpack.c.b16 %v4017, %v4016
    %v4031 = vpack.c.b16 %v4019, %v4018
    %v4032 = vpack.c.b16 %v4021, %v4020
    %v4033 = vpack.c.b16 %v4023, %v4022
    %v4034 = vpack.c.b16 %v4025, %v4024
    %v4035 = vpack.c.b16 %v4027, %v4026
    %4044 = vmatprep.subr.bf16.mxu0 0
    %4045 = vmatpush1.bf16.msra.mxu0 %v4028
    %4046 = vmatprep.subr.bf16.mxu0 0
    %4047 = vmatpush1.bf16.msra.mxu0 %v4029
    %4048 = vmatprep.subr.bf16.mxu0 0
    %4049 = vmatpush1.bf16.msra.mxu0 %v4030
    %4050 = vmatprep.subr.bf16.mxu0 0
    %4051 = vmatpush1.bf16.msra.mxu0 %v4031
    %4052 = vmatprep.subr.bf16.mxu0 0
    %4053 = vmatpush1.bf16.msra.mxu0 %v4032
    %4054 = vmatprep.subr.bf16.mxu0 0
    %4055 = vmatpush1.bf16.msra.mxu0 %v4033
    %4056 = vmatprep.subr.bf16.mxu0 0
    %4057 = vmatpush1.bf16.msra.mxu0 %v4034
    %4058 = vmatprep.subr.bf16.mxu0 0
    %4059 = vmatpush1.bf16.msra.mxu0 %v4035
    %4060 = vmatprep.subr.bf16.mxu0 0
    %4061 = vmatpush1.bf16.msra.mxu0 0
    %4062 = vmatprep.subr.bf16.mxu0 0
    %4063 = vmatpush1.bf16.msra.mxu0 0
    %4064 = vmatprep.subr.bf16.mxu0 0
    %4065 = vmatpush1.bf16.msra.mxu0 0
    %4066 = vmatprep.subr.bf16.mxu0 0
    %4067 = vmatpush1.bf16.msra.mxu0 0
    %4068 = vmatprep.subr.bf16.mxu0 0
    %4069 = vmatpush1.bf16.msra.mxu0 0
    %4070 = vmatprep.subr.bf16.mxu0 0
    %4071 = vmatpush1.bf16.msra.mxu0 0
    %4072 = vmatprep.subr.bf16.mxu0 0
    %4073 = vmatpush1.bf16.msra.mxu0 0
    %4074 = vmatprep.subr.bf16.mxu0 0
    %4075 = vmatpush1.bf16.msra.mxu0 0
    %4076 = vmatprep.mubr.bf16.mxu0 0
    %4077 = vmatmul.mubr.bf16.gmra.mrb[0].mxu0 %v3957
    %v4078 = vpop.f32.mrb[0].mxu0
    %v4079 = vadd.f32 %v3994, %v4078
    %v4080 = vpop.f32.mrb[0].mxu0
    %v4081 = vpop.f32.mrb[0].mxu0
    %v4082 = vadd.f32 %v3994, %v4081
    %v4083 = vpop.f32.mrb[0].mxu0
    %4084 = vmatprep.mubr.bf16.mxu0 0
    %4085 = vmatmul.mubr.bf16.gmra.mrb[0].mxu0 %v3958
    %v4086 = vpop.f32.mrb[0].mxu0
    %v4087 = vadd.f32 %v3994, %v4086
    %v4088 = vpop.f32.mrb[0].mxu0
    %v4089 = vpop.f32.mrb[0].mxu0
    %v4090 = vadd.f32 %v3994, %v4089
    %v4091 = vpop.f32.mrb[0].mxu0
    %4092 = vmatprep.mubr.bf16.mxu0 0
    %4093 = vmatmul.mubr.bf16.gmra.mrb[0].mxu0 %v3959
    %v4094 = vpop.f32.mrb[0].mxu0
    %v4095 = vadd.f32 %v3994, %v4094
    %v4096 = vpop.f32.mrb[0].mxu0
    %v4097 = vpop.f32.mrb[0].mxu0
    %v4098 = vadd.f32 %v3994, %v4097
    %v4099 = vpop.f32.mrb[0].mxu0
    %4100 = vmatprep.mubr.bf16.mxu0 0
    %4101 = vmatmul.mubr.bf16.gmra.mrb[0].mxu0 %v3960
    %v4102 = vpop.f32.mrb[0].mxu0
    %v4103 = vadd.f32 %v3994, %v4102
    %v4104 = vpop.f32.mrb[0].mxu0
    %v4105 = vpop.f32.mrb[0].mxu0
    %v4106 = vadd.f32 %v3994, %v4105
    %v4107 = vpop.f32.mrb[0].mxu0
    %4108 = vmatprep.mubr.bf16.mxu0 0
    %4109 = vmatmul.mubr.bf16.gmra.mrb[0].mxu0 %v3961
    %v4110 = vpop.f32.mrb[0].mxu0
    %v4111 = vadd.f32 %v3994, %v4110
    %v4112 = vpop.f32.mrb[0].mxu0
    %v4113 = vpop.f32.mrb[0].mxu0
    %v4114 = vadd.f32 %v3994, %v4113
    %v4115 = vpop.f32.mrb[0].mxu0
    %4116 = vmatprep.mubr.bf16.mxu0 0
    %4117 = vmatmul.mubr.bf16.gmra.mrb[0].mxu0 %v3962
    %v4118 = vpop.f32.mrb[0].mxu0
    %v4119 = vadd.f32 %v3994, %v4118
    %v4120 = vpop.f32.mrb[0].mxu0
    %v4121 = vpop.f32.mrb[0].mxu0
    %v4122 = vadd.f32 %v3994, %v4121
    %v4123 = vpop.f32.mrb[0].mxu0
    %4124 = vmatprep.mubr.bf16.mxu0 0
    %4125 = vmatmul.mubr.bf16.gmra.mrb[0].mxu0 %v3963
    %v4126 = vpop.f32.mrb[0].mxu0
    %v4127 = vadd.f32 %v3994, %v4126
    %v4128 = vpop.f32.mrb[0].mxu0
    %v4129 = vpop.f32.mrb[0].mxu0
    %v4130 = vadd.f32 %v3994, %v4129
    %v4131 = vpop.f32.mrb[0].mxu0
    %4132 = vmatprep.mubr.bf16.mxu0 0
    %4133 = vmatmul.mubr.bf16.gmra.mrb[0].mxu0 %v3964
    %v4134 = vpop.f32.mrb[0].mxu0
    %v4135 = vadd.f32 %v3994, %v4134
    %v4136 = vpop.f32.mrb[0].mxu0
    %v4137 = vpop.f32.mrb[0].mxu0
    %v4138 = vadd.f32 %v3994, %v4137
    %v4139 = vpop.f32.mrb[0].mxu0
    %4140 = vmatprep.mubr.bf16.mxu0 0
    %4141 = vmatmul.mubr.bf16.gmra.mrb[0].mxu0 %v3965
    %v4142 = vpop.f32.mrb[0].mxu0
    %v4143 = vadd.f32 %v3994, %v4142
    %v4144 = vpop.f32.mrb[0].mxu0
    %v4145 = vpop.f32.mrb[0].mxu0
    %v4146 = vadd.f32 %v3994, %v4145
    %v4147 = vpop.f32.mrb[0].mxu0
    %4148 = vmatprep.mubr.bf16.mxu0 0
    %4149 = vmatmul.mubr.bf16.gmra.mrb[0].mxu0 %v3966
    %v4150 = vpop.f32.mrb[0].mxu0
    %v4151 = vadd.f32 %v3994, %v4150
    %v4152 = vpop.f32.mrb[0].mxu0
    %v4153 = vpop.f32.mrb[0].mxu0
    %v4154 = vadd.f32 %v3994, %v4153
    %v4155 = vpop.f32.mrb[0].mxu0
    %4156 = vmatprep.mubr.bf16.mxu0 0
    %4157 = vmatmul.mubr.bf16.gmra.mrb[0].mxu0 %v3967
    %v4158 = vpop.f32.mrb[0].mxu0
    %v4159 = vadd.f32 %v3994, %v4158
    %v4160 = vpop.f32.mrb[0].mxu0
    %v4161 = vpop.f32.mrb[0].mxu0
    %v4162 = vadd.f32 %v3994, %v4161
    %v4163 = vpop.f32.mrb[0].mxu0
    %4164 = vmatprep.mubr.bf16.mxu0 0
    %4165 = vmatmul.mubr.bf16.gmra.mrb[0].mxu0 %v3968
    %v4166 = vpop.f32.mrb[0].mxu0
    %v4167 = vadd.f32 %v3994, %v4166
    %v4168 = vpop.f32.mrb[0].mxu0
    %v4169 = vpop.f32.mrb[0].mxu0
    %v4170 = vadd.f32 %v3994, %v4169
    %v4171 = vpop.f32.mrb[0].mxu0
    %4172 = vmatprep.mubr.bf16.mxu0 0
    %4173 = vmatmul.mubr.bf16.gmra.mrb[0].mxu0 %v3969
    %v4174 = vpop.f32.mrb[0].mxu0
    %v4175 = vadd.f32 %v3994, %v4174
    %v4176 = vpop.f32.mrb[0].mxu0
    %v4177 = vpop.f32.mrb[0].mxu0
    %v4178 = vadd.f32 %v3994, %v4177
    %v4179 = vpop.f32.mrb[0].mxu0
    %4180 = vmatprep.mubr.bf16.mxu0 0
    %4181 = vmatmul.mubr.bf16.gmra.mrb[0].mxu0 %v3970
    %v4182 = vpop.f32.mrb[0].mxu0
    %v4183 = vadd.f32 %v3994, %v4182
    %v4184 = vpop.f32.mrb[0].mxu0
    %v4185 = vpop.f32.mrb[0].mxu0
    %v4186 = vadd.f32 %v3994, %v4185
    %v4187 = vpop.f32.mrb[0].mxu0
    %4188 = vmatprep.mubr.bf16.mxu0 0
    %4189 = vmatmul.mubr.bf16.gmra.mrb[0].mxu0 %v3971
    %v4190 = vpop.f32.mrb[0].mxu0
    %v4191 = vadd.f32 %v3994, %v4190
    %v4192 = vpop.f32.mrb[0].mxu0
    %v4193 = vpop.f32.mrb[0].mxu0
    %v4194 = vadd.f32 %v3994, %v4193
    %v4195 = vpop.f32.mrb[0].mxu0
    %4196 = vmatprep.mubr.bf16.mxu0 0
    %4197 = vmatmul.mubr.bf16.gmra.mrb[0].mxu0 %v3972
    %v4198 = vpop.f32.mrb[0].mxu0
    %v4199 = vadd.f32 %v3994, %v4198
    %v4200 = vpop.f32.mrb[0].mxu0
    %v4201 = vpop.f32.mrb[0].mxu0
    %v4202 = vadd.f32 %v3994, %v4201
    %v4203 = vpop.f32.mrb[0].mxu0
    %4204 = vdwg.mxu0
    %4205 = vst [vmem:[#allocation10] sm:$0xff] %v4079
    %4206 = vst [vmem:[#allocation10 + $0x8] sm:$0xff] %v4082
    %4207 = vst [vmem:[#allocation10 + $0x10] sm:$0xff] %v4087
    %4208 = vst [vmem:[#allocation10 + $0x18] sm:$0xff] %v4090
    %4209 = vst [vmem:[#allocation10 + $0x20] sm:$0xff] %v4095
    %4210 = vst [vmem:[#allocation10 + $0x28] sm:$0xff] %v4098
    %4211 = vst [vmem:[#allocation10 + $0x30] sm:$0xff] %v4103
    %4212 = vst [vmem:[#allocation10 + $0x38] sm:$0xff] %v4106
    %4213 = vst [vmem:[#allocation10 + $0x40] sm:$0xff] %v4111
    %4214 = vst [vmem:[#allocation10 + $0x48] sm:$0xff] %v4114
    %4215 = vst [vmem:[#allocation10 + $0x50] sm:$0xff] %v4119
    %4216 = vst [vmem:[#allocation10 + $0x58] sm:$0xff] %v4122
    %4217 = vst [vmem:[#allocation10 + $0x60] sm:$0xff] %v4127
    %4218 = vst [vmem:[#allocation10 + $0x68] sm:$0xff] %v4130
    %4219 = vst [vmem:[#allocation10 + $0x70] sm:$0xff] %v4135
    %4220 = vst [vmem:[#allocation10 + $0x78] sm:$0xff] %v4138
    %4221 = vst [vmem:[#allocation10 + $0x80] sm:$0xff] %v4143
    %4222 = vst [vmem:[#allocation10 + $0x88] sm:$0xff] %v4146
    %4223 = vst [vmem:[#allocation10 + $0x90] sm:$0xff] %v4151
    %4224 = vst [vmem:[#allocation10 + $0x98] sm:$0xff] %v4154
    %4225 = vst [vmem:[#allocation10 + $0xa0] sm:$0xff] %v4159
    %4226 = vst [vmem:[#allocation10 + $0xa8] sm:$0xff] %v4162
    %4227 = vst [vmem:[#allocation10 + $0xb0] sm:$0xff] %v4167
    %4228 = vst [vmem:[#allocation10 + $0xb8] sm:$0xff] %v4170
    %4229 = vst [vmem:[#allocation10 + $0xc0] sm:$0xff] %v4175
    %4230 = vst [vmem:[#allocation10 + $0xc8] sm:$0xff] %v4178
    %4231 = vst [vmem:[#allocation10 + $0xd0] sm:$0xff] %v4183
    %4232 = vst [vmem:[#allocation10 + $0xd8] sm:$0xff] %v4186
    %4233 = vst [vmem:[#allocation10 + $0xe0] sm:$0xff] %v4191
    %4234 = vst [vmem:[#allocation10 + $0xe8] sm:$0xff] %v4194
    %4235 = vst [vmem:[#allocation10 + $0xf0] sm:$0xff] %v4199
    %4236 = vst [vmem:[#allocation10 + $0xf8] sm:$0xff] %v4202
    // Predicated region
    $region54: #{tpu_custom_call.1} parent=1 // pred_check
      _
    $region55: #{tpu_custom_call.1} parent=1 // pred_check_branch
      %4238 = sbr.rel (0) target = $region57
    $region56: #{tpu_custom_call.1} parent=1 // pred_region
      %s4240 = ssub.s32 4096, 4096
      %4241 = vsyncadd [#allocation4], %s4240
      %s4242 = sshll.u32 [#allocation10], 4
      %s4243 = int_to_ptr.vmem [resolvable:$true] %s4242
      %4248 = dma.vmem_to_hbm [thread:$0]  %s4243, 4096, %s9, [#allocation4], 128, 128, 8
    $region57: #{tpu_custom_call.1} parent=1 // pred_fallthru
      _
    // Predicated region
    $region58: #{tpu_custom_call.1} parent=1 // pred_check
      _
    $region59: #{tpu_custom_call.1} parent=1 // pred_check_branch
      %4250 = sbr.rel (0) target = $region61
    $region60: #{tpu_custom_call.1} parent=1 // pred_region
      %4251 = dma.done [#allocation4], 4096
    $region61: #{tpu_custom_call.1} parent=1 // pred_fallthru
      _
    %4252 = vsyncpa [#allocation3], 1
    %4253 = vsyncpa [#allocation6], 1
    %4254 = vsyncpa [#allocation9], 1
    %4255 = vsyncpa [#allocation4], 1

</llo_original>
